<compile_context>
chip_gen: v7x
topology: tpu7x:2x2x1
jax: 0.10.0
libtpu: 0.0.40
codegen_flags: <defaults>
</compile_context>

<pallas_src>
import numpy as np
import jax
import jax.numpy as jnp
from jax.experimental import pallas as pl
from jax.experimental.pallas import tpu as pltpu

# ---------------------------- static geometry ------------------------------
H0, W0, C0 = 20, 24, 3           # conv1 input (N=1)
C1, C2, C3 = 8, 16, 32
OH1, OW1 = 20, 24                # conv1: stride 1, pad 1
OH2, OW2 = 10, 12                # conv2: stride 2, pad 1
OH3, OW3 = 5, 6                  # conv3: stride 2, pad 1
FEAT = C3 * OH3 * OW3            # 960
HID, OUT = 800, 8


def _round8(n):
    return ((n + 7) // 8) * 8


P1_W = _round8((W0 + 2) * C0)    # 80  (padded conv1 input width, 8-aligned)
P2_W = (OW1 + 2) * C1            # 208 (padded conv2 input width)
P3_W = (OW2 + 2) * C2            # 224 (padded conv3 input width)


# --------------------- init-time weight transformations --------------------
def _band_conv_weight(w_oihw, stride, in_w, out_w, pad_rows_to=None):
    """Per-kh banded matmul operands for a 3x3 conv (padding=1) acting on the
    row-flattened (H, W*Cin) activation layout.

    band[kh][w*Cin + ci, j*Cout + co] = W[co, ci, kh, w - stride*j]
    (zero outside the 3-tap band), so that
        out[i, j*Cout + co] = sum_kh  xpad[stride*i + kh, :] @ band[kh]
    reproduces Conv2d(..., stride=stride, padding=1) exactly.
    """
    w_np = np.asarray(w_oihw, dtype=np.float32)
    co, ci, kh_n, kw_n = w_np.shape
    wp = in_w + 2                                  # padding = 1 on each side
    rows = wp * ci
    if pad_rows_to is not None:
        rows = ((rows + pad_rows_to - 1) // pad_rows_to) * pad_rows_to
    band = np.zeros((kh_n, rows, out_w * co), dtype=np.float32)
    for kh in range(kh_n):
        for j in range(out_w):
            for kw in range(kw_n):
                w = stride * j + kw
                band[kh, w * ci:(w + 1) * ci, j * co:(j + 1) * co] = \
                    w_np[:, :, kh, kw].T
    return jnp.asarray(band)


def init_params(key):
    """PyTorch-default init U(-1/sqrt(fan_in), +1/sqrt(fan_in)), torch layouts."""
    def uniform(k, shape, fan_in):
        bound = 1.0 / float(np.sqrt(fan_in))
        return jax.random.uniform(k, shape, jnp.float32, -bound, bound)

    ks = jax.random.split(key, 10)
    return {
        "c1w": uniform(ks[0], (C1, C0, 3, 3), C0 * 9),
        "c1b": uniform(ks[1], (C1,), C0 * 9),
        "c2w": uniform(ks[2], (C2, C1, 3, 3), C1 * 9),
        "c2b": uniform(ks[3], (C2,), C1 * 9),
        "c3w": uniform(ks[4], (C3, C2, 3, 3), C2 * 9),
        "c3b": uniform(ks[5], (C3,), C2 * 9),
        "l1w": uniform(ks[6], (HID, FEAT), FEAT),   # (out, in) like torch
        "l1b": uniform(ks[7], (HID,), FEAT),
        "l2w": uniform(ks[8], (OUT, HID), HID),
        "l2b": uniform(ks[9], (OUT,), HID),
    }


def prepare_kernel_params(params):
    """One-time transforms: banded conv weights, tiled biases, pre-permuted
    (flatten-order folded) and pre-transposed linear weights."""
    l1 = jnp.transpose(params["l1w"].reshape(HID, C3, OH3, OW3),
                       (2, 3, 1, 0)).reshape(OH3 * OW3 * C3, HID)
    return {
        "m1": _band_conv_weight(params["c1w"], 1, W0, OW1, pad_rows_to=8),
        "m2": _band_conv_weight(params["c2w"], 2, OW1, OW2),
        "m3": _band_conv_weight(params["c3w"], 2, OW2, OW3),
        "b1": jnp.tile(params["c1b"], OW1).reshape(1, OW1 * C1),
        "b2": jnp.tile(params["c2b"], OW2).reshape(1, OW2 * C2),
        "b3": jnp.tile(params["c3b"], OW3).reshape(1, OW3 * C3),
        "l1": l1,                                       # (960, 800)
        "l1b": params["l1b"].reshape(1, HID),
        "l2": jnp.transpose(params["l2w"], (1, 0)),     # (800, 8)
        "l2b": params["l2b"].reshape(1, OUT),
    }


# ------------------------------ fused kernel -------------------------------
def _fused_forward_kernel(x_ref, m1_ref, m2_ref, m3_ref,
                          b1_ref, b2_ref, b3_ref,
                          l1_ref, l1b_ref, l2_ref, l2b_ref,
                          o_ref, p1, p2, p3):
    f32 = jnp.float32

    # ---------------- conv1: stride 1, padding 1 ----------------
    p1[...] = jnp.zeros_like(p1)
    p1[1:1 + H0, C0:C0 + W0 * C0] = x_ref[...]          # interior of padded in
    xp1 = p1[...]                                       # (22, 80)
    acc = jnp.dot(xp1[0:OH1, :], m1_ref[0], preferred_element_type=f32)
    acc = acc + jnp.dot(xp1[1:OH1 + 1, :], m1_ref[1], preferred_element_type=f32)
    acc = acc + jnp.dot(xp1[2:OH1 + 2, :], m1_ref[2], preferred_element_type=f32)
    out1 = acc + b1_ref[...]                            # (20, 192), col = w*8+c

    # ---------------- conv2: stride 2, padding 1 ----------------
    p2[...] = jnp.zeros_like(p2)
    p2[1:1 + OH1, C1:C1 + OW1 * C1] = out1
    xp2 = p2[...]                                       # (22, 208)
    r2 = jax.lax.broadcasted_iota(jnp.int32, (OH2, OH1 + 2), 0)
    q2 = jax.lax.broadcasted_iota(jnp.int32, (OH2, OH1 + 2), 1)
    acc = None
    for kh in range(3):
        sel = (q2 == 2 * r2 + kh).astype(f32)           # (10, 22) one-hot rows
        rows = jnp.dot(sel, xp2, preferred_element_type=f32)          # (10, 208)
        term = jnp.dot(rows, m2_ref[kh], preferred_element_type=f32)  # (10, 192)
        acc = term if acc is None else acc + term
    out2 = acc + b2_ref[...]                            # (10, 192), col = w*16+c

    # ---------------- conv3: stride 2, padding 1 ----------------
    p3[...] = jnp.zeros_like(p3)
    p3[1:1 + OH2, C2:C2 + OW2 * C2] = out2
    xp3 = p3[...]                                       # (12, 224)
    r3 = jax.lax.broadcasted_iota(jnp.int32, (OH3, OH2 + 2), 0)
    q3 = jax.lax.broadcasted_iota(jnp.int32, (OH3, OH2 + 2), 1)
    acc = None
    for kh in range(3):
        sel = (q3 == 2 * r3 + kh).astype(f32)           # (5, 12)
        rows = jnp.dot(sel, xp3, preferred_element_type=f32)          # (5, 224)
        term = jnp.dot(rows, m3_ref[kh], preferred_element_type=f32)  # (5, 192)
        acc = term if acc is None else acc + term
    out3 = acc + b3_ref[...]                            # (5, 192), col = w*32+c

    # ---- linear1: torch.flatten's NCHW ordering is folded into l1_ref ----
    v5 = l1b_ref[...]                                   # (1, 800)
    for h in range(OH3):
        v5 = v5 + jnp.dot(out3[h:h + 1, :],
                          l1_ref[h * OW3 * C3:(h + 1) * OW3 * C3, :],
                          preferred_element_type=f32)

    # ---------------- linear2 ----------------
    o_ref[...] = (jnp.dot(v5, l2_ref[...], preferred_element_type=f32)
                  + l2b_ref[...]).astype(o_ref.dtype)


# ------------------------------ host wrapper -------------------------------
def _vmem_spec(a):
    zeros = (0,) * a.ndim
    return pl.BlockSpec(a.shape, lambda: zeros,
                        memory_space=pltpu.MemorySpace.VMEM)


def fused_forward(kparams, x_nchw):
    n, c, h, w = x_nchw.shape
    assert (n, c, h, w) == (1, C0, H0, W0), (
        "this module only works when flatten yields 960 features; "
        f"got {x_nchw.shape}, expected {(1, C0, H0, W0)}")
    # NCHW -> row-flattened NHWC (H, W*C); tiny one-off layout prep in XLA.
    x2d = jnp.transpose(x_nchw[0], (1, 2, 0)).reshape(H0, W0 * C0)

    ins = (x2d, kparams["m1"], kparams["m2"], kparams["m3"],
           kparams["b1"], kparams["b2"], kparams["b3"],
           kparams["l1"], kparams["l1b"], kparams["l2"], kparams["l2b"])

    flops = (2 * 3 * OH1 * P1_W * (OW1 * C1)
             + 2 * 3 * OH2 * (OH1 + 2) * P2_W
             + 2 * 3 * OH2 * P2_W * (OW2 * C2)
             + 2 * 3 * OH3 * (OH2 + 2) * P3_W
             + 2 * 3 * OH3 * P3_W * (OW3 * C3)
             + 2 * FEAT * HID + 2 * HID * OUT)
    bytes_accessed = sum(int(np.prod(a.shape)) * 4 for a in ins) + OUT * 4

    return pl.pallas_call(
        _fused_forward_kernel,
        out_shape=jax.ShapeDtypeStruct((1, OUT), jnp.float32),
        in_specs=[_vmem_spec(a) for a in ins],
        out_specs=pl.BlockSpec((1, OUT), lambda: (0, 0),
                               memory_space=pltpu.MemorySpace.VMEM),
        scratch_shapes=[
            pltpu.VMEM((H0 + 2, P1_W), jnp.float32),    # padded conv1 input
            pltpu.VMEM((OH1 + 2, P2_W), jnp.float32),   # padded conv2 input
            pltpu.VMEM((OH2 + 2, P3_W), jnp.float32),   # padded conv3 input
        ],
        compiler_params=pltpu.CompilerParams(vmem_limit_bytes=32 * 1024 * 1024),
        cost_estimate=pl.CostEstimate(flops=flops, transcendentals=0,
                                      bytes_accessed=bytes_accessed),
    )(*ins)


if __name__ == "__main__":
    key = jax.random.PRNGKey(0)
    pkey, xkey = jax.random.split(key)
    params = init_params(pkey)
    kparams = prepare_kernel_params(params)   # one-time weight transforms

    # Smallest "real" input the module can process: (1, 3, 20, 24)
    #   conv1 -> (1, 8, 20, 24); conv2 -> (1, 16, 10, 12); conv3 -> (1, 32, 5, 6)
    #   flatten -> (1, 960) -> linear1 -> (1, 800) -> linear2 -> (1, 8)
    x = jax.random.normal(xkey, (1, C0, H0, W0), jnp.float32)

    fwd = jax.jit(fused_forward)
    out = jax.block_until_ready(fwd(kparams, x))
    assert out.shape == (1, OUT), out.shape
    assert bool(jnp.all(jnp.isfinite(out)))
    print("KERNEL_OK")
</pallas_src>

<mosaic_0001>
module attributes {stable_mosaic.version = 11 : i64} {
  func.func @_fused_forward_kernel(%arg0: memref<20x72xf32, #tpu.memory_space<vmem>>, %arg1: memref<3x80x192xf32, #tpu.memory_space<vmem>>, %arg2: memref<3x208x192xf32, #tpu.memory_space<vmem>>, %arg3: memref<3x224x192xf32, #tpu.memory_space<vmem>>, %arg4: memref<1x192xf32, #tpu.memory_space<vmem>>, %arg5: memref<1x192xf32, #tpu.memory_space<vmem>>, %arg6: memref<1x192xf32, #tpu.memory_space<vmem>>, %arg7: memref<960x800xf32, #tpu.memory_space<vmem>>, %arg8: memref<1x800xf32, #tpu.memory_space<vmem>>, %arg9: memref<800x8xf32, #tpu.memory_space<vmem>>, %arg10: memref<1x8xf32, #tpu.memory_space<vmem>>, %arg11: memref<1x8xf32, #tpu.memory_space<vmem>>, %arg12: memref<22x80xf32, #tpu.memory_space<vmem>>, %arg13: memref<22x208xf32, #tpu.memory_space<vmem>>, %arg14: memref<12x224xf32, #tpu.memory_space<vmem>>) attributes {dimension_semantics = [], scalar_prefetch = 0 : i64, scratch_operands = 3 : i64, tpu.core_type = #tpu.core_type<tc>} {
    %cst = arith.constant 0.000000e+00 : f32
    %0 = vector.broadcast %cst : f32 to vector<22x80xf32>
    %c0 = arith.constant 0 : index
    %c0_0 = arith.constant 0 : index
    %1 = vector.load %arg12[%c0, %c0_0] : memref<22x80xf32, #tpu.memory_space<vmem>>, vector<22x80xf32>
    tpu.vector_store %arg12[%c0, %c0_0], %0 {strides = array<i32>} : memref<22x80xf32, #tpu.memory_space<vmem>>, vector<22x80xf32>,
    %c0_1 = arith.constant 0 : index
    %c0_2 = arith.constant 0 : index
    %2 = vector.load %arg0[%c0_1, %c0_2] : memref<20x72xf32, #tpu.memory_space<vmem>>, vector<20x72xf32>
    %c1 = arith.constant 1 : index
    %c3 = arith.constant 3 : index
    %3 = vector.load %arg12[%c1, %c3] : memref<22x80xf32, #tpu.memory_space<vmem>>, vector<20x72xf32>
    tpu.vector_store %arg12[%c1, %c3], %2 {strides = array<i32>} : memref<22x80xf32, #tpu.memory_space<vmem>>, vector<20x72xf32>,
    %c0_3 = arith.constant 0 : index
    %c0_4 = arith.constant 0 : index
    %4 = vector.load %arg12[%c0_3, %c0_4] : memref<22x80xf32, #tpu.memory_space<vmem>>, vector<22x80xf32>
    %5 = vector.extract_strided_slice %4 {offsets = [0, 0], sizes = [20, 80], strides = [1, 1]} : vector<22x80xf32> to vector<20x80xf32>
    %c0_5 = arith.constant 0 : index
    %c0_6 = arith.constant 0 : index
    %c0_7 = arith.constant 0 : index
    %6 = vector.load %arg1[%c0_5, %c0_6, %c0_7] : memref<3x80x192xf32, #tpu.memory_space<vmem>>, vector<1x80x192xf32>
    %7 = vector.shape_cast %6 : vector<1x80x192xf32> to vector<80x192xf32>
    %cst_8 = arith.constant dense<0.000000e+00> : vector<20x192xf32>
    %8 = tpu.matmul %5, %7, %cst_8 {dimension_numbers = #tpu.dot_dimension_numbers<[1], [0], [0], [1], [0, 0, 1, 1], [], []>} : vector<20x80xf32>, vector<80x192xf32>, vector<20x192xf32> -> vector<20x192xf32>
    %9 = vector.extract_strided_slice %4 {offsets = [1, 0], sizes = [20, 80], strides = [1, 1]} : vector<22x80xf32> to vector<20x80xf32>
    %c1_9 = arith.constant 1 : index
    %c0_10 = arith.constant 0 : index
    %c0_11 = arith.constant 0 : index
    %10 = vector.load %arg1[%c1_9, %c0_10, %c0_11] : memref<3x80x192xf32, #tpu.memory_space<vmem>>, vector<1x80x192xf32>
    %11 = vector.shape_cast %10 : vector<1x80x192xf32> to vector<80x192xf32>
    %cst_12 = arith.constant dense<0.000000e+00> : vector<20x192xf32>
    %12 = tpu.matmul %9, %11, %cst_12 {dimension_numbers = #tpu.dot_dimension_numbers<[1], [0], [0], [1], [0, 0, 1, 1], [], []>} : vector<20x80xf32>, vector<80x192xf32>, vector<20x192xf32> -> vector<20x192xf32>
    %13 = arith.addf %8, %12 : vector<20x192xf32>
    %14 = vector.extract_strided_slice %4 {offsets = [2, 0], sizes = [20, 80], strides = [1, 1]} : vector<22x80xf32> to vector<20x80xf32>
    %c2 = arith.constant 2 : index
    %c0_13 = arith.constant 0 : index
    %c0_14 = arith.constant 0 : index
    %15 = vector.load %arg1[%c2, %c0_13, %c0_14] : memref<3x80x192xf32, #tpu.memory_space<vmem>>, vector<1x80x192xf32>
    %16 = vector.shape_cast %15 : vector<1x80x192xf32> to vector<80x192xf32>
    %cst_15 = arith.constant dense<0.000000e+00> : vector<20x192xf32>
    %17 = tpu.matmul %14, %16, %cst_15 {dimension_numbers = #tpu.dot_dimension_numbers<[1], [0], [0], [1], [0, 0, 1, 1], [], []>} : vector<20x80xf32>, vector<80x192xf32>, vector<20x192xf32> -> vector<20x192xf32>
    %18 = arith.addf %13, %17 : vector<20x192xf32>
    %c0_16 = arith.constant 0 : index
    %c0_17 = arith.constant 0 : index
    %19 = vector.load %arg4[%c0_16, %c0_17] : memref<1x192xf32, #tpu.memory_space<vmem>>, vector<1x192xf32>
    %20 = vector.broadcast %19 : vector<1x192xf32> to vector<20x192xf32>
    %21 = arith.addf %18, %20 : vector<20x192xf32>
    %cst_18 = arith.constant 0.000000e+00 : f32
    %22 = vector.broadcast %cst_18 : f32 to vector<22x208xf32>
    %c0_19 = arith.constant 0 : index
    %c0_20 = arith.constant 0 : index
    %23 = vector.load %arg13[%c0_19, %c0_20] : memref<22x208xf32, #tpu.memory_space<vmem>>, vector<22x208xf32>
    tpu.vector_store %arg13[%c0_19, %c0_20], %22 {strides = array<i32>} : memref<22x208xf32, #tpu.memory_space<vmem>>, vector<22x208xf32>,
    %c1_21 = arith.constant 1 : index
    %c8 = arith.constant 8 : index
    %24 = vector.load %arg13[%c1_21, %c8] : memref<22x208xf32, #tpu.memory_space<vmem>>, vector<20x192xf32>
    tpu.vector_store %arg13[%c1_21, %c8], %21 {strides = array<i32>} : memref<22x208xf32, #tpu.memory_space<vmem>>, vector<20x192xf32>,
    %c0_22 = arith.constant 0 : index
    %c0_23 = arith.constant 0 : index
    %25 = vector.load %arg13[%c0_22, %c0_23] : memref<22x208xf32, #tpu.memory_space<vmem>>, vector<22x208xf32>
    %26 = tpu.iota {dimensions = array<i32: 0>} : vector<10x22xi32>
    %27 = tpu.iota {dimensions = array<i32: 1>} : vector<10x22xi32>
    %c2_i32 = arith.constant 2 : i32
    %28 = vector.broadcast %c2_i32 : i32 to vector<10x22xi32>
    %29 = arith.muli %28, %26 : vector<10x22xi32>
    %c0_i32 = arith.constant 0 : i32
    %30 = vector.broadcast %c0_i32 : i32 to vector<10x22xi32>
    %31 = arith.addi %29, %30 : vector<10x22xi32>
    %32 = arith.cmpi eq, %27, %31 : vector<10x22xi32>
    %33 = arith.extui %32 : vector<10x22xi1> to vector<10x22xi32>
    %34 = arith.sitofp %33 : vector<10x22xi32> to vector<10x22xf32>
    %cst_24 = arith.constant dense<0.000000e+00> : vector<10x208xf32>
    %35 = tpu.matmul %34, %25, %cst_24 {dimension_numbers = #tpu.dot_dimension_numbers<[1], [0], [0], [1], [0, 0, 1, 1], [], []>} : vector<10x22xf32>, vector<22x208xf32>, vector<10x208xf32> -> vector<10x208xf32>
    %c0_25 = arith.constant 0 : index
    %c0_26 = arith.constant 0 : index
    %c0_27 = arith.constant 0 : index
    %36 = vector.load %arg2[%c0_25, %c0_26, %c0_27] : memref<3x208x192xf32, #tpu.memory_space<vmem>>, vector<1x208x192xf32>
    %37 = vector.shape_cast %36 : vector<1x208x192xf32> to vector<208x192xf32>
    %cst_28 = arith.constant dense<0.000000e+00> : vector<10x192xf32>
    %38 = tpu.matmul %35, %37, %cst_28 {dimension_numbers = #tpu.dot_dimension_numbers<[1], [0], [0], [1], [0, 0, 1, 1], [], []>} : vector<10x208xf32>, vector<208x192xf32>, vector<10x192xf32> -> vector<10x192xf32>
    %c2_i32_29 = arith.constant 2 : i32
    %39 = vector.broadcast %c2_i32_29 : i32 to vector<10x22xi32>
    %40 = arith.muli %39, %26 : vector<10x22xi32>
    %c1_i32 = arith.constant 1 : i32
    %41 = vector.broadcast %c1_i32 : i32 to vector<10x22xi32>
    %42 = arith.addi %40, %41 : vector<10x22xi32>
    %43 = arith.cmpi eq, %27, %42 : vector<10x22xi32>
    %44 = arith.extui %43 : vector<10x22xi1> to vector<10x22xi32>
    %45 = arith.sitofp %44 : vector<10x22xi32> to vector<10x22xf32>
    %cst_30 = arith.constant dense<0.000000e+00> : vector<10x208xf32>
    %46 = tpu.matmul %45, %25, %cst_30 {dimension_numbers = #tpu.dot_dimension_numbers<[1], [0], [0], [1], [0, 0, 1, 1], [], []>} : vector<10x22xf32>, vector<22x208xf32>, vector<10x208xf32> -> vector<10x208xf32>
    %c1_31 = arith.constant 1 : index
    %c0_32 = arith.constant 0 : index
    %c0_33 = arith.constant 0 : index
    %47 = vector.load %arg2[%c1_31, %c0_32, %c0_33] : memref<3x208x192xf32, #tpu.memory_space<vmem>>, vector<1x208x192xf32>
    %48 = vector.shape_cast %47 : vector<1x208x192xf32> to vector<208x192xf32>
    %cst_34 = arith.constant dense<0.000000e+00> : vector<10x192xf32>
    %49 = tpu.matmul %46, %48, %cst_34 {dimension_numbers = #tpu.dot_dimension_numbers<[1], [0], [0], [1], [0, 0, 1, 1], [], []>} : vector<10x208xf32>, vector<208x192xf32>, vector<10x192xf32> -> vector<10x192xf32>
    %50 = arith.addf %38, %49 : vector<10x192xf32>
    %c2_i32_35 = arith.constant 2 : i32
    %51 = vector.broadcast %c2_i32_35 : i32 to vector<10x22xi32>
    %52 = arith.muli %51, %26 : vector<10x22xi32>
    %c2_i32_36 = arith.constant 2 : i32
    %53 = vector.broadcast %c2_i32_36 : i32 to vector<10x22xi32>
    %54 = arith.addi %52, %53 : vector<10x22xi32>
    %55 = arith.cmpi eq, %27, %54 : vector<10x22xi32>
    %56 = arith.extui %55 : vector<10x22xi1> to vector<10x22xi32>
    %57 = arith.sitofp %56 : vector<10x22xi32> to vector<10x22xf32>
    %cst_37 = arith.constant dense<0.000000e+00> : vector<10x208xf32>
    %58 = tpu.matmul %57, %25, %cst_37 {dimension_numbers = #tpu.dot_dimension_numbers<[1], [0], [0], [1], [0, 0, 1, 1], [], []>} : vector<10x22xf32>, vector<22x208xf32>, vector<10x208xf32> -> vector<10x208xf32>
    %c2_38 = arith.constant 2 : index
    %c0_39 = arith.constant 0 : index
    %c0_40 = arith.constant 0 : index
    %59 = vector.load %arg2[%c2_38, %c0_39, %c0_40] : memref<3x208x192xf32, #tpu.memory_space<vmem>>, vector<1x208x192xf32>
    %60 = vector.shape_cast %59 : vector<1x208x192xf32> to vector<208x192xf32>
    %cst_41 = arith.constant dense<0.000000e+00> : vector<10x192xf32>
    %61 = tpu.matmul %58, %60, %cst_41 {dimension_numbers = #tpu.dot_dimension_numbers<[1], [0], [0], [1], [0, 0, 1, 1], [], []>} : vector<10x208xf32>, vector<208x192xf32>, vector<10x192xf32> -> vector<10x192xf32>
    %62 = arith.addf %50, %61 : vector<10x192xf32>
    %c0_42 = arith.constant 0 : index
    %c0_43 = arith.constant 0 : index
    %63 = vector.load %arg5[%c0_42, %c0_43] : memref<1x192xf32, #tpu.memory_space<vmem>>, vector<1x192xf32>
    %64 = vector.broadcast %63 : vector<1x192xf32> to vector<10x192xf32>
    %65 = arith.addf %62, %64 : vector<10x192xf32>
    %cst_44 = arith.constant 0.000000e+00 : f32
    %66 = vector.broadcast %cst_44 : f32 to vector<12x224xf32>
    %c0_45 = arith.constant 0 : index
    %c0_46 = arith.constant 0 : index
    %67 = vector.load %arg14[%c0_45, %c0_46] : memref<12x224xf32, #tpu.memory_space<vmem>>, vector<12x224xf32>
    tpu.vector_store %arg14[%c0_45, %c0_46], %66 {strides = array<i32>} : memref<12x224xf32, #tpu.memory_space<vmem>>, vector<12x224xf32>,
    %c1_47 = arith.constant 1 : index
    %c16 = arith.constant 16 : index
    %68 = vector.load %arg14[%c1_47, %c16] : memref<12x224xf32, #tpu.memory_space<vmem>>, vector<10x192xf32>
    tpu.vector_store %arg14[%c1_47, %c16], %65 {strides = array<i32>} : memref<12x224xf32, #tpu.memory_space<vmem>>, vector<10x192xf32>,
    %c0_48 = arith.constant 0 : index
    %c0_49 = arith.constant 0 : index
    %69 = vector.load %arg14[%c0_48, %c0_49] : memref<12x224xf32, #tpu.memory_space<vmem>>, vector<12x224xf32>
    %70 = tpu.iota {dimensions = array<i32: 0>} : vector<5x12xi32>
    %71 = tpu.iota {dimensions = array<i32: 1>} : vector<5x12xi32>
    %c2_i32_50 = arith.constant 2 : i32
    %72 = vector.broadcast %c2_i32_50 : i32 to vector<5x12xi32>
    %73 = arith.muli %72, %70 : vector<5x12xi32>
    %c0_i32_51 = arith.constant 0 : i32
    %74 = vector.broadcast %c0_i32_51 : i32 to vector<5x12xi32>
    %75 = arith.addi %73, %74 : vector<5x12xi32>
    %76 = arith.cmpi eq, %71, %75 : vector<5x12xi32>
    %77 = arith.extui %76 : vector<5x12xi1> to vector<5x12xi32>
    %78 = arith.sitofp %77 : vector<5x12xi32> to vector<5x12xf32>
    %cst_52 = arith.constant dense<0.000000e+00> : vector<5x224xf32>
    %79 = tpu.matmul %78, %69, %cst_52 {dimension_numbers = #tpu.dot_dimension_numbers<[1], [0], [0], [1], [0, 0, 1, 1], [], []>} : vector<5x12xf32>, vector<12x224xf32>, vector<5x224xf32> -> vector<5x224xf32>
    %c0_53 = arith.constant 0 : index
    %c0_54 = arith.constant 0 : index
    %c0_55 = arith.constant 0 : index
    %80 = vector.load %arg3[%c0_53, %c0_54, %c0_55] : memref<3x224x192xf32, #tpu.memory_space<vmem>>, vector<1x224x192xf32>
    %81 = vector.shape_cast %80 : vector<1x224x192xf32> to vector<224x192xf32>
    %cst_56 = arith.constant dense<0.000000e+00> : vector<5x192xf32>
    %82 = tpu.matmul %79, %81, %cst_56 {dimension_numbers = #tpu.dot_dimension_numbers<[1], [0], [0], [1], [0, 0, 1, 1], [], []>} : vector<5x224xf32>, vector<224x192xf32>, vector<5x192xf32> -> vector<5x192xf32>
    %c2_i32_57 = arith.constant 2 : i32
    %83 = vector.broadcast %c2_i32_57 : i32 to vector<5x12xi32>
    %84 = arith.muli %83, %70 : vector<5x12xi32>
    %c1_i32_58 = arith.constant 1 : i32
    %85 = vector.broadcast %c1_i32_58 : i32 to vector<5x12xi32>
    %86 = arith.addi %84, %85 : vector<5x12xi32>
    %87 = arith.cmpi eq, %71, %86 : vector<5x12xi32>
    %88 = arith.extui %87 : vector<5x12xi1> to vector<5x12xi32>
    %89 = arith.sitofp %88 : vector<5x12xi32> to vector<5x12xf32>
    %cst_59 = arith.constant dense<0.000000e+00> : vector<5x224xf32>
    %90 = tpu.matmul %89, %69, %cst_59 {dimension_numbers = #tpu.dot_dimension_numbers<[1], [0], [0], [1], [0, 0, 1, 1], [], []>} : vector<5x12xf32>, vector<12x224xf32>, vector<5x224xf32> -> vector<5x224xf32>
    %c1_60 = arith.constant 1 : index
    %c0_61 = arith.constant 0 : index
    %c0_62 = arith.constant 0 : index
    %91 = vector.load %arg3[%c1_60, %c0_61, %c0_62] : memref<3x224x192xf32, #tpu.memory_space<vmem>>, vector<1x224x192xf32>
    %92 = vector.shape_cast %91 : vector<1x224x192xf32> to vector<224x192xf32>
    %cst_63 = arith.constant dense<0.000000e+00> : vector<5x192xf32>
    %93 = tpu.matmul %90, %92, %cst_63 {dimension_numbers = #tpu.dot_dimension_numbers<[1], [0], [0], [1], [0, 0, 1, 1], [], []>} : vector<5x224xf32>, vector<224x192xf32>, vector<5x192xf32> -> vector<5x192xf32>
    %94 = arith.addf %82, %93 : vector<5x192xf32>
    %c2_i32_64 = arith.constant 2 : i32
    %95 = vector.broadcast %c2_i32_64 : i32 to vector<5x12xi32>
    %96 = arith.muli %95, %70 : vector<5x12xi32>
    %c2_i32_65 = arith.constant 2 : i32
    %97 = vector.broadcast %c2_i32_65 : i32 to vector<5x12xi32>
    %98 = arith.addi %96, %97 : vector<5x12xi32>
    %99 = arith.cmpi eq, %71, %98 : vector<5x12xi32>
    %100 = arith.extui %99 : vector<5x12xi1> to vector<5x12xi32>
    %101 = arith.sitofp %100 : vector<5x12xi32> to vector<5x12xf32>
    %cst_66 = arith.constant dense<0.000000e+00> : vector<5x224xf32>
    %102 = tpu.matmul %101, %69, %cst_66 {dimension_numbers = #tpu.dot_dimension_numbers<[1], [0], [0], [1], [0, 0, 1, 1], [], []>} : vector<5x12xf32>, vector<12x224xf32>, vector<5x224xf32> -> vector<5x224xf32>
    %c2_67 = arith.constant 2 : index
    %c0_68 = arith.constant 0 : index
    %c0_69 = arith.constant 0 : index
    %103 = vector.load %arg3[%c2_67, %c0_68, %c0_69] : memref<3x224x192xf32, #tpu.memory_space<vmem>>, vector<1x224x192xf32>
    %104 = vector.shape_cast %103 : vector<1x224x192xf32> to vector<224x192xf32>
    %cst_70 = arith.constant dense<0.000000e+00> : vector<5x192xf32>
    %105 = tpu.matmul %102, %104, %cst_70 {dimension_numbers = #tpu.dot_dimension_numbers<[1], [0], [0], [1], [0, 0, 1, 1], [], []>} : vector<5x224xf32>, vector<224x192xf32>, vector<5x192xf32> -> vector<5x192xf32>
    %106 = arith.addf %94, %105 : vector<5x192xf32>
    %c0_71 = arith.constant 0 : index
    %c0_72 = arith.constant 0 : index
    %107 = vector.load %arg6[%c0_71, %c0_72] : memref<1x192xf32, #tpu.memory_space<vmem>>, vector<1x192xf32>
    %108 = vector.broadcast %107 : vector<1x192xf32> to vector<5x192xf32>
    %109 = arith.addf %106, %108 : vector<5x192xf32>
    %c0_73 = arith.constant 0 : index
    %c0_74 = arith.constant 0 : index
    %110 = vector.load %arg8[%c0_73, %c0_74] : memref<1x800xf32, #tpu.memory_space<vmem>>, vector<1x800xf32>
    %111 = vector.extract_strided_slice %109 {offsets = [0, 0], sizes = [1, 192], strides = [1, 1]} : vector<5x192xf32> to vector<1x192xf32>
    %c0_75 = arith.constant 0 : index
    %c0_76 = arith.constant 0 : index
    %112 = vector.load %arg7[%c0_75, %c0_76] : memref<960x800xf32, #tpu.memory_space<vmem>>, vector<192x800xf32>
    %cst_77 = arith.constant dense<0.000000e+00> : vector<1x800xf32>
    %113 = tpu.matmul %111, %112, %cst_77 {dimension_numbers = #tpu.dot_dimension_numbers<[1], [0], [0], [1], [0, 0, 1, 1], [], []>} : vector<1x192xf32>, vector<192x800xf32>, vector<1x800xf32> -> vector<1x800xf32>
    %114 = arith.addf %110, %113 : vector<1x800xf32>
    %115 = vector.extract_strided_slice %109 {offsets = [1, 0], sizes = [1, 192], strides = [1, 1]} : vector<5x192xf32> to vector<1x192xf32>
    %c192 = arith.constant 192 : index
    %c0_78 = arith.constant 0 : index
    %116 = vector.load %arg7[%c192, %c0_78] : memref<960x800xf32, #tpu.memory_space<vmem>>, vector<192x800xf32>
    %cst_79 = arith.constant dense<0.000000e+00> : vector<1x800xf32>
    %117 = tpu.matmul %115, %116, %cst_79 {dimension_numbers = #tpu.dot_dimension_numbers<[1], [0], [0], [1], [0, 0, 1, 1], [], []>} : vector<1x192xf32>, vector<192x800xf32>, vector<1x800xf32> -> vector<1x800xf32>
    %118 = arith.addf %114, %117 : vector<1x800xf32>
    %119 = vector.extract_strided_slice %109 {offsets = [2, 0], sizes = [1, 192], strides = [1, 1]} : vector<5x192xf32> to vector<1x192xf32>
    %c384 = arith.constant 384 : index
    %c0_80 = arith.constant 0 : index
    %120 = vector.load %arg7[%c384, %c0_80] : memref<960x800xf32, #tpu.memory_space<vmem>>, vector<192x800xf32>
    %cst_81 = arith.constant dense<0.000000e+00> : vector<1x800xf32>
    %121 = tpu.matmul %119, %120, %cst_81 {dimension_numbers = #tpu.dot_dimension_numbers<[1], [0], [0], [1], [0, 0, 1, 1], [], []>} : vector<1x192xf32>, vector<192x800xf32>, vector<1x800xf32> -> vector<1x800xf32>
    %122 = arith.addf %118, %121 : vector<1x800xf32>
    %123 = vector.extract_strided_slice %109 {offsets = [3, 0], sizes = [1, 192], strides = [1, 1]} : vector<5x192xf32> to vector<1x192xf32>
    %c576 = arith.constant 576 : index
    %c0_82 = arith.constant 0 : index
    %124 = vector.load %arg7[%c576, %c0_82] : memref<960x800xf32, #tpu.memory_space<vmem>>, vector<192x800xf32>
    %cst_83 = arith.constant dense<0.000000e+00> : vector<1x800xf32>
    %125 = tpu.matmul %123, %124, %cst_83 {dimension_numbers = #tpu.dot_dimension_numbers<[1], [0], [0], [1], [0, 0, 1, 1], [], []>} : vector<1x192xf32>, vector<192x800xf32>, vector<1x800xf32> -> vector<1x800xf32>
    %126 = arith.addf %122, %125 : vector<1x800xf32>
    %127 = vector.extract_strided_slice %109 {offsets = [4, 0], sizes = [1, 192], strides = [1, 1]} : vector<5x192xf32> to vector<1x192xf32>
    %c768 = arith.constant 768 : index
    %c0_84 = arith.constant 0 : index
    %128 = vector.load %arg7[%c768, %c0_84] : memref<960x800xf32, #tpu.memory_space<vmem>>, vector<192x800xf32>
    %cst_85 = arith.constant dense<0.000000e+00> : vector<1x800xf32>
    %129 = tpu.matmul %127, %128, %cst_85 {dimension_numbers = #tpu.dot_dimension_numbers<[1], [0], [0], [1], [0, 0, 1, 1], [], []>} : vector<1x192xf32>, vector<192x800xf32>, vector<1x800xf32> -> vector<1x800xf32>
    %130 = arith.addf %126, %129 : vector<1x800xf32>
    %c0_86 = arith.constant 0 : index
    %c0_87 = arith.constant 0 : index
    %131 = vector.load %arg9[%c0_86, %c0_87] : memref<800x8xf32, #tpu.memory_space<vmem>>, vector<800x8xf32>
    %cst_88 = arith.constant dense<0.000000e+00> : vector<1x8xf32>
    %132 = tpu.matmul %130, %131, %cst_88 {dimension_numbers = #tpu.dot_dimension_numbers<[1], [0], [0], [1], [0, 0, 1, 1], [], []>} : vector<1x800xf32>, vector<800x8xf32>, vector<1x8xf32> -> vector<1x8xf32>
    %c0_89 = arith.constant 0 : index
    %c0_90 = arith.constant 0 : index
    %133 = vector.load %arg10[%c0_89, %c0_90] : memref<1x8xf32, #tpu.memory_space<vmem>>, vector<1x8xf32>
    %134 = arith.addf %132, %133 : vector<1x8xf32>
    %c0_91 = arith.constant 0 : index
    %c0_92 = arith.constant 0 : index
    %135 = vector.load %arg11[%c0_91, %c0_92] : memref<1x8xf32, #tpu.memory_space<vmem>>, vector<1x8xf32>
    tpu.vector_store %arg11[%c0_91, %c0_92], %134 {strides = array<i32>} : memref<1x8xf32, #tpu.memory_space<vmem>>, vector<1x8xf32>,
    return
  }
}

</mosaic_0001>

<llo_original>
// kernel: fused_forward.1
$region0: #{fused_forward.1}
  #allocation0 [shape = 'u32[]', space=smem, size = 0x4, offset = 0x4, fixed_abs, tag = 'smem constant byte address 0x4 - core index']
  #allocation1 [shape = 'u32[144,128]{1,0:T(1,128)}', space=vmem, size = 0x12000, scoped, tag = 'internal scratch']
  #allocation2 [shape = 'f32[22,80]{1,0:T(8,128)}', space=vmem, size = 0x3000, scoped, tag = 'scratch operand']
  #allocation3 [shape = 'f32[22,208]{1,0:T(8,128)}', space=vmem, size = 0x6000, scoped, tag = 'scratch operand']
  #allocation4 [shape = 'f32[12,224]{1,0:T(8,128)}', space=vmem, size = 0x4000, scoped, tag = 'scratch operand']
  %s0 = inlined_call_operand.vmem [shape: f32[20,72], index: 0, kind: input, shape index: {}]
  %s1 = inlined_call_operand.vmem [shape: f32[3,80,192], index: 1, kind: input, shape index: {}]
  %s2 = inlined_call_operand.vmem [shape: f32[3,208,192], index: 2, kind: input, shape index: {}]
  %s3 = inlined_call_operand.vmem [shape: f32[3,224,192], index: 3, kind: input, shape index: {}]
  %s4 = inlined_call_operand.vmem [shape: f32[1,192], index: 4, kind: input, shape index: {}]
  %s5 = inlined_call_operand.vmem [shape: f32[1,192], index: 5, kind: input, shape index: {}]
  %s6 = inlined_call_operand.vmem [shape: f32[1,192], index: 6, kind: input, shape index: {}]
  %s7 = inlined_call_operand.vmem [shape: f32[960,800], index: 7, kind: input, shape index: {}]
  %s8 = inlined_call_operand.vmem [shape: f32[1,800], index: 8, kind: input, shape index: {}]
  %s9 = inlined_call_operand.vmem [shape: f32[800,8], index: 9, kind: input, shape index: {}]
  %s10 = inlined_call_operand.vmem [shape: f32[1,8], index: 10, kind: input, shape index: {}]
  %s11 = inlined_call_operand.hbm [shape: f32[1,8], index: 11, kind: output, shape index: {}]
  %s12 = sld [smem:[#allocation0]]
  $region54: #{fused_forward.1} parent=0
    _
  %s14 = ssub.s32 1, %s12
  %s15 = scalar_select 0, %s14, %s12
  $region1: #{fused_forward.1} parent=0
    #allocation5 [shape = 'u8[512]{0}', space=vmem, size = 0x400, scoped, tag = 'output window, operand 0, single buffered']
    #allocation6 [shape = 's32[1]{0}', space=sflag, size = 0x4, scoped, tag = 'scoped memory for fused_forward.1']
    %16 = vsyncpa [#allocation6], 0
    // Predicated region
    $region2: #{fused_forward.1} parent=1 // pred_check
      _
    $region3: #{fused_forward.1} parent=1 // pred_check_branch
      %18 = sbr.rel (0) target = $region5
    $region4: #{fused_forward.1} parent=1 // pred_region
      _
    $region5: #{fused_forward.1} parent=1 // pred_fallthru
      _
    // Predicated region
    $region6: #{fused_forward.1} parent=1 // pred_check
      _
    $region7: #{fused_forward.1} parent=1 // pred_check_branch
      %20 = sbr.rel (0) target = $region9
    $region8: #{fused_forward.1} parent=1 // pred_region
      _
    $region9: #{fused_forward.1} parent=1 // pred_fallthru
      _
    // Predicated region
    $region10: #{fused_forward.1} parent=1 // pred_check
      _
    $region11: #{fused_forward.1} parent=1 // pred_check_branch
      %22 = sbr.rel (0) target = $region13
    $region12: #{fused_forward.1} parent=1 // pred_region
      _
    $region13: #{fused_forward.1} parent=1 // pred_fallthru
      _
    // Predicated region
    $region14: #{fused_forward.1} parent=1 // pred_check
      _
    $region15: #{fused_forward.1} parent=1 // pred_check_branch
      %24 = sbr.rel (0) target = $region17
    $region16: #{fused_forward.1} parent=1 // pred_region
      _
    $region17: #{fused_forward.1} parent=1 // pred_fallthru
      _
    // Predicated region
    $region18: #{fused_forward.1} parent=1 // pred_check
      _
    $region19: #{fused_forward.1} parent=1 // pred_check_branch
      %26 = sbr.rel (0) target = $region21
    $region20: #{fused_forward.1} parent=1 // pred_region
      _
    $region21: #{fused_forward.1} parent=1 // pred_fallthru
      _
    // Predicated region
    $region22: #{fused_forward.1} parent=1 // pred_check
      _
    $region23: #{fused_forward.1} parent=1 // pred_check_branch
      %28 = sbr.rel (0) target = $region25
    $region24: #{fused_forward.1} parent=1 // pred_region
      _
    $region25: #{fused_forward.1} parent=1 // pred_fallthru
      _
    // Predicated region
    $region26: #{fused_forward.1} parent=1 // pred_check
      _
    $region27: #{fused_forward.1} parent=1 // pred_check_branch
      %30 = sbr.rel (0) target = $region29
    $region28: #{fused_forward.1} parent=1 // pred_region
      _
    $region29: #{fused_forward.1} parent=1 // pred_fallthru
      _
    // Predicated region
    $region30: #{fused_forward.1} parent=1 // pred_check
      _
    $region31: #{fused_forward.1} parent=1 // pred_check_branch
      %32 = sbr.rel (0) target = $region33
    $region32: #{fused_forward.1} parent=1 // pred_region
      _
    $region33: #{fused_forward.1} parent=1 // pred_fallthru
      _
    // Predicated region
    $region34: #{fused_forward.1} parent=1 // pred_check
      _
    $region35: #{fused_forward.1} parent=1 // pred_check_branch
      %34 = sbr.rel (0) target = $region37
    $region36: #{fused_forward.1} parent=1 // pred_region
      _
    $region37: #{fused_forward.1} parent=1 // pred_fallthru
      _
    // Predicated region
    $region38: #{fused_forward.1} parent=1 // pred_check
      _
    $region39: #{fused_forward.1} parent=1 // pred_check_branch
      %36 = sbr.rel (0) target = $region41
    $region40: #{fused_forward.1} parent=1 // pred_region
      _
    $region41: #{fused_forward.1} parent=1 // pred_fallthru
      _
    // Predicated region
    $region42: #{fused_forward.1} parent=1 // pred_check
      _
    $region43: #{fused_forward.1} parent=1 // pred_check_branch
      %38 = sbr.rel (0) target = $region45
    $region44: #{fused_forward.1} parent=1 // pred_region
      _
    $region45: #{fused_forward.1} parent=1 // pred_fallthru
      _
    %vm39 = vcmask 654336
    %40 = vst.msk [vmem:[#allocation2] sm:$0xff] %vm39, 0.0
    %41 = vst.msk [vmem:[#allocation2 + $0x8] sm:$0xff] %vm39, 0.0
    %vm42 = vcmask 652288
    %43 = vst.msk [vmem:[#allocation2 + $0x10] sm:$0x3f] %vm42, 0.0
    %v44 = vld [vmem:[%s0] sm:$0xff]
    %v45 = vld [vmem:[%s0 + $0x8] sm:$0xff]
    %v46 = vld [vmem:[%s0 + $0x10] sm:$0xf]
    %50 = vrot.lane.b32.xlu0 %v44, 3
    %v51 = vpop.permute.xlu0 %50
    %52 = vrot.lane.b32.xlu0 %v45, 3
    %v53 = vpop.permute.xlu0 %52
    %54 = vrot.lane.b32.xlu0 %v46, 3
    %v55 = vpop.permute.xlu0 %54
    %vm59 = vcmask 613400
    %60 = vst.msk [vmem:[#allocation2 + $0x1] sm:$0xff] %vm59, %v51
    %61 = vst.msk [vmem:[#allocation2 + $0x9] sm:$0xff] %vm59, %v53
    %vm62 = vcmask 609304
    %63 = vst.msk [vmem:[#allocation2 + $0x11] sm:$0xf] %vm62, %v55
    %v64 = vld [vmem:[#allocation2] sm:$0xff]
    %v65 = vld [vmem:[#allocation2 + $0x8] sm:$0xff]
    %v66 = vld [vmem:[#allocation2 + $0x10] sm:$0x3f]
    %v67 = vld [vmem:[%s1] sm:$0xff]
    %v68 = vld [vmem:[%s1 + $0x8] sm:$0xff]
    %v69 = vld [vmem:[%s1 + $0x10] sm:$0xff]
    %v70 = vld [vmem:[%s1 + $0x18] sm:$0xff]
    %v71 = vld [vmem:[%s1 + $0x20] sm:$0xff]
    %v72 = vld [vmem:[%s1 + $0x28] sm:$0xff]
    %v73 = vld [vmem:[%s1 + $0x30] sm:$0xff]
    %v74 = vld [vmem:[%s1 + $0x38] sm:$0xff]
    %v75 = vld [vmem:[%s1 + $0x40] sm:$0xff]
    %v76 = vld [vmem:[%s1 + $0x48] sm:$0xff]
    %v77 = vld [vmem:[%s1 + $0x50] sm:$0xff]
    %v78 = vld [vmem:[%s1 + $0x58] sm:$0xff]
    %v79 = vld [vmem:[%s1 + $0x60] sm:$0xff]
    %v80 = vld [vmem:[%s1 + $0x68] sm:$0xff]
    %v81 = vld [vmem:[%s1 + $0x70] sm:$0xff]
    %v82 = vld [vmem:[%s1 + $0x78] sm:$0xff]
    %v83 = vld [vmem:[%s1 + $0x80] sm:$0xff]
    %v84 = vld [vmem:[%s1 + $0x88] sm:$0xff]
    %v85 = vld [vmem:[%s1 + $0x90] sm:$0xff]
    %v86 = vld [vmem:[%s1 + $0x98] sm:$0xff]
    %s87 = scalar_lea.vmem %s1, 160
    %v88 = vld [vmem:[%s87] sm:$0xff]
    %v89 = vld [vmem:[%s87 + $0x8] sm:$0xff]
    %v90 = vld [vmem:[%s87 + $0x10] sm:$0xff]
    %v91 = vld [vmem:[%s87 + $0x18] sm:$0xff]
    %v92 = vld [vmem:[%s87 + $0x20] sm:$0xff]
    %v93 = vld [vmem:[%s87 + $0x28] sm:$0xff]
    %v94 = vld [vmem:[%s87 + $0x30] sm:$0xff]
    %v95 = vld [vmem:[%s87 + $0x38] sm:$0xff]
    %v96 = vld [vmem:[%s87 + $0x40] sm:$0xff]
    %v97 = vld [vmem:[%s87 + $0x48] sm:$0xff]
    %v98 = vld [vmem:[%s87 + $0x50] sm:$0xff]
    %v99 = vld [vmem:[%s87 + $0x58] sm:$0xff]
    %v100 = vld [vmem:[%s87 + $0x60] sm:$0xff]
    %v101 = vld [vmem:[%s87 + $0x68] sm:$0xff]
    %v102 = vld [vmem:[%s87 + $0x70] sm:$0xff]
    %v103 = vld [vmem:[%s87 + $0x78] sm:$0xff]
    %v104 = vld [vmem:[%s87 + $0x80] sm:$0xff]
    %v105 = vld [vmem:[%s87 + $0x88] sm:$0xff]
    %v106 = vld [vmem:[%s87 + $0x90] sm:$0xff]
    %v107 = vld [vmem:[%s87 + $0x98] sm:$0xff]
    %vm111 = vcmask 1046528
    %v112 = vrot.slane %v64, 1
    %v113 = vrot.slane %v65, 1
    %v114 = vsel %vm111, %v112, %v113
    %v115 = vrot.slane %v66, 1
    %v116 = vsel %vm111, %v113, %v115
    %v117 = vsel %vm39, %v114, 0
    %v119 = vsel %vm39, %v116, 0
    %v121 = vsel %vm39, %v115, 0
    %123 = vmatprep.subr.mxu0 %v89
    %124 = vmatpush1.msra.mxu0 %v88
    %125 = vmatprep.subr.mxu0 %v91
    %126 = vmatpush1.msra.mxu0 %v90
    %127 = vmatprep.subr.mxu0 %v93
    %128 = vmatpush1.msra.mxu0 %v92
    %129 = vmatprep.subr.mxu0 %v95
    %130 = vmatpush1.msra.mxu0 %v94
    %131 = vmatprep.subr.mxu0 %v97
    %132 = vmatpush1.msra.mxu0 %v96
    %133 = vmatprep.subr.mxu0 %v99
    %134 = vmatpush1.msra.mxu0 %v98
    %135 = vmatprep.subr.mxu0 %v101
    %136 = vmatpush1.msra.mxu0 %v100
    %137 = vmatprep.subr.mxu0 %v103
    %138 = vmatpush1.msra.mxu0 %v102
    %139 = vmatprep.subr.mxu0 %v105
    %140 = vmatpush1.msra.mxu0 %v104
    %141 = vmatprep.subr.mxu0 %v107
    %142 = vmatpush1.msra.mxu0 %v106
    %143 = vmatprep.subr.mxu0 0.0
    %144 = vmatpush1.msra.mxu0 0.0
    %145 = vmatprep.subr.mxu0 0.0
    %146 = vmatpush1.msra.mxu0 0.0
    %147 = vmatprep.subr.mxu0 0.0
    %148 = vmatpush1.msra.mxu0 0.0
    %149 = vmatprep.subr.mxu0 0.0
    %150 = vmatpush1.msra.mxu0 0.0
    %151 = vmatprep.subr.mxu0 0.0
    %152 = vmatpush1.msra.mxu0 0.0
    %153 = vmatprep.subr.mxu0 0.0
    %154 = vmatpush1.msra.mxu0 0.0
    %155 = vmatprep.subr.mxu0 0.0
    %156 = vmatpush1.msra.mxu0 0.0
    %157 = vmatprep.subr.mxu0 0.0
    %158 = vmatpush1.msra.mxu0 0.0
    %159 = vmatprep.subr.mxu0 0.0
    %160 = vmatpush1.msra.mxu0 0.0
    %161 = vmatprep.subr.mxu0 0.0
    %162 = vmatpush1.msra.mxu0 0.0
    %163 = vmatprep.subr.mxu0 0.0
    %164 = vmatpush1.msra.mxu0 0.0
    %165 = vmatprep.subr.mxu0 0.0
    %166 = vmatpush1.msra.mxu0 0.0
    %167 = vmatprep.subr.mxu0 0.0
    %168 = vmatpush1.msra.mxu0 0.0
    %169 = vmatprep.subr.mxu0 0.0
    %170 = vmatpush1.msra.mxu0 0.0
    %171 = vmatprep.subr.mxu0 0.0
    %172 = vmatpush1.msra.mxu0 0.0
    %173 = vmatprep.subr.mxu0 0.0
    %174 = vmatpush1.msra.mxu0 0.0
    %175 = vmatprep.subr.mxu0 0.0
    %176 = vmatpush1.msra.mxu0 0.0
    %177 = vmatprep.subr.mxu0 0.0
    %178 = vmatpush1.msra.mxu0 0.0
    %179 = vmatprep.subr.mxu0 0.0
    %180 = vmatpush1.msra.mxu0 0.0
    %181 = vmatprep.subr.mxu0 0.0
    %182 = vmatpush1.msra.mxu0 0.0
    %183 = vmatprep.subr.mxu0 0.0
    %184 = vmatpush1.msra.mxu0 0.0
    %185 = vmatprep.subr.mxu0 0.0
    %186 = vmatpush1.msra.mxu0 0.0
    %187 = vmatprep.mubr.f32.mxu0 0.0
    %188 = vmatmul.mubr.f32.gmra.mrb[0].mxu0 %v117
    %v189 = vpop.f32.mrb[0].mxu0
    %v190 = vadd.f32 0.0, %v189
    %v191 = vpop.f32.mrb[0].mxu0
    %v192 = vadd.f32 0.0, %v191
    %193 = vmatprep.mubr.f32.mxu0 0.0
    %194 = vmatmul.mubr.f32.gmra.mrb[0].mxu0 %v119
    %v195 = vpop.f32.mrb[0].mxu0
    %v196 = vadd.f32 0.0, %v195
    %v197 = vpop.f32.mrb[0].mxu0
    %v198 = vadd.f32 0.0, %v197
    %199 = vmatprep.mubr.f32.mxu0 0.0
    %200 = vmatmul.mubr.f32.gmra.mrb[0].mxu0 %v121
    %v201 = vpop.f32.mrb[0].mxu0
    %v202 = vadd.f32 0.0, %v201
    %v203 = vpop.f32.mrb[0].mxu0
    %v204 = vadd.f32 0.0, %v203
    %205 = vdwg.mxu0
    %v206 = vsel %vm39, %v64, 0
    %v208 = vsel %vm39, %v65, 0
    %v210 = vsel %vm39, %v66, 0
    %212 = vmatprep.subr.mxu0 %v68
    %213 = vmatpush1.msra.mxu0 %v67
    %214 = vmatprep.subr.mxu0 %v70
    %215 = vmatpush1.msra.mxu0 %v69
    %216 = vmatprep.subr.mxu0 %v72
    %217 = vmatpush1.msra.mxu0 %v71
    %218 = vmatprep.subr.mxu0 %v74
    %219 = vmatpush1.msra.mxu0 %v73
    %220 = vmatprep.subr.mxu0 %v76
    %221 = vmatpush1.msra.mxu0 %v75
    %222 = vmatprep.subr.mxu0 %v78
    %223 = vmatpush1.msra.mxu0 %v77
    %224 = vmatprep.subr.mxu0 %v80
    %225 = vmatpush1.msra.mxu0 %v79
    %226 = vmatprep.subr.mxu0 %v82
    %227 = vmatpush1.msra.mxu0 %v81
    %228 = vmatprep.subr.mxu0 %v84
    %229 = vmatpush1.msra.mxu0 %v83
    %230 = vmatprep.subr.mxu0 %v86
    %231 = vmatpush1.msra.mxu0 %v85
    %232 = vmatprep.subr.mxu0 0.0
    %233 = vmatpush1.msra.mxu0 0.0
    %234 = vmatprep.subr.mxu0 0.0
    %235 = vmatpush1.msra.mxu0 0.0
    %236 = vmatprep.subr.mxu0 0.0
    %237 = vmatpush1.msra.mxu0 0.0
    %238 = vmatprep.subr.mxu0 0.0
    %239 = vmatpush1.msra.mxu0 0.0
    %240 = vmatprep.subr.mxu0 0.0
    %241 = vmatpush1.msra.mxu0 0.0
    %242 = vmatprep.subr.mxu0 0.0
    %243 = vmatpush1.msra.mxu0 0.0
    %244 = vmatprep.subr.mxu0 0.0
    %245 = vmatpush1.msra.mxu0 0.0
    %246 = vmatprep.subr.mxu0 0.0
    %247 = vmatpush1.msra.mxu0 0.0
    %248 = vmatprep.subr.mxu0 0.0
    %249 = vmatpush1.msra.mxu0 0.0
    %250 = vmatprep.subr.mxu0 0.0
    %251 = vmatpush1.msra.mxu0 0.0
    %252 = vmatprep.subr.mxu0 0.0
    %253 = vmatpush1.msra.mxu0 0.0
    %254 = vmatprep.subr.mxu0 0.0
    %255 = vmatpush1.msra.mxu0 0.0
    %256 = vmatprep.subr.mxu0 0.0
    %257 = vmatpush1.msra.mxu0 0.0
    %258 = vmatprep.subr.mxu0 0.0
    %259 = vmatpush1.msra.mxu0 0.0
    %260 = vmatprep.subr.mxu0 0.0
    %261 = vmatpush1.msra.mxu0 0.0
    %262 = vmatprep.subr.mxu0 0.0
    %263 = vmatpush1.msra.mxu0 0.0
    %264 = vmatprep.subr.mxu0 0.0
    %265 = vmatpush1.msra.mxu0 0.0
    %266 = vmatprep.subr.mxu0 0.0
    %267 = vmatpush1.msra.mxu0 0.0
    %268 = vmatprep.subr.mxu0 0.0
    %269 = vmatpush1.msra.mxu0 0.0
    %270 = vmatprep.subr.mxu0 0.0
    %271 = vmatpush1.msra.mxu0 0.0
    %272 = vmatprep.subr.mxu0 0.0
    %273 = vmatpush1.msra.mxu0 0.0
    %274 = vmatprep.subr.mxu0 0.0
    %275 = vmatpush1.msra.mxu0 0.0
    %276 = vmatprep.mubr.f32.mxu0 0.0
    %277 = vmatmul.mubr.f32.gmra.mrb[0].mxu0 %v206
    %v278 = vpop.f32.mrb[0].mxu0
    %v279 = vadd.f32 %v190, %v278
    %v280 = vpop.f32.mrb[0].mxu0
    %v281 = vadd.f32 %v192, %v280
    %282 = vmatprep.mubr.f32.mxu0 0.0
    %283 = vmatmul.mubr.f32.gmra.mrb[0].mxu0 %v208
    %v284 = vpop.f32.mrb[0].mxu0
    %v285 = vadd.f32 %v196, %v284
    %v286 = vpop.f32.mrb[0].mxu0
    %v287 = vadd.f32 %v198, %v286
    %288 = vmatprep.mubr.f32.mxu0 0.0
    %289 = vmatmul.mubr.f32.gmra.mrb[0].mxu0 %v210
    %v290 = vpop.f32.mrb[0].mxu0
    %v291 = vadd.f32 %v202, %v290
    %v292 = vpop.f32.mrb[0].mxu0
    %v293 = vadd.f32 %v204, %v292
    %294 = vdwg.mxu0
    %s295 = scalar_lea.vmem %s1, 320
    %v296 = vld [vmem:[%s295] sm:$0xff]
    %v297 = vld [vmem:[%s295 + $0x8] sm:$0xff]
    %v298 = vld [vmem:[%s295 + $0x10] sm:$0xff]
    %v299 = vld [vmem:[%s295 + $0x18] sm:$0xff]
    %v300 = vld [vmem:[%s295 + $0x20] sm:$0xff]
    %v301 = vld [vmem:[%s295 + $0x28] sm:$0xff]
    %v302 = vld [vmem:[%s295 + $0x30] sm:$0xff]
    %v303 = vld [vmem:[%s295 + $0x38] sm:$0xff]
    %v304 = vld [vmem:[%s295 + $0x40] sm:$0xff]
    %v305 = vld [vmem:[%s295 + $0x48] sm:$0xff]
    %v306 = vld [vmem:[%s295 + $0x50] sm:$0xff]
    %v307 = vld [vmem:[%s295 + $0x58] sm:$0xff]
    %v308 = vld [vmem:[%s295 + $0x60] sm:$0xff]
    %v309 = vld [vmem:[%s295 + $0x68] sm:$0xff]
    %v310 = vld [vmem:[%s295 + $0x70] sm:$0xff]
    %v311 = vld [vmem:[%s295 + $0x78] sm:$0xff]
    %v312 = vld [vmem:[%s295 + $0x80] sm:$0xff]
    %v313 = vld [vmem:[%s295 + $0x88] sm:$0xff]
    %v314 = vld [vmem:[%s295 + $0x90] sm:$0xff]
    %v315 = vld [vmem:[%s295 + $0x98] sm:$0xff]
    %vm316 = vcmask 1045504
    %v317 = vrot.slane %v64, 2
    %v318 = vrot.slane %v65, 2
    %v319 = vsel %vm316, %v317, %v318
    %v320 = vrot.slane %v66, 2
    %v321 = vsel %vm316, %v318, %v320
    %v322 = vsel %vm39, %v319, 0
    %v324 = vsel %vm39, %v321, 0
    %v326 = vsel %vm39, %v320, 0
    %328 = vmatprep.subr.mxu0 %v297
    %329 = vmatpush1.msra.mxu0 %v296
    %330 = vmatprep.subr.mxu0 %v299
    %331 = vmatpush1.msra.mxu0 %v298
    %332 = vmatprep.subr.mxu0 %v301
    %333 = vmatpush1.msra.mxu0 %v300
    %334 = vmatprep.subr.mxu0 %v303
    %335 = vmatpush1.msra.mxu0 %v302
    %336 = vmatprep.subr.mxu0 %v305
    %337 = vmatpush1.msra.mxu0 %v304
    %338 = vmatprep.subr.mxu0 %v307
    %339 = vmatpush1.msra.mxu0 %v306
    %340 = vmatprep.subr.mxu0 %v309
    %341 = vmatpush1.msra.mxu0 %v308
    %342 = vmatprep.subr.mxu0 %v311
    %343 = vmatpush1.msra.mxu0 %v310
    %344 = vmatprep.subr.mxu0 %v313
    %345 = vmatpush1.msra.mxu0 %v312
    %346 = vmatprep.subr.mxu0 %v315
    %347 = vmatpush1.msra.mxu0 %v314
    %348 = vmatprep.subr.mxu0 0.0
    %349 = vmatpush1.msra.mxu0 0.0
    %350 = vmatprep.subr.mxu0 0.0
    %351 = vmatpush1.msra.mxu0 0.0
    %352 = vmatprep.subr.mxu0 0.0
    %353 = vmatpush1.msra.mxu0 0.0
    %354 = vmatprep.subr.mxu0 0.0
    %355 = vmatpush1.msra.mxu0 0.0
    %356 = vmatprep.subr.mxu0 0.0
    %357 = vmatpush1.msra.mxu0 0.0
    %358 = vmatprep.subr.mxu0 0.0
    %359 = vmatpush1.msra.mxu0 0.0
    %360 = vmatprep.subr.mxu0 0.0
    %361 = vmatpush1.msra.mxu0 0.0
    %362 = vmatprep.subr.mxu0 0.0
    %363 = vmatpush1.msra.mxu0 0.0
    %364 = vmatprep.subr.mxu0 0.0
    %365 = vmatpush1.msra.mxu0 0.0
    %366 = vmatprep.subr.mxu0 0.0
    %367 = vmatpush1.msra.mxu0 0.0
    %368 = vmatprep.subr.mxu0 0.0
    %369 = vmatpush1.msra.mxu0 0.0
    %370 = vmatprep.subr.mxu0 0.0
    %371 = vmatpush1.msra.mxu0 0.0
    %372 = vmatprep.subr.mxu0 0.0
    %373 = vmatpush1.msra.mxu0 0.0
    %374 = vmatprep.subr.mxu0 0.0
    %375 = vmatpush1.msra.mxu0 0.0
    %376 = vmatprep.subr.mxu0 0.0
    %377 = vmatpush1.msra.mxu0 0.0
    %378 = vmatprep.subr.mxu0 0.0
    %379 = vmatpush1.msra.mxu0 0.0
    %380 = vmatprep.subr.mxu0 0.0
    %381 = vmatpush1.msra.mxu0 0.0
    %382 = vmatprep.subr.mxu0 0.0
    %383 = vmatpush1.msra.mxu0 0.0
    %384 = vmatprep.subr.mxu0 0.0
    %385 = vmatpush1.msra.mxu0 0.0
    %386 = vmatprep.subr.mxu0 0.0
    %387 = vmatpush1.msra.mxu0 0.0
    %388 = vmatprep.subr.mxu0 0.0
    %389 = vmatpush1.msra.mxu0 0.0
    %390 = vmatprep.subr.mxu0 0.0
    %391 = vmatpush1.msra.mxu0 0.0
    %392 = vmatprep.mubr.f32.mxu0 0.0
    %393 = vmatmul.mubr.f32.gmra.mrb[0].mxu0 %v322
    %v394 = vpop.f32.mrb[0].mxu0
    %v395 = vadd.f32 0.0, %v394
    %v396 = vpop.f32.mrb[0].mxu0
    %v397 = vadd.f32 0.0, %v396
    %398 = vmatprep.mubr.f32.mxu0 0.0
    %399 = vmatmul.mubr.f32.gmra.mrb[0].mxu0 %v324
    %v400 = vpop.f32.mrb[0].mxu0
    %v401 = vadd.f32 0.0, %v400
    %v402 = vpop.f32.mrb[0].mxu0
    %v403 = vadd.f32 0.0, %v402
    %404 = vmatprep.mubr.f32.mxu0 0.0
    %405 = vmatmul.mubr.f32.gmra.mrb[0].mxu0 %v326
    %v406 = vpop.f32.mrb[0].mxu0
    %v407 = vadd.f32 0.0, %v406
    %v408 = vpop.f32.mrb[0].mxu0
    %v409 = vadd.f32 0.0, %v408
    %410 = vdwg.mxu0
    %v411 = vadd.f32 %v279, %v395
    %v412 = vadd.f32 %v281, %v397
    %v413 = vadd.f32 %v285, %v401
    %v414 = vadd.f32 %v287, %v403
    %v415 = vadd.f32 %v291, %v407
    %v416 = vadd.f32 %v293, %v409
    %v417 = vld [vmem:[%s4] sm:$0x3]
    %v419 = vlaneseq
    %v420 = vshrl.u32 %v419, 7
    %v421 = vsub.s32 0, %v420
    %v422 = vrot.slane %v417, %v421
    %v423 = vlaneseq
    %v424 = vshrl.u32 %v423, 7
    %v425 = vsub.s32 1, %v424
    %v426 = vrot.slane %v417, %v425
    %v429 = vadd.f32 %v411, %v422
    %v430 = vadd.f32 %v412, %v426
    %v431 = vadd.f32 %v413, %v422
    %v432 = vadd.f32 %v414, %v426
    %v433 = vadd.f32 %v415, %v422
    %v434 = vadd.f32 %v416, %v426
    %435 = vst [vmem:[#allocation3] sm:$0xff] 0.0
    %436 = vst.msk [vmem:[#allocation3 + $0x8] sm:$0xff] %vm39, 0.0
    %437 = vst [vmem:[#allocation3 + $0x10] sm:$0xff] 0.0
    %438 = vst.msk [vmem:[#allocation3 + $0x18] sm:$0xff] %vm39, 0.0
    %439 = vst [vmem:[#allocation3 + $0x20] sm:$0x3f] 0.0
    %440 = vst.msk [vmem:[#allocation3 + $0x28] sm:$0x3f] %vm42, 0.0
    %vm447 = vcmask 1040384
    %v448 = vrot.slane %v429, 7
    %v449 = vrot.slane %v430, 7
    %v450 = vrot.slane %v431, 7
    %v451 = vsel %vm447, %v448, %v450
    %v452 = vrot.slane %v432, 7
    %v453 = vsel %vm447, %v449, %v452
    %v454 = vrot.slane %v433, 7
    %v455 = vsel %vm447, %v450, %v454
    %v456 = vrot.slane %v434, 7
    %v457 = vsel %vm447, %v452, %v456
    %458 = vrot.lane.b32.xlu0 %v448, 8
    %v459 = vpop.permute.xlu0 %458
    %460 = vrot.lane.b32.xlu0 %v449, 8
    %v461 = vpop.permute.xlu0 %460
    %462 = vrot.lane.b32.xlu0 %v451, 8
    %v463 = vpop.permute.xlu0 %462
    %464 = vrot.lane.b32.xlu0 %v453, 8
    %v465 = vpop.permute.xlu0 %464
    %466 = vrot.lane.b32.xlu0 %v455, 8
    %v467 = vpop.permute.xlu0 %466
    %468 = vrot.lane.b32.xlu0 %v457, 8
    %v469 = vpop.permute.xlu0 %468
    %vm470 = vcmask 64512
    %v471 = vsel %vm470, %v459, %v461
    %v472 = vsel %vm470, %v463, %v465
    %v473 = vsel %vm470, %v467, %v469
    %vm480 = vcmask 1047617
    %481 = vst.msk [vmem:[#allocation3] sm:$0xfe] %vm480, %v459
    %vm482 = vcmask 588801
    %483 = vst.msk [vmem:[#allocation3 + $0x8] sm:$0xfe] %vm482, %v471
    %vm484 = vcmask 1047616
    %485 = vst.msk [vmem:[#allocation3 + $0x10] sm:$0xff] %vm484, %v463
    %vm486 = vcmask 588800
    %487 = vst.msk [vmem:[#allocation3 + $0x18] sm:$0xff] %vm486, %v472
    %vm488 = vcmask 1044544
    %489 = vst.msk [vmem:[#allocation3 + $0x20] sm:$0x1f] %vm488, %v467
    %vm490 = vcmask 585728
    %491 = vst.msk [vmem:[#allocation3 + $0x28] sm:$0x1f] %vm490, %v473
    %v492 = vld [vmem:[#allocation3] sm:$0xff]
    %v493 = vld [vmem:[#allocation3 + $0x8] sm:$0xff]
    %v494 = vld [vmem:[#allocation3 + $0x10] sm:$0xff]
    %v495 = vld [vmem:[#allocation3 + $0x18] sm:$0xff]
    %v496 = vld [vmem:[#allocation3 + $0x20] sm:$0x3f]
    %v497 = vld [vmem:[#allocation3 + $0x28] sm:$0x3f]
    %v498 = vlaneseq
    %v499 = vshrl.u32 %v498, 7
    %v500 = vadd.s32 %v499, 8
    %v501 = vlaneseq
    %v502 = vand.u32 %v501, 127
    %v503 = vmul.u32 %v499, 2
    %v504 = vmul.u32 %v500, 2
    %vm505 = vcmp.eq.s32.totalorder %v502, %v503
    %vm506 = vcmp.eq.s32.totalorder %v502, %v504
    %v507 = vsel %vm505, 1, 0
    %v508 = vsel %vm506, 1, 0
    %v509 = vcvt.s32.f32 %v507
    %v510 = vcvt.s32.f32 %v508
    %vm511 = vcmask 179200
    %v513 = vsel %vm511, %v509, 0
    %v516 = vsel %vm511, %v510, 0
    %v519 = vsel %vm316, %v496, 0
    %v522 = vsel %vm316, %v497, 0
    %524 = vmatprep.subr.mxu0 %v493
    %525 = vmatpush1.msra.mxu0 %v492
    %526 = vmatprep.subr.mxu0 %v495
    %527 = vmatpush1.msra.mxu0 %v494
    %528 = vmatprep.subr.mxu0 %v522
    %529 = vmatpush1.msra.mxu0 %v519
    %530 = vmatprep.subr.mxu0 0.0
    %531 = vmatpush1.msra.mxu0 0.0
    %532 = vmatprep.subr.mxu0 0.0
    %533 = vmatpush1.msra.mxu0 0.0
    %534 = vmatprep.subr.mxu0 0.0
    %535 = vmatpush1.msra.mxu0 0.0
    %536 = vmatprep.subr.mxu0 0.0
    %537 = vmatpush1.msra.mxu0 0.0
    %538 = vmatprep.subr.mxu0 0.0
    %539 = vmatpush1.msra.mxu0 0.0
    %540 = vmatprep.subr.mxu0 0.0
    %541 = vmatpush1.msra.mxu0 0.0
    %542 = vmatprep.subr.mxu0 0.0
    %543 = vmatpush1.msra.mxu0 0.0
    %544 = vmatprep.subr.mxu0 0.0
    %545 = vmatpush1.msra.mxu0 0.0
    %546 = vmatprep.subr.mxu0 0.0
    %547 = vmatpush1.msra.mxu0 0.0
    %548 = vmatprep.subr.mxu0 0.0
    %549 = vmatpush1.msra.mxu0 0.0
    %550 = vmatprep.subr.mxu0 0.0
    %551 = vmatpush1.msra.mxu0 0.0
    %552 = vmatprep.subr.mxu0 0.0
    %553 = vmatpush1.msra.mxu0 0.0
    %554 = vmatprep.subr.mxu0 0.0
    %555 = vmatpush1.msra.mxu0 0.0
    %556 = vmatprep.subr.mxu0 0.0
    %557 = vmatpush1.msra.mxu0 0.0
    %558 = vmatprep.subr.mxu0 0.0
    %559 = vmatpush1.msra.mxu0 0.0
    %560 = vmatprep.subr.mxu0 0.0
    %561 = vmatpush1.msra.mxu0 0.0
    %562 = vmatprep.subr.mxu0 0.0
    %563 = vmatpush1.msra.mxu0 0.0
    %564 = vmatprep.subr.mxu0 0.0
    %565 = vmatpush1.msra.mxu0 0.0
    %566 = vmatprep.subr.mxu0 0.0
    %567 = vmatpush1.msra.mxu0 0.0
    %568 = vmatprep.subr.mxu0 0.0
    %569 = vmatpush1.msra.mxu0 0.0
    %570 = vmatprep.subr.mxu0 0.0
    %571 = vmatpush1.msra.mxu0 0.0
    %572 = vmatprep.subr.mxu0 0.0
    %573 = vmatpush1.msra.mxu0 0.0
    %574 = vmatprep.subr.mxu0 0.0
    %575 = vmatpush1.msra.mxu0 0.0
    %576 = vmatprep.subr.mxu0 0.0
    %577 = vmatpush1.msra.mxu0 0.0
    %578 = vmatprep.subr.mxu0 0.0
    %579 = vmatpush1.msra.mxu0 0.0
    %580 = vmatprep.subr.mxu0 0.0
    %581 = vmatpush1.msra.mxu0 0.0
    %582 = vmatprep.subr.mxu0 0.0
    %583 = vmatpush1.msra.mxu0 0.0
    %584 = vmatprep.subr.mxu0 0.0
    %585 = vmatpush1.msra.mxu0 0.0
    %586 = vmatprep.subr.mxu0 0.0
    %587 = vmatpush1.msra.mxu0 0.0
    %588 = vmatprep.mubr.f32.mxu0 0.0
    %589 = vmatmul.mubr.f32.gmra.mrb[0].mxu0 %v513
    %v590 = vpop.f32.mrb[0].mxu0
    %v591 = vadd.f32 0.0, %v590
    %v592 = vpop.f32.mrb[0].mxu0
    %v593 = vadd.f32 0.0, %v592
    %594 = vmatprep.mubr.f32.mxu0 0.0
    %595 = vmatmul.mubr.f32.gmra.mrb[0].mxu0 %v516
    %v596 = vpop.f32.mrb[0].mxu0
    %v597 = vadd.f32 0.0, %v596
    %v598 = vpop.f32.mrb[0].mxu0
    %v599 = vadd.f32 0.0, %v598
    %600 = vdwg.mxu0
    %v601 = vld [vmem:[%s2] sm:$0xff]
    %v602 = vld [vmem:[%s2 + $0x8] sm:$0xff]
    %v603 = vld [vmem:[%s2 + $0x10] sm:$0xff]
    %v604 = vld [vmem:[%s2 + $0x18] sm:$0xff]
    %v605 = vld [vmem:[%s2 + $0x20] sm:$0xff]
    %v606 = vld [vmem:[%s2 + $0x28] sm:$0xff]
    %v607 = vld [vmem:[%s2 + $0x30] sm:$0xff]
    %v608 = vld [vmem:[%s2 + $0x38] sm:$0xff]
    %v609 = vld [vmem:[%s2 + $0x40] sm:$0xff]
    %v610 = vld [vmem:[%s2 + $0x48] sm:$0xff]
    %v611 = vld [vmem:[%s2 + $0x50] sm:$0xff]
    %v612 = vld [vmem:[%s2 + $0x58] sm:$0xff]
    %v613 = vld [vmem:[%s2 + $0x60] sm:$0xff]
    %v614 = vld [vmem:[%s2 + $0x68] sm:$0xff]
    %v615 = vld [vmem:[%s2 + $0x70] sm:$0xff]
    %v616 = vld [vmem:[%s2 + $0x78] sm:$0xff]
    %v617 = vld [vmem:[%s2 + $0x80] sm:$0xff]
    %v618 = vld [vmem:[%s2 + $0x88] sm:$0xff]
    %v619 = vld [vmem:[%s2 + $0x90] sm:$0xff]
    %v620 = vld [vmem:[%s2 + $0x98] sm:$0xff]
    %v621 = vld [vmem:[%s2 + $0xa0] sm:$0xff]
    %v622 = vld [vmem:[%s2 + $0xa8] sm:$0xff]
    %v623 = vld [vmem:[%s2 + $0xb0] sm:$0xff]
    %v624 = vld [vmem:[%s2 + $0xb8] sm:$0xff]
    %v625 = vld [vmem:[%s2 + $0xc0] sm:$0xff]
    %v626 = vld [vmem:[%s2 + $0xc8] sm:$0xff]
    %v627 = vld [vmem:[%s2 + $0xd0] sm:$0xff]
    %v628 = vld [vmem:[%s2 + $0xd8] sm:$0xff]
    %v629 = vld [vmem:[%s2 + $0xe0] sm:$0xff]
    %v630 = vld [vmem:[%s2 + $0xe8] sm:$0xff]
    %v631 = vld [vmem:[%s2 + $0xf0] sm:$0xff]
    %v632 = vld [vmem:[%s2 + $0xf8] sm:$0xff]
    %v633 = vld [vmem:[%s2 + $0x100] sm:$0xff]
    %v634 = vld [vmem:[%s2 + $0x108] sm:$0xff]
    %v635 = vld [vmem:[%s2 + $0x110] sm:$0xff]
    %v636 = vld [vmem:[%s2 + $0x118] sm:$0xff]
    %v637 = vld [vmem:[%s2 + $0x120] sm:$0xff]
    %v638 = vld [vmem:[%s2 + $0x128] sm:$0xff]
    %v639 = vld [vmem:[%s2 + $0x130] sm:$0xff]
    %v640 = vld [vmem:[%s2 + $0x138] sm:$0xff]
    %v641 = vld [vmem:[%s2 + $0x140] sm:$0xff]
    %v642 = vld [vmem:[%s2 + $0x148] sm:$0xff]
    %v643 = vld [vmem:[%s2 + $0x150] sm:$0xff]
    %v644 = vld [vmem:[%s2 + $0x158] sm:$0xff]
    %v645 = vld [vmem:[%s2 + $0x160] sm:$0xff]
    %v646 = vld [vmem:[%s2 + $0x168] sm:$0xff]
    %v647 = vld [vmem:[%s2 + $0x170] sm:$0xff]
    %v648 = vld [vmem:[%s2 + $0x178] sm:$0xff]
    %v649 = vld [vmem:[%s2 + $0x180] sm:$0xff]
    %v650 = vld [vmem:[%s2 + $0x188] sm:$0xff]
    %v651 = vld [vmem:[%s2 + $0x190] sm:$0xff]
    %v652 = vld [vmem:[%s2 + $0x198] sm:$0xff]
    %v653 = vadd.s32 %v503, 1
    %v654 = vadd.s32 %v504, 1
    %vm655 = vcmp.eq.s32.totalorder %v502, %v653
    %vm656 = vcmp.eq.s32.totalorder %v502, %v654
    %v657 = vsel %vm655, 1, 0
    %v658 = vsel %vm656, 1, 0
    %v659 = vcvt.s32.f32 %v657
    %v660 = vcvt.s32.f32 %v658
    %v662 = vsel %vm511, %v659, 0
    %v665 = vsel %vm511, %v660, 0
    %667 = vmatprep.subr.mxu0 %v493
    %668 = vmatpush1.msra.mxu0 %v492
    %669 = vmatprep.subr.mxu0 %v495
    %670 = vmatpush1.msra.mxu0 %v494
    %671 = vmatprep.subr.mxu0 %v522
    %672 = vmatpush1.msra.mxu0 %v519
    %673 = vmatprep.subr.mxu0 0.0
    %674 = vmatpush1.msra.mxu0 0.0
    %675 = vmatprep.subr.mxu0 0.0
    %676 = vmatpush1.msra.mxu0 0.0
    %677 = vmatprep.subr.mxu0 0.0
    %678 = vmatpush1.msra.mxu0 0.0
    %679 = vmatprep.subr.mxu0 0.0
    %680 = vmatpush1.msra.mxu0 0.0
    %681 = vmatprep.subr.mxu0 0.0
    %682 = vmatpush1.msra.mxu0 0.0
    %683 = vmatprep.subr.mxu0 0.0
    %684 = vmatpush1.msra.mxu0 0.0
    %685 = vmatprep.subr.mxu0 0.0
    %686 = vmatpush1.msra.mxu0 0.0
    %687 = vmatprep.subr.mxu0 0.0
    %688 = vmatpush1.msra.mxu0 0.0
    %689 = vmatprep.subr.mxu0 0.0
    %690 = vmatpush1.msra.mxu0 0.0
    %691 = vmatprep.subr.mxu0 0.0
    %692 = vmatpush1.msra.mxu0 0.0
    %693 = vmatprep.subr.mxu0 0.0
    %694 = vmatpush1.msra.mxu0 0.0
    %695 = vmatprep.subr.mxu0 0.0
    %696 = vmatpush1.msra.mxu0 0.0
    %697 = vmatprep.subr.mxu0 0.0
    %698 = vmatpush1.msra.mxu0 0.0
    %699 = vmatprep.subr.mxu0 0.0
    %700 = vmatpush1.msra.mxu0 0.0
    %701 = vmatprep.subr.mxu0 0.0
    %702 = vmatpush1.msra.mxu0 0.0
    %703 = vmatprep.subr.mxu0 0.0
    %704 = vmatpush1.msra.mxu0 0.0
    %705 = vmatprep.subr.mxu0 0.0
    %706 = vmatpush1.msra.mxu0 0.0
    %707 = vmatprep.subr.mxu0 0.0
    %708 = vmatpush1.msra.mxu0 0.0
    %709 = vmatprep.subr.mxu0 0.0
    %710 = vmatpush1.msra.mxu0 0.0
    %711 = vmatprep.subr.mxu0 0.0
    %712 = vmatpush1.msra.mxu0 0.0
    %713 = vmatprep.subr.mxu0 0.0
    %714 = vmatpush1.msra.mxu0 0.0
    %715 = vmatprep.subr.mxu0 0.0
    %716 = vmatpush1.msra.mxu0 0.0
    %717 = vmatprep.subr.mxu0 0.0
    %718 = vmatpush1.msra.mxu0 0.0
    %719 = vmatprep.subr.mxu0 0.0
    %720 = vmatpush1.msra.mxu0 0.0
    %721 = vmatprep.subr.mxu0 0.0
    %722 = vmatpush1.msra.mxu0 0.0
    %723 = vmatprep.subr.mxu0 0.0
    %724 = vmatpush1.msra.mxu0 0.0
    %725 = vmatprep.subr.mxu0 0.0
    %726 = vmatpush1.msra.mxu0 0.0
    %727 = vmatprep.subr.mxu0 0.0
    %728 = vmatpush1.msra.mxu0 0.0
    %729 = vmatprep.subr.mxu0 0.0
    %730 = vmatpush1.msra.mxu0 0.0
    %731 = vmatprep.mubr.f32.mxu0 0.0
    %732 = vmatmul.mubr.f32.gmra.mrb[0].mxu0 %v662
    %v733 = vpop.f32.mrb[0].mxu0
    %v734 = vadd.f32 0.0, %v733
    %v735 = vpop.f32.mrb[0].mxu0
    %v736 = vadd.f32 0.0, %v735
    %737 = vmatprep.mubr.f32.mxu0 0.0
    %738 = vmatmul.mubr.f32.gmra.mrb[0].mxu0 %v665
    %v739 = vpop.f32.mrb[0].mxu0
    %v740 = vadd.f32 0.0, %v739
    %v741 = vpop.f32.mrb[0].mxu0
    %v742 = vadd.f32 0.0, %v741
    %743 = vdwg.mxu0
    %s744 = scalar_lea.vmem %s2, 416
    %v745 = vld [vmem:[%s744] sm:$0xff]
    %v746 = vld [vmem:[%s744 + $0x8] sm:$0xff]
    %v747 = vld [vmem:[%s744 + $0x10] sm:$0xff]
    %v748 = vld [vmem:[%s744 + $0x18] sm:$0xff]
    %v749 = vld [vmem:[%s744 + $0x20] sm:$0xff]
    %v750 = vld [vmem:[%s744 + $0x28] sm:$0xff]
    %v751 = vld [vmem:[%s744 + $0x30] sm:$0xff]
    %v752 = vld [vmem:[%s744 + $0x38] sm:$0xff]
    %v753 = vld [vmem:[%s744 + $0x40] sm:$0xff]
    %v754 = vld [vmem:[%s744 + $0x48] sm:$0xff]
    %v755 = vld [vmem:[%s744 + $0x50] sm:$0xff]
    %v756 = vld [vmem:[%s744 + $0x58] sm:$0xff]
    %v757 = vld [vmem:[%s744 + $0x60] sm:$0xff]
    %v758 = vld [vmem:[%s744 + $0x68] sm:$0xff]
    %v759 = vld [vmem:[%s744 + $0x70] sm:$0xff]
    %v760 = vld [vmem:[%s744 + $0x78] sm:$0xff]
    %v761 = vld [vmem:[%s744 + $0x80] sm:$0xff]
    %v762 = vld [vmem:[%s744 + $0x88] sm:$0xff]
    %v763 = vld [vmem:[%s744 + $0x90] sm:$0xff]
    %v764 = vld [vmem:[%s744 + $0x98] sm:$0xff]
    %v765 = vld [vmem:[%s744 + $0xa0] sm:$0xff]
    %v766 = vld [vmem:[%s744 + $0xa8] sm:$0xff]
    %v767 = vld [vmem:[%s744 + $0xb0] sm:$0xff]
    %v768 = vld [vmem:[%s744 + $0xb8] sm:$0xff]
    %v769 = vld [vmem:[%s744 + $0xc0] sm:$0xff]
    %v770 = vld [vmem:[%s744 + $0xc8] sm:$0xff]
    %v771 = vld [vmem:[%s744 + $0xd0] sm:$0xff]
    %v772 = vld [vmem:[%s744 + $0xd8] sm:$0xff]
    %v773 = vld [vmem:[%s744 + $0xe0] sm:$0xff]
    %v774 = vld [vmem:[%s744 + $0xe8] sm:$0xff]
    %v775 = vld [vmem:[%s744 + $0xf0] sm:$0xff]
    %v776 = vld [vmem:[%s744 + $0xf8] sm:$0xff]
    %v777 = vld [vmem:[%s744 + $0x100] sm:$0xff]
    %v778 = vld [vmem:[%s744 + $0x108] sm:$0xff]
    %v779 = vld [vmem:[%s744 + $0x110] sm:$0xff]
    %v780 = vld [vmem:[%s744 + $0x118] sm:$0xff]
    %v781 = vld [vmem:[%s744 + $0x120] sm:$0xff]
    %v782 = vld [vmem:[%s744 + $0x128] sm:$0xff]
    %v783 = vld [vmem:[%s744 + $0x130] sm:$0xff]
    %v784 = vld [vmem:[%s744 + $0x138] sm:$0xff]
    %v785 = vld [vmem:[%s744 + $0x140] sm:$0xff]
    %v786 = vld [vmem:[%s744 + $0x148] sm:$0xff]
    %v787 = vld [vmem:[%s744 + $0x150] sm:$0xff]
    %v788 = vld [vmem:[%s744 + $0x158] sm:$0xff]
    %v789 = vld [vmem:[%s744 + $0x160] sm:$0xff]
    %v790 = vld [vmem:[%s744 + $0x168] sm:$0xff]
    %v791 = vld [vmem:[%s744 + $0x170] sm:$0xff]
    %v792 = vld [vmem:[%s744 + $0x178] sm:$0xff]
    %v793 = vld [vmem:[%s744 + $0x180] sm:$0xff]
    %v794 = vld [vmem:[%s744 + $0x188] sm:$0xff]
    %v795 = vld [vmem:[%s744 + $0x190] sm:$0xff]
    %v796 = vld [vmem:[%s744 + $0x198] sm:$0xff]
    %v798 = vsel %vm39, %v736, 0
    %v801 = vsel %vm39, %v742, 0
    %803 = vmatprep.subr.mxu0 %v746
    %804 = vmatpush1.msra.mxu0 %v745
    %805 = vmatprep.subr.mxu0 %v748
    %806 = vmatpush1.msra.mxu0 %v747
    %807 = vmatprep.subr.mxu0 %v750
    %808 = vmatpush1.msra.mxu0 %v749
    %809 = vmatprep.subr.mxu0 %v752
    %810 = vmatpush1.msra.mxu0 %v751
    %811 = vmatprep.subr.mxu0 %v754
    %812 = vmatpush1.msra.mxu0 %v753
    %813 = vmatprep.subr.mxu0 %v756
    %814 = vmatpush1.msra.mxu0 %v755
    %815 = vmatprep.subr.mxu0 %v758
    %816 = vmatpush1.msra.mxu0 %v757
    %817 = vmatprep.subr.mxu0 %v760
    %818 = vmatpush1.msra.mxu0 %v759
    %819 = vmatprep.subr.mxu0 %v762
    %820 = vmatpush1.msra.mxu0 %v761
    %821 = vmatprep.subr.mxu0 %v764
    %822 = vmatpush1.msra.mxu0 %v763
    %823 = vmatprep.subr.mxu0 %v766
    %824 = vmatpush1.msra.mxu0 %v765
    %825 = vmatprep.subr.mxu0 %v768
    %826 = vmatpush1.msra.mxu0 %v767
    %827 = vmatprep.subr.mxu0 %v770
    %828 = vmatpush1.msra.mxu0 %v769
    %829 = vmatprep.subr.mxu0 %v772
    %830 = vmatpush1.msra.mxu0 %v771
    %831 = vmatprep.subr.mxu0 %v774
    %832 = vmatpush1.msra.mxu0 %v773
    %833 = vmatprep.subr.mxu0 %v776
    %834 = vmatpush1.msra.mxu0 %v775
    %835 = vmatprep.subr.mxu0 %v778
    %836 = vmatpush1.msra.mxu0 %v777
    %837 = vmatprep.subr.mxu0 %v780
    %838 = vmatpush1.msra.mxu0 %v779
    %839 = vmatprep.subr.mxu0 %v782
    %840 = vmatpush1.msra.mxu0 %v781
    %841 = vmatprep.subr.mxu0 %v784
    %842 = vmatpush1.msra.mxu0 %v783
    %843 = vmatprep.subr.mxu0 %v786
    %844 = vmatpush1.msra.mxu0 %v785
    %845 = vmatprep.subr.mxu0 %v788
    %846 = vmatpush1.msra.mxu0 %v787
    %847 = vmatprep.subr.mxu0 %v790
    %848 = vmatpush1.msra.mxu0 %v789
    %849 = vmatprep.subr.mxu0 %v792
    %850 = vmatpush1.msra.mxu0 %v791
    %851 = vmatprep.subr.mxu0 %v794
    %852 = vmatpush1.msra.mxu0 %v793
    %853 = vmatprep.subr.mxu0 %v796
    %854 = vmatpush1.msra.mxu0 %v795
    %855 = vmatprep.subr.mxu0 0.0
    %856 = vmatpush1.msra.mxu0 0.0
    %857 = vmatprep.subr.mxu0 0.0
    %858 = vmatpush1.msra.mxu0 0.0
    %859 = vmatprep.subr.mxu0 0.0
    %860 = vmatpush1.msra.mxu0 0.0
    %861 = vmatprep.subr.mxu0 0.0
    %862 = vmatpush1.msra.mxu0 0.0
    %863 = vmatprep.subr.mxu0 0.0
    %864 = vmatpush1.msra.mxu0 0.0
    %865 = vmatprep.subr.mxu0 0.0
    %866 = vmatpush1.msra.mxu0 0.0
    %867 = vmatprep.mubr.f32.mxu0 %v798
    %868 = vmatmul.mubr.f32.gmra.mrb[0].mxu0 %v734
    %v869 = vpop.f32.mrb[0].mxu0
    %v870 = vadd.f32 0.0, %v869
    %v871 = vpop.f32.mrb[0].mxu0
    %v872 = vadd.f32 0.0, %v871
    %873 = vmatprep.mubr.f32.mxu0 %v801
    %874 = vmatmul.mubr.f32.gmra.mrb[0].mxu0 %v740
    %v875 = vpop.f32.mrb[0].mxu0
    %v876 = vadd.f32 0.0, %v875
    %v877 = vpop.f32.mrb[0].mxu0
    %v878 = vadd.f32 0.0, %v877
    %879 = vdwg.mxu0
    %v881 = vsel %vm39, %v593, 0
    %v884 = vsel %vm39, %v599, 0
    %886 = vmatprep.subr.mxu0 %v602
    %887 = vmatpush1.msra.mxu0 %v601
    %888 = vmatprep.subr.mxu0 %v604
    %889 = vmatpush1.msra.mxu0 %v603
    %890 = vmatprep.subr.mxu0 %v606
    %891 = vmatpush1.msra.mxu0 %v605
    %892 = vmatprep.subr.mxu0 %v608
    %893 = vmatpush1.msra.mxu0 %v607
    %894 = vmatprep.subr.mxu0 %v610
    %895 = vmatpush1.msra.mxu0 %v609
    %896 = vmatprep.subr.mxu0 %v612
    %897 = vmatpush1.msra.mxu0 %v611
    %898 = vmatprep.subr.mxu0 %v614
    %899 = vmatpush1.msra.mxu0 %v613
    %900 = vmatprep.subr.mxu0 %v616
    %901 = vmatpush1.msra.mxu0 %v615
    %902 = vmatprep.subr.mxu0 %v618
    %903 = vmatpush1.msra.mxu0 %v617
    %904 = vmatprep.subr.mxu0 %v620
    %905 = vmatpush1.msra.mxu0 %v619
    %906 = vmatprep.subr.mxu0 %v622
    %907 = vmatpush1.msra.mxu0 %v621
    %908 = vmatprep.subr.mxu0 %v624
    %909 = vmatpush1.msra.mxu0 %v623
    %910 = vmatprep.subr.mxu0 %v626
    %911 = vmatpush1.msra.mxu0 %v625
    %912 = vmatprep.subr.mxu0 %v628
    %913 = vmatpush1.msra.mxu0 %v627
    %914 = vmatprep.subr.mxu0 %v630
    %915 = vmatpush1.msra.mxu0 %v629
    %916 = vmatprep.subr.mxu0 %v632
    %917 = vmatpush1.msra.mxu0 %v631
    %918 = vmatprep.subr.mxu0 %v634
    %919 = vmatpush1.msra.mxu0 %v633
    %920 = vmatprep.subr.mxu0 %v636
    %921 = vmatpush1.msra.mxu0 %v635
    %922 = vmatprep.subr.mxu0 %v638
    %923 = vmatpush1.msra.mxu0 %v637
    %924 = vmatprep.subr.mxu0 %v640
    %925 = vmatpush1.msra.mxu0 %v639
    %926 = vmatprep.subr.mxu0 %v642
    %927 = vmatpush1.msra.mxu0 %v641
    %928 = vmatprep.subr.mxu0 %v644
    %929 = vmatpush1.msra.mxu0 %v643
    %930 = vmatprep.subr.mxu0 %v646
    %931 = vmatpush1.msra.mxu0 %v645
    %932 = vmatprep.subr.mxu0 %v648
    %933 = vmatpush1.msra.mxu0 %v647
    %934 = vmatprep.subr.mxu0 %v650
    %935 = vmatpush1.msra.mxu0 %v649
    %936 = vmatprep.subr.mxu0 %v652
    %937 = vmatpush1.msra.mxu0 %v651
    %938 = vmatprep.subr.mxu0 0.0
    %939 = vmatpush1.msra.mxu0 0.0
    %940 = vmatprep.subr.mxu0 0.0
    %941 = vmatpush1.msra.mxu0 0.0
    %942 = vmatprep.subr.mxu0 0.0
    %943 = vmatpush1.msra.mxu0 0.0
    %944 = vmatprep.subr.mxu0 0.0
    %945 = vmatpush1.msra.mxu0 0.0
    %946 = vmatprep.subr.mxu0 0.0
    %947 = vmatpush1.msra.mxu0 0.0
    %948 = vmatprep.subr.mxu0 0.0
    %949 = vmatpush1.msra.mxu0 0.0
    %950 = vmatprep.mubr.f32.mxu0 %v881
    %951 = vmatmul.mubr.f32.gmra.mrb[0].mxu0 %v591
    %v952 = vpop.f32.mrb[0].mxu0
    %v953 = vadd.f32 %v870, %v952
    %v954 = vpop.f32.mrb[0].mxu0
    %v955 = vadd.f32 %v872, %v954
    %956 = vmatprep.mubr.f32.mxu0 %v884
    %957 = vmatmul.mubr.f32.gmra.mrb[0].mxu0 %v597
    %v958 = vpop.f32.mrb[0].mxu0
    %v959 = vadd.f32 %v876, %v958
    %v960 = vpop.f32.mrb[0].mxu0
    %v961 = vadd.f32 %v878, %v960
    %962 = vdwg.mxu0
    %v963 = vadd.s32 %v503, 2
    %v964 = vadd.s32 %v504, 2
    %vm965 = vcmp.eq.s32.totalorder %v502, %v963
    %vm966 = vcmp.eq.s32.totalorder %v502, %v964
    %v967 = vsel %vm965, 1, 0
    %v968 = vsel %vm966, 1, 0
    %v969 = vcvt.s32.f32 %v967
    %v970 = vcvt.s32.f32 %v968
    %v972 = vsel %vm511, %v969, 0
    %v975 = vsel %vm511, %v970, 0
    %977 = vmatprep.subr.mxu0 %v493
    %978 = vmatpush1.msra.mxu0 %v492
    %979 = vmatprep.subr.mxu0 %v495
    %980 = vmatpush1.msra.mxu0 %v494
    %981 = vmatprep.subr.mxu0 %v522
    %982 = vmatpush1.msra.mxu0 %v519
    %983 = vmatprep.subr.mxu0 0.0
    %984 = vmatpush1.msra.mxu0 0.0
    %985 = vmatprep.subr.mxu0 0.0
    %986 = vmatpush1.msra.mxu0 0.0
    %987 = vmatprep.subr.mxu0 0.0
    %988 = vmatpush1.msra.mxu0 0.0
    %989 = vmatprep.subr.mxu0 0.0
    %990 = vmatpush1.msra.mxu0 0.0
    %991 = vmatprep.subr.mxu0 0.0
    %992 = vmatpush1.msra.mxu0 0.0
    %993 = vmatprep.subr.mxu0 0.0
    %994 = vmatpush1.msra.mxu0 0.0
    %995 = vmatprep.subr.mxu0 0.0
    %996 = vmatpush1.msra.mxu0 0.0
    %997 = vmatprep.subr.mxu0 0.0
    %998 = vmatpush1.msra.mxu0 0.0
    %999 = vmatprep.subr.mxu0 0.0
    %1000 = vmatpush1.msra.mxu0 0.0
    %1001 = vmatprep.subr.mxu0 0.0
    %1002 = vmatpush1.msra.mxu0 0.0
    %1003 = vmatprep.subr.mxu0 0.0
    %1004 = vmatpush1.msra.mxu0 0.0
    %1005 = vmatprep.subr.mxu0 0.0
    %1006 = vmatpush1.msra.mxu0 0.0
    %1007 = vmatprep.subr.mxu0 0.0
    %1008 = vmatpush1.msra.mxu0 0.0
    %1009 = vmatprep.subr.mxu0 0.0
    %1010 = vmatpush1.msra.mxu0 0.0
    %1011 = vmatprep.subr.mxu0 0.0
    %1012 = vmatpush1.msra.mxu0 0.0
    %1013 = vmatprep.subr.mxu0 0.0
    %1014 = vmatpush1.msra.mxu0 0.0
    %1015 = vmatprep.subr.mxu0 0.0
    %1016 = vmatpush1.msra.mxu0 0.0
    %1017 = vmatprep.subr.mxu0 0.0
    %1018 = vmatpush1.msra.mxu0 0.0
    %1019 = vmatprep.subr.mxu0 0.0
    %1020 = vmatpush1.msra.mxu0 0.0
    %1021 = vmatprep.subr.mxu0 0.0
    %1022 = vmatpush1.msra.mxu0 0.0
    %1023 = vmatprep.subr.mxu0 0.0
    %1024 = vmatpush1.msra.mxu0 0.0
    %1025 = vmatprep.subr.mxu0 0.0
    %1026 = vmatpush1.msra.mxu0 0.0
    %1027 = vmatprep.subr.mxu0 0.0
    %1028 = vmatpush1.msra.mxu0 0.0
    %1029 = vmatprep.subr.mxu0 0.0
    %1030 = vmatpush1.msra.mxu0 0.0
    %1031 = vmatprep.subr.mxu0 0.0
    %1032 = vmatpush1.msra.mxu0 0.0
    %1033 = vmatprep.subr.mxu0 0.0
    %1034 = vmatpush1.msra.mxu0 0.0
    %1035 = vmatprep.subr.mxu0 0.0
    %1036 = vmatpush1.msra.mxu0 0.0
    %1037 = vmatprep.subr.mxu0 0.0
    %1038 = vmatpush1.msra.mxu0 0.0
    %1039 = vmatprep.subr.mxu0 0.0
    %1040 = vmatpush1.msra.mxu0 0.0
    %1041 = vmatprep.mubr.f32.mxu0 0.0
    %1042 = vmatmul.mubr.f32.gmra.mrb[0].mxu0 %v972
    %v1043 = vpop.f32.mrb[0].mxu0
    %v1044 = vadd.f32 0.0, %v1043
    %v1045 = vpop.f32.mrb[0].mxu0
    %v1046 = vadd.f32 0.0, %v1045
    %1047 = vmatprep.mubr.f32.mxu0 0.0
    %1048 = vmatmul.mubr.f32.gmra.mrb[0].mxu0 %v975
    %v1049 = vpop.f32.mrb[0].mxu0
    %v1050 = vadd.f32 0.0, %v1049
    %v1051 = vpop.f32.mrb[0].mxu0
    %v1052 = vadd.f32 0.0, %v1051
    %1053 = vdwg.mxu0
    %s1054 = scalar_lea.vmem %s2, 832
    %v1055 = vld [vmem:[%s1054] sm:$0xff]
    %v1056 = vld [vmem:[%s1054 + $0x8] sm:$0xff]
    %v1057 = vld [vmem:[%s1054 + $0x10] sm:$0xff]
    %v1058 = vld [vmem:[%s1054 + $0x18] sm:$0xff]
    %v1059 = vld [vmem:[%s1054 + $0x20] sm:$0xff]
    %v1060 = vld [vmem:[%s1054 + $0x28] sm:$0xff]
    %v1061 = vld [vmem:[%s1054 + $0x30] sm:$0xff]
    %v1062 = vld [vmem:[%s1054 + $0x38] sm:$0xff]
    %v1063 = vld [vmem:[%s1054 + $0x40] sm:$0xff]
    %v1064 = vld [vmem:[%s1054 + $0x48] sm:$0xff]
    %v1065 = vld [vmem:[%s1054 + $0x50] sm:$0xff]
    %v1066 = vld [vmem:[%s1054 + $0x58] sm:$0xff]
    %v1067 = vld [vmem:[%s1054 + $0x60] sm:$0xff]
    %v1068 = vld [vmem:[%s1054 + $0x68] sm:$0xff]
    %v1069 = vld [vmem:[%s1054 + $0x70] sm:$0xff]
    %v1070 = vld [vmem:[%s1054 + $0x78] sm:$0xff]
    %v1071 = vld [vmem:[%s1054 + $0x80] sm:$0xff]
    %v1072 = vld [vmem:[%s1054 + $0x88] sm:$0xff]
    %v1073 = vld [vmem:[%s1054 + $0x90] sm:$0xff]
    %v1074 = vld [vmem:[%s1054 + $0x98] sm:$0xff]
    %v1075 = vld [vmem:[%s1054 + $0xa0] sm:$0xff]
    %v1076 = vld [vmem:[%s1054 + $0xa8] sm:$0xff]
    %v1077 = vld [vmem:[%s1054 + $0xb0] sm:$0xff]
    %v1078 = vld [vmem:[%s1054 + $0xb8] sm:$0xff]
    %v1079 = vld [vmem:[%s1054 + $0xc0] sm:$0xff]
    %v1080 = vld [vmem:[%s1054 + $0xc8] sm:$0xff]
    %v1081 = vld [vmem:[%s1054 + $0xd0] sm:$0xff]
    %v1082 = vld [vmem:[%s1054 + $0xd8] sm:$0xff]
    %v1083 = vld [vmem:[%s1054 + $0xe0] sm:$0xff]
    %v1084 = vld [vmem:[%s1054 + $0xe8] sm:$0xff]
    %v1085 = vld [vmem:[%s1054 + $0xf0] sm:$0xff]
    %v1086 = vld [vmem:[%s1054 + $0xf8] sm:$0xff]
    %v1087 = vld [vmem:[%s1054 + $0x100] sm:$0xff]
    %v1088 = vld [vmem:[%s1054 + $0x108] sm:$0xff]
    %v1089 = vld [vmem:[%s1054 + $0x110] sm:$0xff]
    %v1090 = vld [vmem:[%s1054 + $0x118] sm:$0xff]
    %v1091 = vld [vmem:[%s1054 + $0x120] sm:$0xff]
    %v1092 = vld [vmem:[%s1054 + $0x128] sm:$0xff]
    %v1093 = vld [vmem:[%s1054 + $0x130] sm:$0xff]
    %v1094 = vld [vmem:[%s1054 + $0x138] sm:$0xff]
    %v1095 = vld [vmem:[%s1054 + $0x140] sm:$0xff]
    %v1096 = vld [vmem:[%s1054 + $0x148] sm:$0xff]
    %v1097 = vld [vmem:[%s1054 + $0x150] sm:$0xff]
    %v1098 = vld [vmem:[%s1054 + $0x158] sm:$0xff]
    %v1099 = vld [vmem:[%s1054 + $0x160] sm:$0xff]
    %v1100 = vld [vmem:[%s1054 + $0x168] sm:$0xff]
    %v1101 = vld [vmem:[%s1054 + $0x170] sm:$0xff]
    %v1102 = vld [vmem:[%s1054 + $0x178] sm:$0xff]
    %v1103 = vld [vmem:[%s1054 + $0x180] sm:$0xff]
    %v1104 = vld [vmem:[%s1054 + $0x188] sm:$0xff]
    %v1105 = vld [vmem:[%s1054 + $0x190] sm:$0xff]
    %v1106 = vld [vmem:[%s1054 + $0x198] sm:$0xff]
    %v1108 = vsel %vm39, %v1046, 0
    %v1111 = vsel %vm39, %v1052, 0
    %1113 = vmatprep.subr.mxu0 %v1056
    %1114 = vmatpush1.msra.mxu0 %v1055
    %1115 = vmatprep.subr.mxu0 %v1058
    %1116 = vmatpush1.msra.mxu0 %v1057
    %1117 = vmatprep.subr.mxu0 %v1060
    %1118 = vmatpush1.msra.mxu0 %v1059
    %1119 = vmatprep.subr.mxu0 %v1062
    %1120 = vmatpush1.msra.mxu0 %v1061
    %1121 = vmatprep.subr.mxu0 %v1064
    %1122 = vmatpush1.msra.mxu0 %v1063
    %1123 = vmatprep.subr.mxu0 %v1066
    %1124 = vmatpush1.msra.mxu0 %v1065
    %1125 = vmatprep.subr.mxu0 %v1068
    %1126 = vmatpush1.msra.mxu0 %v1067
    %1127 = vmatprep.subr.mxu0 %v1070
    %1128 = vmatpush1.msra.mxu0 %v1069
    %1129 = vmatprep.subr.mxu0 %v1072
    %1130 = vmatpush1.msra.mxu0 %v1071
    %1131 = vmatprep.subr.mxu0 %v1074
    %1132 = vmatpush1.msra.mxu0 %v1073
    %1133 = vmatprep.subr.mxu0 %v1076
    %1134 = vmatpush1.msra.mxu0 %v1075
    %1135 = vmatprep.subr.mxu0 %v1078
    %1136 = vmatpush1.msra.mxu0 %v1077
    %1137 = vmatprep.subr.mxu0 %v1080
    %1138 = vmatpush1.msra.mxu0 %v1079
    %1139 = vmatprep.subr.mxu0 %v1082
    %1140 = vmatpush1.msra.mxu0 %v1081
    %1141 = vmatprep.subr.mxu0 %v1084
    %1142 = vmatpush1.msra.mxu0 %v1083
    %1143 = vmatprep.subr.mxu0 %v1086
    %1144 = vmatpush1.msra.mxu0 %v1085
    %1145 = vmatprep.subr.mxu0 %v1088
    %1146 = vmatpush1.msra.mxu0 %v1087
    %1147 = vmatprep.subr.mxu0 %v1090
    %1148 = vmatpush1.msra.mxu0 %v1089
    %1149 = vmatprep.subr.mxu0 %v1092
    %1150 = vmatpush1.msra.mxu0 %v1091
    %1151 = vmatprep.subr.mxu0 %v1094
    %1152 = vmatpush1.msra.mxu0 %v1093
    %1153 = vmatprep.subr.mxu0 %v1096
    %1154 = vmatpush1.msra.mxu0 %v1095
    %1155 = vmatprep.subr.mxu0 %v1098
    %1156 = vmatpush1.msra.mxu0 %v1097
    %1157 = vmatprep.subr.mxu0 %v1100
    %1158 = vmatpush1.msra.mxu0 %v1099
    %1159 = vmatprep.subr.mxu0 %v1102
    %1160 = vmatpush1.msra.mxu0 %v1101
    %1161 = vmatprep.subr.mxu0 %v1104
    %1162 = vmatpush1.msra.mxu0 %v1103
    %1163 = vmatprep.subr.mxu0 %v1106
    %1164 = vmatpush1.msra.mxu0 %v1105
    %1165 = vmatprep.subr.mxu0 0.0
    %1166 = vmatpush1.msra.mxu0 0.0
    %1167 = vmatprep.subr.mxu0 0.0
    %1168 = vmatpush1.msra.mxu0 0.0
    %1169 = vmatprep.subr.mxu0 0.0
    %1170 = vmatpush1.msra.mxu0 0.0
    %1171 = vmatprep.subr.mxu0 0.0
    %1172 = vmatpush1.msra.mxu0 0.0
    %1173 = vmatprep.subr.mxu0 0.0
    %1174 = vmatpush1.msra.mxu0 0.0
    %1175 = vmatprep.subr.mxu0 0.0
    %1176 = vmatpush1.msra.mxu0 0.0
    %1177 = vmatprep.mubr.f32.mxu0 %v1108
    %1178 = vmatmul.mubr.f32.gmra.mrb[0].mxu0 %v1044
    %v1179 = vpop.f32.mrb[0].mxu0
    %v1180 = vadd.f32 0.0, %v1179
    %v1181 = vpop.f32.mrb[0].mxu0
    %v1182 = vadd.f32 0.0, %v1181
    %1183 = vmatprep.mubr.f32.mxu0 %v1111
    %1184 = vmatmul.mubr.f32.gmra.mrb[0].mxu0 %v1050
    %v1185 = vpop.f32.mrb[0].mxu0
    %v1186 = vadd.f32 0.0, %v1185
    %v1187 = vpop.f32.mrb[0].mxu0
    %v1188 = vadd.f32 0.0, %v1187
    %1189 = vdwg.mxu0
    %v1190 = vadd.f32 %v953, %v1180
    %v1191 = vadd.f32 %v955, %v1182
    %v1192 = vadd.f32 %v959, %v1186
    %v1193 = vadd.f32 %v961, %v1188
    %v1194 = vld [vmem:[%s5] sm:$0x3]
    %v1196 = vlaneseq
    %v1197 = vshrl.u32 %v1196, 7
    %v1198 = vsub.s32 0, %v1197
    %v1199 = vrot.slane %v1194, %v1198
    %v1200 = vlaneseq
    %v1201 = vshrl.u32 %v1200, 7
    %v1202 = vsub.s32 1, %v1201
    %v1203 = vrot.slane %v1194, %v1202
    %v1206 = vadd.f32 %v1190, %v1199
    %v1207 = vadd.f32 %v1191, %v1203
    %v1208 = vadd.f32 %v1192, %v1199
    %v1209 = vadd.f32 %v1193, %v1203
    %1210 = vst [vmem:[#allocation4] sm:$0xff] 0.0
    %vm1211 = vcmask 785408
    %1212 = vst.msk [vmem:[#allocation4 + $0x8] sm:$0xff] %vm1211, 0.0
    %1213 = vst [vmem:[#allocation4 + $0x10] sm:$0xf] 0.0
    %vm1214 = vcmask 781312
    %1215 = vst.msk [vmem:[#allocation4 + $0x18] sm:$0xf] %vm1214, 0.0
    %v1220 = vrot.slane %v1206, 7
    %v1221 = vrot.slane %v1207, 7
    %v1222 = vrot.slane %v1208, 7
    %v1223 = vsel %vm447, %v1220, %v1222
    %v1224 = vrot.slane %v1209, 7
    %v1225 = vsel %vm447, %v1221, %v1224
    %1226 = vrot.lane.b32.xlu0 %v1220, 16
    %v1227 = vpop.permute.xlu0 %1226
    %1228 = vrot.lane.b32.xlu0 %v1221, 16
    %v1229 = vpop.permute.xlu0 %1228
    %1230 = vrot.lane.b32.xlu0 %v1223, 16
    %v1231 = vpop.permute.xlu0 %1230
    %1232 = vrot.lane.b32.xlu0 %v1225, 16
    %v1233 = vpop.permute.xlu0 %1232
    %vm1234 = vcmask 130048
    %v1235 = vsel %vm1234, %v1227, %v1229
    %v1236 = vsel %vm1234, %v1231, %v1233
    %vm1241 = vcmask 1047681
    %1242 = vst.msk [vmem:[#allocation4] sm:$0xfe] %vm1241, %v1227
    %vm1243 = vcmask 654337
    %1244 = vst.msk [vmem:[#allocation4 + $0x8] sm:$0xfe] %vm1243, %v1235
    %vm1245 = vcmask 1042560
    %1246 = vst.msk [vmem:[#allocation4 + $0x10] sm:$0x7] %vm1245, %v1231
    %vm1247 = vcmask 649216
    %1248 = vst.msk [vmem:[#allocation4 + $0x18] sm:$0x7] %vm1247, %v1236
    %v1249 = vld [vmem:[#allocation4] sm:$0xff]
    %v1250 = vld [vmem:[#allocation4 + $0x8] sm:$0xff]
    %v1251 = vld [vmem:[#allocation4 + $0x10] sm:$0xf]
    %v1252 = vld [vmem:[#allocation4 + $0x18] sm:$0xf]
    %vm1253 = vcmask 97280
    %v1254 = vsel %vm1253, %v509, 0
    %vm1256 = vcmask 1043456
    %v1258 = vsel %vm1256, %v1251, 0
    %v1261 = vsel %vm1256, %v1252, 0
    %1263 = vmatprep.subr.mxu0 %v1250
    %1264 = vmatpush1.msra.mxu0 %v1249
    %1265 = vmatprep.subr.mxu0 %v1261
    %1266 = vmatpush1.msra.mxu0 %v1258
    %1267 = vmatprep.subr.mxu0 0.0
    %1268 = vmatpush1.msra.mxu0 0.0
    %1269 = vmatprep.subr.mxu0 0.0
    %1270 = vmatpush1.msra.mxu0 0.0
    %1271 = vmatprep.subr.mxu0 0.0
    %1272 = vmatpush1.msra.mxu0 0.0
    %1273 = vmatprep.subr.mxu0 0.0
    %1274 = vmatpush1.msra.mxu0 0.0
    %1275 = vmatprep.subr.mxu0 0.0
    %1276 = vmatpush1.msra.mxu0 0.0
    %1277 = vmatprep.subr.mxu0 0.0
    %1278 = vmatpush1.msra.mxu0 0.0
    %1279 = vmatprep.subr.mxu0 0.0
    %1280 = vmatpush1.msra.mxu0 0.0
    %1281 = vmatprep.subr.mxu0 0.0
    %1282 = vmatpush1.msra.mxu0 0.0
    %1283 = vmatprep.subr.mxu0 0.0
    %1284 = vmatpush1.msra.mxu0 0.0
    %1285 = vmatprep.subr.mxu0 0.0
    %1286 = vmatpush1.msra.mxu0 0.0
    %1287 = vmatprep.subr.mxu0 0.0
    %1288 = vmatpush1.msra.mxu0 0.0
    %1289 = vmatprep.subr.mxu0 0.0
    %1290 = vmatpush1.msra.mxu0 0.0
    %1291 = vmatprep.subr.mxu0 0.0
    %1292 = vmatpush1.msra.mxu0 0.0
    %1293 = vmatprep.subr.mxu0 0.0
    %1294 = vmatpush1.msra.mxu0 0.0
    %1295 = vmatprep.subr.mxu0 0.0
    %1296 = vmatpush1.msra.mxu0 0.0
    %1297 = vmatprep.subr.mxu0 0.0
    %1298 = vmatpush1.msra.mxu0 0.0
    %1299 = vmatprep.subr.mxu0 0.0
    %1300 = vmatpush1.msra.mxu0 0.0
    %1301 = vmatprep.subr.mxu0 0.0
    %1302 = vmatpush1.msra.mxu0 0.0
    %1303 = vmatprep.subr.mxu0 0.0
    %1304 = vmatpush1.msra.mxu0 0.0
    %1305 = vmatprep.subr.mxu0 0.0
    %1306 = vmatpush1.msra.mxu0 0.0
    %1307 = vmatprep.subr.mxu0 0.0
    %1308 = vmatpush1.msra.mxu0 0.0
    %1309 = vmatprep.subr.mxu0 0.0
    %1310 = vmatpush1.msra.mxu0 0.0
    %1311 = vmatprep.subr.mxu0 0.0
    %1312 = vmatpush1.msra.mxu0 0.0
    %1313 = vmatprep.subr.mxu0 0.0
    %1314 = vmatpush1.msra.mxu0 0.0
    %1315 = vmatprep.subr.mxu0 0.0
    %1316 = vmatpush1.msra.mxu0 0.0
    %1317 = vmatprep.subr.mxu0 0.0
    %1318 = vmatpush1.msra.mxu0 0.0
    %1319 = vmatprep.subr.mxu0 0.0
    %1320 = vmatpush1.msra.mxu0 0.0
    %1321 = vmatprep.subr.mxu0 0.0
    %1322 = vmatpush1.msra.mxu0 0.0
    %1323 = vmatprep.subr.mxu0 0.0
    %1324 = vmatpush1.msra.mxu0 0.0
    %1325 = vmatprep.subr.mxu0 0.0
    %1326 = vmatpush1.msra.mxu0 0.0
    %1327 = vmatprep.mubr.f32.mxu0 0.0
    %1328 = vmatmul.mubr.f32.gmra.mrb[0].mxu0 %v1254
    %v1329 = vpop.f32.mrb[0].mxu0
    %v1330 = vadd.f32 0.0, %v1329
    %v1331 = vpop.f32.mrb[0].mxu0
    %v1332 = vadd.f32 0.0, %v1331
    %1333 = vdwg.mxu0
    %v1334 = vld [vmem:[%s3] sm:$0xff]
    %v1335 = vld [vmem:[%s3 + $0x8] sm:$0xff]
    %v1336 = vld [vmem:[%s3 + $0x10] sm:$0xff]
    %v1337 = vld [vmem:[%s3 + $0x18] sm:$0xff]
    %v1338 = vld [vmem:[%s3 + $0x20] sm:$0xff]
    %v1339 = vld [vmem:[%s3 + $0x28] sm:$0xff]
    %v1340 = vld [vmem:[%s3 + $0x30] sm:$0xff]
    %v1341 = vld [vmem:[%s3 + $0x38] sm:$0xff]
    %v1342 = vld [vmem:[%s3 + $0x40] sm:$0xff]
    %v1343 = vld [vmem:[%s3 + $0x48] sm:$0xff]
    %v1344 = vld [vmem:[%s3 + $0x50] sm:$0xff]
    %v1345 = vld [vmem:[%s3 + $0x58] sm:$0xff]
    %v1346 = vld [vmem:[%s3 + $0x60] sm:$0xff]
    %v1347 = vld [vmem:[%s3 + $0x68] sm:$0xff]
    %v1348 = vld [vmem:[%s3 + $0x70] sm:$0xff]
    %v1349 = vld [vmem:[%s3 + $0x78] sm:$0xff]
    %v1350 = vld [vmem:[%s3 + $0x80] sm:$0xff]
    %v1351 = vld [vmem:[%s3 + $0x88] sm:$0xff]
    %v1352 = vld [vmem:[%s3 + $0x90] sm:$0xff]
    %v1353 = vld [vmem:[%s3 + $0x98] sm:$0xff]
    %v1354 = vld [vmem:[%s3 + $0xa0] sm:$0xff]
    %v1355 = vld [vmem:[%s3 + $0xa8] sm:$0xff]
    %v1356 = vld [vmem:[%s3 + $0xb0] sm:$0xff]
    %v1357 = vld [vmem:[%s3 + $0xb8] sm:$0xff]
    %v1358 = vld [vmem:[%s3 + $0xc0] sm:$0xff]
    %v1359 = vld [vmem:[%s3 + $0xc8] sm:$0xff]
    %v1360 = vld [vmem:[%s3 + $0xd0] sm:$0xff]
    %v1361 = vld [vmem:[%s3 + $0xd8] sm:$0xff]
    %v1362 = vld [vmem:[%s3 + $0xe0] sm:$0xff]
    %v1363 = vld [vmem:[%s3 + $0xe8] sm:$0xff]
    %v1364 = vld [vmem:[%s3 + $0xf0] sm:$0xff]
    %v1365 = vld [vmem:[%s3 + $0xf8] sm:$0xff]
    %v1366 = vld [vmem:[%s3 + $0x100] sm:$0xff]
    %v1367 = vld [vmem:[%s3 + $0x108] sm:$0xff]
    %v1368 = vld [vmem:[%s3 + $0x110] sm:$0xff]
    %v1369 = vld [vmem:[%s3 + $0x118] sm:$0xff]
    %v1370 = vld [vmem:[%s3 + $0x120] sm:$0xff]
    %v1371 = vld [vmem:[%s3 + $0x128] sm:$0xff]
    %v1372 = vld [vmem:[%s3 + $0x130] sm:$0xff]
    %v1373 = vld [vmem:[%s3 + $0x138] sm:$0xff]
    %v1374 = vld [vmem:[%s3 + $0x140] sm:$0xff]
    %v1375 = vld [vmem:[%s3 + $0x148] sm:$0xff]
    %v1376 = vld [vmem:[%s3 + $0x150] sm:$0xff]
    %v1377 = vld [vmem:[%s3 + $0x158] sm:$0xff]
    %v1378 = vld [vmem:[%s3 + $0x160] sm:$0xff]
    %v1379 = vld [vmem:[%s3 + $0x168] sm:$0xff]
    %v1380 = vld [vmem:[%s3 + $0x170] sm:$0xff]
    %v1381 = vld [vmem:[%s3 + $0x178] sm:$0xff]
    %v1382 = vld [vmem:[%s3 + $0x180] sm:$0xff]
    %v1383 = vld [vmem:[%s3 + $0x188] sm:$0xff]
    %v1384 = vld [vmem:[%s3 + $0x190] sm:$0xff]
    %v1385 = vld [vmem:[%s3 + $0x198] sm:$0xff]
    %v1386 = vld [vmem:[%s3 + $0x1a0] sm:$0xff]
    %v1387 = vld [vmem:[%s3 + $0x1a8] sm:$0xff]
    %v1388 = vld [vmem:[%s3 + $0x1b0] sm:$0xff]
    %v1389 = vld [vmem:[%s3 + $0x1b8] sm:$0xff]
    %v1390 = vsel %vm1253, %v659, 0
    %1392 = vmatprep.subr.mxu0 %v1250
    %1393 = vmatpush1.msra.mxu0 %v1249
    %1394 = vmatprep.subr.mxu0 %v1261
    %1395 = vmatpush1.msra.mxu0 %v1258
    %1396 = vmatprep.subr.mxu0 0.0
    %1397 = vmatpush1.msra.mxu0 0.0
    %1398 = vmatprep.subr.mxu0 0.0
    %1399 = vmatpush1.msra.mxu0 0.0
    %1400 = vmatprep.subr.mxu0 0.0
    %1401 = vmatpush1.msra.mxu0 0.0
    %1402 = vmatprep.subr.mxu0 0.0
    %1403 = vmatpush1.msra.mxu0 0.0
    %1404 = vmatprep.subr.mxu0 0.0
    %1405 = vmatpush1.msra.mxu0 0.0
    %1406 = vmatprep.subr.mxu0 0.0
    %1407 = vmatpush1.msra.mxu0 0.0
    %1408 = vmatprep.subr.mxu0 0.0
    %1409 = vmatpush1.msra.mxu0 0.0
    %1410 = vmatprep.subr.mxu0 0.0
    %1411 = vmatpush1.msra.mxu0 0.0
    %1412 = vmatprep.subr.mxu0 0.0
    %1413 = vmatpush1.msra.mxu0 0.0
    %1414 = vmatprep.subr.mxu0 0.0
    %1415 = vmatpush1.msra.mxu0 0.0
    %1416 = vmatprep.subr.mxu0 0.0
    %1417 = vmatpush1.msra.mxu0 0.0
    %1418 = vmatprep.subr.mxu0 0.0
    %1419 = vmatpush1.msra.mxu0 0.0
    %1420 = vmatprep.subr.mxu0 0.0
    %1421 = vmatpush1.msra.mxu0 0.0
    %1422 = vmatprep.subr.mxu0 0.0
    %1423 = vmatpush1.msra.mxu0 0.0
    %1424 = vmatprep.subr.mxu0 0.0
    %1425 = vmatpush1.msra.mxu0 0.0
    %1426 = vmatprep.subr.mxu0 0.0
    %1427 = vmatpush1.msra.mxu0 0.0
    %1428 = vmatprep.subr.mxu0 0.0
    %1429 = vmatpush1.msra.mxu0 0.0
    %1430 = vmatprep.subr.mxu0 0.0
    %1431 = vmatpush1.msra.mxu0 0.0
    %1432 = vmatprep.subr.mxu0 0.0
    %1433 = vmatpush1.msra.mxu0 0.0
    %1434 = vmatprep.subr.mxu0 0.0
    %1435 = vmatpush1.msra.mxu0 0.0
    %1436 = vmatprep.subr.mxu0 0.0
    %1437 = vmatpush1.msra.mxu0 0.0
    %1438 = vmatprep.subr.mxu0 0.0
    %1439 = vmatpush1.msra.mxu0 0.0
    %1440 = vmatprep.subr.mxu0 0.0
    %1441 = vmatpush1.msra.mxu0 0.0
    %1442 = vmatprep.subr.mxu0 0.0
    %1443 = vmatpush1.msra.mxu0 0.0
    %1444 = vmatprep.subr.mxu0 0.0
    %1445 = vmatpush1.msra.mxu0 0.0
    %1446 = vmatprep.subr.mxu0 0.0
    %1447 = vmatpush1.msra.mxu0 0.0
    %1448 = vmatprep.subr.mxu0 0.0
    %1449 = vmatpush1.msra.mxu0 0.0
    %1450 = vmatprep.subr.mxu0 0.0
    %1451 = vmatpush1.msra.mxu0 0.0
    %1452 = vmatprep.subr.mxu0 0.0
    %1453 = vmatpush1.msra.mxu0 0.0
    %1454 = vmatprep.subr.mxu0 0.0
    %1455 = vmatpush1.msra.mxu0 0.0
    %1456 = vmatprep.mubr.f32.mxu0 0.0
    %1457 = vmatmul.mubr.f32.gmra.mrb[0].mxu0 %v1390
    %v1458 = vpop.f32.mrb[0].mxu0
    %v1459 = vadd.f32 0.0, %v1458
    %v1460 = vpop.f32.mrb[0].mxu0
    %v1461 = vadd.f32 0.0, %v1460
    %1462 = vdwg.mxu0
    %s1463 = scalar_lea.vmem %s3, 448
    %v1464 = vld [vmem:[%s1463] sm:$0xff]
    %v1465 = vld [vmem:[%s1463 + $0x8] sm:$0xff]
    %v1466 = vld [vmem:[%s1463 + $0x10] sm:$0xff]
    %v1467 = vld [vmem:[%s1463 + $0x18] sm:$0xff]
    %v1468 = vld [vmem:[%s1463 + $0x20] sm:$0xff]
    %v1469 = vld [vmem:[%s1463 + $0x28] sm:$0xff]
    %v1470 = vld [vmem:[%s1463 + $0x30] sm:$0xff]
    %v1471 = vld [vmem:[%s1463 + $0x38] sm:$0xff]
    %v1472 = vld [vmem:[%s1463 + $0x40] sm:$0xff]
    %v1473 = vld [vmem:[%s1463 + $0x48] sm:$0xff]
    %v1474 = vld [vmem:[%s1463 + $0x50] sm:$0xff]
    %v1475 = vld [vmem:[%s1463 + $0x58] sm:$0xff]
    %v1476 = vld [vmem:[%s1463 + $0x60] sm:$0xff]
    %v1477 = vld [vmem:[%s1463 + $0x68] sm:$0xff]
    %v1478 = vld [vmem:[%s1463 + $0x70] sm:$0xff]
    %v1479 = vld [vmem:[%s1463 + $0x78] sm:$0xff]
    %v1480 = vld [vmem:[%s1463 + $0x80] sm:$0xff]
    %v1481 = vld [vmem:[%s1463 + $0x88] sm:$0xff]
    %v1482 = vld [vmem:[%s1463 + $0x90] sm:$0xff]
    %v1483 = vld [vmem:[%s1463 + $0x98] sm:$0xff]
    %v1484 = vld [vmem:[%s1463 + $0xa0] sm:$0xff]
    %v1485 = vld [vmem:[%s1463 + $0xa8] sm:$0xff]
    %v1486 = vld [vmem:[%s1463 + $0xb0] sm:$0xff]
    %v1487 = vld [vmem:[%s1463 + $0xb8] sm:$0xff]
    %v1488 = vld [vmem:[%s1463 + $0xc0] sm:$0xff]
    %v1489 = vld [vmem:[%s1463 + $0xc8] sm:$0xff]
    %v1490 = vld [vmem:[%s1463 + $0xd0] sm:$0xff]
    %v1491 = vld [vmem:[%s1463 + $0xd8] sm:$0xff]
    %v1492 = vld [vmem:[%s1463 + $0xe0] sm:$0xff]
    %v1493 = vld [vmem:[%s1463 + $0xe8] sm:$0xff]
    %v1494 = vld [vmem:[%s1463 + $0xf0] sm:$0xff]
    %v1495 = vld [vmem:[%s1463 + $0xf8] sm:$0xff]
    %v1496 = vld [vmem:[%s1463 + $0x100] sm:$0xff]
    %v1497 = vld [vmem:[%s1463 + $0x108] sm:$0xff]
    %v1498 = vld [vmem:[%s1463 + $0x110] sm:$0xff]
    %v1499 = vld [vmem:[%s1463 + $0x118] sm:$0xff]
    %v1500 = vld [vmem:[%s1463 + $0x120] sm:$0xff]
    %v1501 = vld [vmem:[%s1463 + $0x128] sm:$0xff]
    %v1502 = vld [vmem:[%s1463 + $0x130] sm:$0xff]
    %v1503 = vld [vmem:[%s1463 + $0x138] sm:$0xff]
    %v1504 = vld [vmem:[%s1463 + $0x140] sm:$0xff]
    %v1505 = vld [vmem:[%s1463 + $0x148] sm:$0xff]
    %v1506 = vld [vmem:[%s1463 + $0x150] sm:$0xff]
    %v1507 = vld [vmem:[%s1463 + $0x158] sm:$0xff]
    %v1508 = vld [vmem:[%s1463 + $0x160] sm:$0xff]
    %v1509 = vld [vmem:[%s1463 + $0x168] sm:$0xff]
    %v1510 = vld [vmem:[%s1463 + $0x170] sm:$0xff]
    %v1511 = vld [vmem:[%s1463 + $0x178] sm:$0xff]
    %v1512 = vld [vmem:[%s1463 + $0x180] sm:$0xff]
    %v1513 = vld [vmem:[%s1463 + $0x188] sm:$0xff]
    %v1514 = vld [vmem:[%s1463 + $0x190] sm:$0xff]
    %v1515 = vld [vmem:[%s1463 + $0x198] sm:$0xff]
    %v1516 = vld [vmem:[%s1463 + $0x1a0] sm:$0xff]
    %v1517 = vld [vmem:[%s1463 + $0x1a8] sm:$0xff]
    %v1518 = vld [vmem:[%s1463 + $0x1b0] sm:$0xff]
    %v1519 = vld [vmem:[%s1463 + $0x1b8] sm:$0xff]
    %v1521 = vsel %vm1211, %v1461, 0
    %1523 = vmatprep.subr.mxu0 %v1465
    %1524 = vmatpush1.msra.mxu0 %v1464
    %1525 = vmatprep.subr.mxu0 %v1467
    %1526 = vmatpush1.msra.mxu0 %v1466
    %1527 = vmatprep.subr.mxu0 %v1469
    %1528 = vmatpush1.msra.mxu0 %v1468
    %1529 = vmatprep.subr.mxu0 %v1471
    %1530 = vmatpush1.msra.mxu0 %v1470
    %1531 = vmatprep.subr.mxu0 %v1473
    %1532 = vmatpush1.msra.mxu0 %v1472
    %1533 = vmatprep.subr.mxu0 %v1475
    %1534 = vmatpush1.msra.mxu0 %v1474
    %1535 = vmatprep.subr.mxu0 %v1477
    %1536 = vmatpush1.msra.mxu0 %v1476
    %1537 = vmatprep.subr.mxu0 %v1479
    %1538 = vmatpush1.msra.mxu0 %v1478
    %1539 = vmatprep.subr.mxu0 %v1481
    %1540 = vmatpush1.msra.mxu0 %v1480
    %1541 = vmatprep.subr.mxu0 %v1483
    %1542 = vmatpush1.msra.mxu0 %v1482
    %1543 = vmatprep.subr.mxu0 %v1485
    %1544 = vmatpush1.msra.mxu0 %v1484
    %1545 = vmatprep.subr.mxu0 %v1487
    %1546 = vmatpush1.msra.mxu0 %v1486
    %1547 = vmatprep.subr.mxu0 %v1489
    %1548 = vmatpush1.msra.mxu0 %v1488
    %1549 = vmatprep.subr.mxu0 %v1491
    %1550 = vmatpush1.msra.mxu0 %v1490
    %1551 = vmatprep.subr.mxu0 %v1493
    %1552 = vmatpush1.msra.mxu0 %v1492
    %1553 = vmatprep.subr.mxu0 %v1495
    %1554 = vmatpush1.msra.mxu0 %v1494
    %1555 = vmatprep.subr.mxu0 %v1497
    %1556 = vmatpush1.msra.mxu0 %v1496
    %1557 = vmatprep.subr.mxu0 %v1499
    %1558 = vmatpush1.msra.mxu0 %v1498
    %1559 = vmatprep.subr.mxu0 %v1501
    %1560 = vmatpush1.msra.mxu0 %v1500
    %1561 = vmatprep.subr.mxu0 %v1503
    %1562 = vmatpush1.msra.mxu0 %v1502
    %1563 = vmatprep.subr.mxu0 %v1505
    %1564 = vmatpush1.msra.mxu0 %v1504
    %1565 = vmatprep.subr.mxu0 %v1507
    %1566 = vmatpush1.msra.mxu0 %v1506
    %1567 = vmatprep.subr.mxu0 %v1509
    %1568 = vmatpush1.msra.mxu0 %v1508
    %1569 = vmatprep.subr.mxu0 %v1511
    %1570 = vmatpush1.msra.mxu0 %v1510
    %1571 = vmatprep.subr.mxu0 %v1513
    %1572 = vmatpush1.msra.mxu0 %v1512
    %1573 = vmatprep.subr.mxu0 %v1515
    %1574 = vmatpush1.msra.mxu0 %v1514
    %1575 = vmatprep.subr.mxu0 %v1517
    %1576 = vmatpush1.msra.mxu0 %v1516
    %1577 = vmatprep.subr.mxu0 %v1519
    %1578 = vmatpush1.msra.mxu0 %v1518
    %1579 = vmatprep.subr.mxu0 0.0
    %1580 = vmatpush1.msra.mxu0 0.0
    %1581 = vmatprep.subr.mxu0 0.0
    %1582 = vmatpush1.msra.mxu0 0.0
    %1583 = vmatprep.subr.mxu0 0.0
    %1584 = vmatpush1.msra.mxu0 0.0
    %1585 = vmatprep.subr.mxu0 0.0
    %1586 = vmatpush1.msra.mxu0 0.0
    %1587 = vmatprep.mubr.f32.mxu0 %v1521
    %1588 = vmatmul.mubr.f32.gmra.mrb[0].mxu0 %v1459
    %v1589 = vpop.f32.mrb[0].mxu0
    %v1590 = vadd.f32 0.0, %v1589
    %v1591 = vpop.f32.mrb[0].mxu0
    %v1592 = vadd.f32 0.0, %v1591
    %1593 = vdwg.mxu0
    %v1595 = vsel %vm1211, %v1332, 0
    %1597 = vmatprep.subr.mxu0 %v1335
    %1598 = vmatpush1.msra.mxu0 %v1334
    %1599 = vmatprep.subr.mxu0 %v1337
    %1600 = vmatpush1.msra.mxu0 %v1336
    %1601 = vmatprep.subr.mxu0 %v1339
    %1602 = vmatpush1.msra.mxu0 %v1338
    %1603 = vmatprep.subr.mxu0 %v1341
    %1604 = vmatpush1.msra.mxu0 %v1340
    %1605 = vmatprep.subr.mxu0 %v1343
    %1606 = vmatpush1.msra.mxu0 %v1342
    %1607 = vmatprep.subr.mxu0 %v1345
    %1608 = vmatpush1.msra.mxu0 %v1344
    %1609 = vmatprep.subr.mxu0 %v1347
    %1610 = vmatpush1.msra.mxu0 %v1346
    %1611 = vmatprep.subr.mxu0 %v1349
    %1612 = vmatpush1.msra.mxu0 %v1348
    %1613 = vmatprep.subr.mxu0 %v1351
    %1614 = vmatpush1.msra.mxu0 %v1350
    %1615 = vmatprep.subr.mxu0 %v1353
    %1616 = vmatpush1.msra.mxu0 %v1352
    %1617 = vmatprep.subr.mxu0 %v1355
    %1618 = vmatpush1.msra.mxu0 %v1354
    %1619 = vmatprep.subr.mxu0 %v1357
    %1620 = vmatpush1.msra.mxu0 %v1356
    %1621 = vmatprep.subr.mxu0 %v1359
    %1622 = vmatpush1.msra.mxu0 %v1358
    %1623 = vmatprep.subr.mxu0 %v1361
    %1624 = vmatpush1.msra.mxu0 %v1360
    %1625 = vmatprep.subr.mxu0 %v1363
    %1626 = vmatpush1.msra.mxu0 %v1362
    %1627 = vmatprep.subr.mxu0 %v1365
    %1628 = vmatpush1.msra.mxu0 %v1364
    %1629 = vmatprep.subr.mxu0 %v1367
    %1630 = vmatpush1.msra.mxu0 %v1366
    %1631 = vmatprep.subr.mxu0 %v1369
    %1632 = vmatpush1.msra.mxu0 %v1368
    %1633 = vmatprep.subr.mxu0 %v1371
    %1634 = vmatpush1.msra.mxu0 %v1370
    %1635 = vmatprep.subr.mxu0 %v1373
    %1636 = vmatpush1.msra.mxu0 %v1372
    %1637 = vmatprep.subr.mxu0 %v1375
    %1638 = vmatpush1.msra.mxu0 %v1374
    %1639 = vmatprep.subr.mxu0 %v1377
    %1640 = vmatpush1.msra.mxu0 %v1376
    %1641 = vmatprep.subr.mxu0 %v1379
    %1642 = vmatpush1.msra.mxu0 %v1378
    %1643 = vmatprep.subr.mxu0 %v1381
    %1644 = vmatpush1.msra.mxu0 %v1380
    %1645 = vmatprep.subr.mxu0 %v1383
    %1646 = vmatpush1.msra.mxu0 %v1382
    %1647 = vmatprep.subr.mxu0 %v1385
    %1648 = vmatpush1.msra.mxu0 %v1384
    %1649 = vmatprep.subr.mxu0 %v1387
    %1650 = vmatpush1.msra.mxu0 %v1386
    %1651 = vmatprep.subr.mxu0 %v1389
    %1652 = vmatpush1.msra.mxu0 %v1388
    %1653 = vmatprep.subr.mxu0 0.0
    %1654 = vmatpush1.msra.mxu0 0.0
    %1655 = vmatprep.subr.mxu0 0.0
    %1656 = vmatpush1.msra.mxu0 0.0
    %1657 = vmatprep.subr.mxu0 0.0
    %1658 = vmatpush1.msra.mxu0 0.0
    %1659 = vmatprep.subr.mxu0 0.0
    %1660 = vmatpush1.msra.mxu0 0.0
    %1661 = vmatprep.mubr.f32.mxu0 %v1595
    %1662 = vmatmul.mubr.f32.gmra.mrb[0].mxu0 %v1330
    %v1663 = vpop.f32.mrb[0].mxu0
    %v1664 = vadd.f32 %v1590, %v1663
    %v1665 = vpop.f32.mrb[0].mxu0
    %v1666 = vadd.f32 %v1592, %v1665
    %1667 = vdwg.mxu0
    %v1668 = vsel %vm1253, %v969, 0
    %1670 = vmatprep.subr.mxu0 %v1250
    %1671 = vmatpush1.msra.mxu0 %v1249
    %1672 = vmatprep.subr.mxu0 %v1261
    %1673 = vmatpush1.msra.mxu0 %v1258
    %1674 = vmatprep.subr.mxu0 0.0
    %1675 = vmatpush1.msra.mxu0 0.0
    %1676 = vmatprep.subr.mxu0 0.0
    %1677 = vmatpush1.msra.mxu0 0.0
    %1678 = vmatprep.subr.mxu0 0.0
    %1679 = vmatpush1.msra.mxu0 0.0
    %1680 = vmatprep.subr.mxu0 0.0
    %1681 = vmatpush1.msra.mxu0 0.0
    %1682 = vmatprep.subr.mxu0 0.0
    %1683 = vmatpush1.msra.mxu0 0.0
    %1684 = vmatprep.subr.mxu0 0.0
    %1685 = vmatpush1.msra.mxu0 0.0
    %1686 = vmatprep.subr.mxu0 0.0
    %1687 = vmatpush1.msra.mxu0 0.0
    %1688 = vmatprep.subr.mxu0 0.0
    %1689 = vmatpush1.msra.mxu0 0.0
    %1690 = vmatprep.subr.mxu0 0.0
    %1691 = vmatpush1.msra.mxu0 0.0
    %1692 = vmatprep.subr.mxu0 0.0
    %1693 = vmatpush1.msra.mxu0 0.0
    %1694 = vmatprep.subr.mxu0 0.0
    %1695 = vmatpush1.msra.mxu0 0.0
    %1696 = vmatprep.subr.mxu0 0.0
    %1697 = vmatpush1.msra.mxu0 0.0
    %1698 = vmatprep.subr.mxu0 0.0
    %1699 = vmatpush1.msra.mxu0 0.0
    %1700 = vmatprep.subr.mxu0 0.0
    %1701 = vmatpush1.msra.mxu0 0.0
    %1702 = vmatprep.subr.mxu0 0.0
    %1703 = vmatpush1.msra.mxu0 0.0
    %1704 = vmatprep.subr.mxu0 0.0
    %1705 = vmatpush1.msra.mxu0 0.0
    %1706 = vmatprep.subr.mxu0 0.0
    %1707 = vmatpush1.msra.mxu0 0.0
    %1708 = vmatprep.subr.mxu0 0.0
    %1709 = vmatpush1.msra.mxu0 0.0
    %1710 = vmatprep.subr.mxu0 0.0
    %1711 = vmatpush1.msra.mxu0 0.0
    %1712 = vmatprep.subr.mxu0 0.0
    %1713 = vmatpush1.msra.mxu0 0.0
    %1714 = vmatprep.subr.mxu0 0.0
    %1715 = vmatpush1.msra.mxu0 0.0
    %1716 = vmatprep.subr.mxu0 0.0
    %1717 = vmatpush1.msra.mxu0 0.0
    %1718 = vmatprep.subr.mxu0 0.0
    %1719 = vmatpush1.msra.mxu0 0.0
    %1720 = vmatprep.subr.mxu0 0.0
    %1721 = vmatpush1.msra.mxu0 0.0
    %1722 = vmatprep.subr.mxu0 0.0
    %1723 = vmatpush1.msra.mxu0 0.0
    %1724 = vmatprep.subr.mxu0 0.0
    %1725 = vmatpush1.msra.mxu0 0.0
    %1726 = vmatprep.subr.mxu0 0.0
    %1727 = vmatpush1.msra.mxu0 0.0
    %1728 = vmatprep.subr.mxu0 0.0
    %1729 = vmatpush1.msra.mxu0 0.0
    %1730 = vmatprep.subr.mxu0 0.0
    %1731 = vmatpush1.msra.mxu0 0.0
    %1732 = vmatprep.subr.mxu0 0.0
    %1733 = vmatpush1.msra.mxu0 0.0
    %1734 = vmatprep.mubr.f32.mxu0 0.0
    %1735 = vmatmul.mubr.f32.gmra.mrb[0].mxu0 %v1668
    %v1736 = vpop.f32.mrb[0].mxu0
    %v1737 = vadd.f32 0.0, %v1736
    %v1738 = vpop.f32.mrb[0].mxu0
    %v1739 = vadd.f32 0.0, %v1738
    %1740 = vdwg.mxu0
    %s1741 = scalar_lea.vmem %s3, 896
    %v1742 = vld [vmem:[%s1741] sm:$0xff]
    %v1743 = vld [vmem:[%s1741 + $0x8] sm:$0xff]
    %v1744 = vld [vmem:[%s1741 + $0x10] sm:$0xff]
    %v1745 = vld [vmem:[%s1741 + $0x18] sm:$0xff]
    %v1746 = vld [vmem:[%s1741 + $0x20] sm:$0xff]
    %v1747 = vld [vmem:[%s1741 + $0x28] sm:$0xff]
    %v1748 = vld [vmem:[%s1741 + $0x30] sm:$0xff]
    %v1749 = vld [vmem:[%s1741 + $0x38] sm:$0xff]
    %v1750 = vld [vmem:[%s1741 + $0x40] sm:$0xff]
    %v1751 = vld [vmem:[%s1741 + $0x48] sm:$0xff]
    %v1752 = vld [vmem:[%s1741 + $0x50] sm:$0xff]
    %v1753 = vld [vmem:[%s1741 + $0x58] sm:$0xff]
    %v1754 = vld [vmem:[%s1741 + $0x60] sm:$0xff]
    %v1755 = vld [vmem:[%s1741 + $0x68] sm:$0xff]
    %v1756 = vld [vmem:[%s1741 + $0x70] sm:$0xff]
    %v1757 = vld [vmem:[%s1741 + $0x78] sm:$0xff]
    %v1758 = vld [vmem:[%s1741 + $0x80] sm:$0xff]
    %v1759 = vld [vmem:[%s1741 + $0x88] sm:$0xff]
    %v1760 = vld [vmem:[%s1741 + $0x90] sm:$0xff]
    %v1761 = vld [vmem:[%s1741 + $0x98] sm:$0xff]
    %v1762 = vld [vmem:[%s1741 + $0xa0] sm:$0xff]
    %v1763 = vld [vmem:[%s1741 + $0xa8] sm:$0xff]
    %v1764 = vld [vmem:[%s1741 + $0xb0] sm:$0xff]
    %v1765 = vld [vmem:[%s1741 + $0xb8] sm:$0xff]
    %v1766 = vld [vmem:[%s1741 + $0xc0] sm:$0xff]
    %v1767 = vld [vmem:[%s1741 + $0xc8] sm:$0xff]
    %v1768 = vld [vmem:[%s1741 + $0xd0] sm:$0xff]
    %v1769 = vld [vmem:[%s1741 + $0xd8] sm:$0xff]
    %v1770 = vld [vmem:[%s1741 + $0xe0] sm:$0xff]
    %v1771 = vld [vmem:[%s1741 + $0xe8] sm:$0xff]
    %v1772 = vld [vmem:[%s1741 + $0xf0] sm:$0xff]
    %v1773 = vld [vmem:[%s1741 + $0xf8] sm:$0xff]
    %v1774 = vld [vmem:[%s1741 + $0x100] sm:$0xff]
    %v1775 = vld [vmem:[%s1741 + $0x108] sm:$0xff]
    %v1776 = vld [vmem:[%s1741 + $0x110] sm:$0xff]
    %v1777 = vld [vmem:[%s1741 + $0x118] sm:$0xff]
    %v1778 = vld [vmem:[%s1741 + $0x120] sm:$0xff]
    %v1779 = vld [vmem:[%s1741 + $0x128] sm:$0xff]
    %v1780 = vld [vmem:[%s1741 + $0x130] sm:$0xff]
    %v1781 = vld [vmem:[%s1741 + $0x138] sm:$0xff]
    %v1782 = vld [vmem:[%s1741 + $0x140] sm:$0xff]
    %v1783 = vld [vmem:[%s1741 + $0x148] sm:$0xff]
    %v1784 = vld [vmem:[%s1741 + $0x150] sm:$0xff]
    %v1785 = vld [vmem:[%s1741 + $0x158] sm:$0xff]
    %v1786 = vld [vmem:[%s1741 + $0x160] sm:$0xff]
    %v1787 = vld [vmem:[%s1741 + $0x168] sm:$0xff]
    %v1788 = vld [vmem:[%s1741 + $0x170] sm:$0xff]
    %v1789 = vld [vmem:[%s1741 + $0x178] sm:$0xff]
    %v1790 = vld [vmem:[%s1741 + $0x180] sm:$0xff]
    %v1791 = vld [vmem:[%s1741 + $0x188] sm:$0xff]
    %v1792 = vld [vmem:[%s1741 + $0x190] sm:$0xff]
    %v1793 = vld [vmem:[%s1741 + $0x198] sm:$0xff]
    %v1794 = vld [vmem:[%s1741 + $0x1a0] sm:$0xff]
    %v1795 = vld [vmem:[%s1741 + $0x1a8] sm:$0xff]
    %v1796 = vld [vmem:[%s1741 + $0x1b0] sm:$0xff]
    %v1797 = vld [vmem:[%s1741 + $0x1b8] sm:$0xff]
    %v1799 = vsel %vm1211, %v1739, 0
    %1801 = vmatprep.subr.mxu0 %v1743
    %1802 = vmatpush1.msra.mxu0 %v1742
    %1803 = vmatprep.subr.mxu0 %v1745
    %1804 = vmatpush1.msra.mxu0 %v1744
    %1805 = vmatprep.subr.mxu0 %v1747
    %1806 = vmatpush1.msra.mxu0 %v1746
    %1807 = vmatprep.subr.mxu0 %v1749
    %1808 = vmatpush1.msra.mxu0 %v1748
    %1809 = vmatprep.subr.mxu0 %v1751
    %1810 = vmatpush1.msra.mxu0 %v1750
    %1811 = vmatprep.subr.mxu0 %v1753
    %1812 = vmatpush1.msra.mxu0 %v1752
    %1813 = vmatprep.subr.mxu0 %v1755
    %1814 = vmatpush1.msra.mxu0 %v1754
    %1815 = vmatprep.subr.mxu0 %v1757
    %1816 = vmatpush1.msra.mxu0 %v1756
    %1817 = vmatprep.subr.mxu0 %v1759
    %1818 = vmatpush1.msra.mxu0 %v1758
    %1819 = vmatprep.subr.mxu0 %v1761
    %1820 = vmatpush1.msra.mxu0 %v1760
    %1821 = vmatprep.subr.mxu0 %v1763
    %1822 = vmatpush1.msra.mxu0 %v1762
    %1823 = vmatprep.subr.mxu0 %v1765
    %1824 = vmatpush1.msra.mxu0 %v1764
    %1825 = vmatprep.subr.mxu0 %v1767
    %1826 = vmatpush1.msra.mxu0 %v1766
    %1827 = vmatprep.subr.mxu0 %v1769
    %1828 = vmatpush1.msra.mxu0 %v1768
    %1829 = vmatprep.subr.mxu0 %v1771
    %1830 = vmatpush1.msra.mxu0 %v1770
    %1831 = vmatprep.subr.mxu0 %v1773
    %1832 = vmatpush1.msra.mxu0 %v1772
    %1833 = vmatprep.subr.mxu0 %v1775
    %1834 = vmatpush1.msra.mxu0 %v1774
    %1835 = vmatprep.subr.mxu0 %v1777
    %1836 = vmatpush1.msra.mxu0 %v1776
    %1837 = vmatprep.subr.mxu0 %v1779
    %1838 = vmatpush1.msra.mxu0 %v1778
    %1839 = vmatprep.subr.mxu0 %v1781
    %1840 = vmatpush1.msra.mxu0 %v1780
    %1841 = vmatprep.subr.mxu0 %v1783
    %1842 = vmatpush1.msra.mxu0 %v1782
    %1843 = vmatprep.subr.mxu0 %v1785
    %1844 = vmatpush1.msra.mxu0 %v1784
    %1845 = vmatprep.subr.mxu0 %v1787
    %1846 = vmatpush1.msra.mxu0 %v1786
    %1847 = vmatprep.subr.mxu0 %v1789
    %1848 = vmatpush1.msra.mxu0 %v1788
    %1849 = vmatprep.subr.mxu0 %v1791
    %1850 = vmatpush1.msra.mxu0 %v1790
    %1851 = vmatprep.subr.mxu0 %v1793
    %1852 = vmatpush1.msra.mxu0 %v1792
    %1853 = vmatprep.subr.mxu0 %v1795
    %1854 = vmatpush1.msra.mxu0 %v1794
    %1855 = vmatprep.subr.mxu0 %v1797
    %1856 = vmatpush1.msra.mxu0 %v1796
    %1857 = vmatprep.subr.mxu0 0.0
    %1858 = vmatpush1.msra.mxu0 0.0
    %1859 = vmatprep.subr.mxu0 0.0
    %1860 = vmatpush1.msra.mxu0 0.0
    %1861 = vmatprep.subr.mxu0 0.0
    %1862 = vmatpush1.msra.mxu0 0.0
    %1863 = vmatprep.subr.mxu0 0.0
    %1864 = vmatpush1.msra.mxu0 0.0
    %1865 = vmatprep.mubr.f32.mxu0 %v1799
    %1866 = vmatmul.mubr.f32.gmra.mrb[0].mxu0 %v1737
    %v1867 = vpop.f32.mrb[0].mxu0
    %v1868 = vadd.f32 0.0, %v1867
    %v1869 = vpop.f32.mrb[0].mxu0
    %v1870 = vadd.f32 0.0, %v1869
    %1871 = vdwg.mxu0
    %v1872 = vadd.f32 %v1664, %v1868
    %v1873 = vadd.f32 %v1666, %v1870
    %v1874 = vld [vmem:[%s6] sm:$0x3]
    %v1876 = vlaneseq
    %v1877 = vshrl.u32 %v1876, 7
    %v1878 = vsub.s32 0, %v1877
    %v1879 = vrot.slane %v1874, %v1878
    %v1880 = vlaneseq
    %v1881 = vshrl.u32 %v1880, 7
    %v1882 = vsub.s32 1, %v1881
    %v1883 = vrot.slane %v1874, %v1882
    %v1886 = vadd.f32 %v1872, %v1879
    %v1887 = vadd.f32 %v1873, %v1883
    %v1888 = vld [vmem:[%s8] sm:$0x7f]
    %v1889 = vld [vmem:[%s7] sm:$0xff]
    %v1890 = vld [vmem:[%s7 + $0x8] sm:$0xff]
    %v1891 = vld [vmem:[%s7 + $0x10] sm:$0xff]
    %v1892 = vld [vmem:[%s7 + $0x18] sm:$0xff]
    %v1893 = vld [vmem:[%s7 + $0x20] sm:$0xff]
    %v1894 = vld [vmem:[%s7 + $0x28] sm:$0xff]
    %v1895 = vld [vmem:[%s7 + $0x30] sm:$0xff]
    %v1896 = vld [vmem:[%s7 + $0x38] sm:$0xff]
    %v1897 = vld [vmem:[%s7 + $0x40] sm:$0xff]
    %v1898 = vld [vmem:[%s7 + $0x48] sm:$0xff]
    %v1899 = vld [vmem:[%s7 + $0x50] sm:$0xff]
    %v1900 = vld [vmem:[%s7 + $0x58] sm:$0xff]
    %v1901 = vld [vmem:[%s7 + $0x60] sm:$0xff]
    %v1902 = vld [vmem:[%s7 + $0x68] sm:$0xff]
    %v1903 = vld [vmem:[%s7 + $0x70] sm:$0xff]
    %v1904 = vld [vmem:[%s7 + $0x78] sm:$0xff]
    %v1905 = vld [vmem:[%s7 + $0x80] sm:$0xff]
    %v1906 = vld [vmem:[%s7 + $0x88] sm:$0xff]
    %v1907 = vld [vmem:[%s7 + $0x90] sm:$0xff]
    %v1908 = vld [vmem:[%s7 + $0x98] sm:$0xff]
    %v1909 = vld [vmem:[%s7 + $0xa0] sm:$0xff]
    %v1910 = vld [vmem:[%s7 + $0xa8] sm:$0xff]
    %v1911 = vld [vmem:[%s7 + $0xb0] sm:$0xff]
    %v1912 = vld [vmem:[%s7 + $0xb8] sm:$0xff]
    %v1913 = vld [vmem:[%s7 + $0xc0] sm:$0xff]
    %v1914 = vld [vmem:[%s7 + $0xc8] sm:$0xff]
    %v1915 = vld [vmem:[%s7 + $0xd0] sm:$0xff]
    %v1916 = vld [vmem:[%s7 + $0xd8] sm:$0xff]
    %v1917 = vld [vmem:[%s7 + $0xe0] sm:$0xff]
    %v1918 = vld [vmem:[%s7 + $0xe8] sm:$0xff]
    %v1919 = vld [vmem:[%s7 + $0xf0] sm:$0xff]
    %v1920 = vld [vmem:[%s7 + $0xf8] sm:$0xff]
    %v1921 = vld [vmem:[%s7 + $0x100] sm:$0xff]
    %v1922 = vld [vmem:[%s7 + $0x108] sm:$0xff]
    %v1923 = vld [vmem:[%s7 + $0x110] sm:$0xff]
    %v1924 = vld [vmem:[%s7 + $0x118] sm:$0xff]
    %v1925 = vld [vmem:[%s7 + $0x120] sm:$0xff]
    %v1926 = vld [vmem:[%s7 + $0x128] sm:$0xff]
    %v1927 = vld [vmem:[%s7 + $0x130] sm:$0xff]
    %v1928 = vld [vmem:[%s7 + $0x138] sm:$0xff]
    %v1929 = vld [vmem:[%s7 + $0x140] sm:$0xff]
    %v1930 = vld [vmem:[%s7 + $0x148] sm:$0xff]
    %v1931 = vld [vmem:[%s7 + $0x150] sm:$0xff]
    %v1932 = vld [vmem:[%s7 + $0x158] sm:$0xff]
    %v1933 = vld [vmem:[%s7 + $0x160] sm:$0xff]
    %v1934 = vld [vmem:[%s7 + $0x168] sm:$0xff]
    %v1935 = vld [vmem:[%s7 + $0x170] sm:$0xff]
    %v1936 = vld [vmem:[%s7 + $0x178] sm:$0xff]
    %v1937 = vld [vmem:[%s7 + $0x180] sm:$0xff]
    %v1938 = vld [vmem:[%s7 + $0x188] sm:$0xff]
    %v1939 = vld [vmem:[%s7 + $0x190] sm:$0xff]
    %v1940 = vld [vmem:[%s7 + $0x198] sm:$0xff]
    %v1941 = vld [vmem:[%s7 + $0x1a0] sm:$0xff]
    %v1942 = vld [vmem:[%s7 + $0x1a8] sm:$0xff]
    %v1943 = vld [vmem:[%s7 + $0x1b0] sm:$0xff]
    %v1944 = vld [vmem:[%s7 + $0x1b8] sm:$0xff]
    %v1945 = vld [vmem:[%s7 + $0x1c0] sm:$0xff]
    %v1946 = vld [vmem:[%s7 + $0x1c8] sm:$0xff]
    %v1947 = vld [vmem:[%s7 + $0x1d0] sm:$0xff]
    %v1948 = vld [vmem:[%s7 + $0x1d8] sm:$0xff]
    %v1949 = vld [vmem:[%s7 + $0x1e0] sm:$0xff]
    %v1950 = vld [vmem:[%s7 + $0x1e8] sm:$0xff]
    %v1951 = vld [vmem:[%s7 + $0x1f0] sm:$0xff]
    %v1952 = vld [vmem:[%s7 + $0x1f8] sm:$0xff]
    %v1953 = vld [vmem:[%s7 + $0x200] sm:$0xff]
    %v1954 = vld [vmem:[%s7 + $0x208] sm:$0xff]
    %v1955 = vld [vmem:[%s7 + $0x210] sm:$0xff]
    %v1956 = vld [vmem:[%s7 + $0x218] sm:$0xff]
    %v1957 = vld [vmem:[%s7 + $0x220] sm:$0xff]
    %v1958 = vld [vmem:[%s7 + $0x228] sm:$0xff]
    %v1959 = vld [vmem:[%s7 + $0x230] sm:$0xff]
    %v1960 = vld [vmem:[%s7 + $0x238] sm:$0xff]
    %v1961 = vld [vmem:[%s7 + $0x240] sm:$0xff]
    %v1962 = vld [vmem:[%s7 + $0x248] sm:$0xff]
    %v1963 = vld [vmem:[%s7 + $0x250] sm:$0xff]
    %v1964 = vld [vmem:[%s7 + $0x258] sm:$0xff]
    %v1965 = vld [vmem:[%s7 + $0x260] sm:$0xff]
    %v1966 = vld [vmem:[%s7 + $0x268] sm:$0xff]
    %v1967 = vld [vmem:[%s7 + $0x270] sm:$0xff]
    %v1968 = vld [vmem:[%s7 + $0x278] sm:$0xff]
    %v1969 = vld [vmem:[%s7 + $0x280] sm:$0xff]
    %v1970 = vld [vmem:[%s7 + $0x288] sm:$0xff]
    %v1971 = vld [vmem:[%s7 + $0x290] sm:$0xff]
    %v1972 = vld [vmem:[%s7 + $0x298] sm:$0xff]
    %v1973 = vld [vmem:[%s7 + $0x2a0] sm:$0xff]
    %v1974 = vld [vmem:[%s7 + $0x2a8] sm:$0xff]
    %v1975 = vld [vmem:[%s7 + $0x2b0] sm:$0xff]
    %v1976 = vld [vmem:[%s7 + $0x2b8] sm:$0xff]
    %v1977 = vld [vmem:[%s7 + $0x2c0] sm:$0xff]
    %v1978 = vld [vmem:[%s7 + $0x2c8] sm:$0xff]
    %v1979 = vld [vmem:[%s7 + $0x2d0] sm:$0xff]
    %v1980 = vld [vmem:[%s7 + $0x2d8] sm:$0xff]
    %v1981 = vld [vmem:[%s7 + $0x2e0] sm:$0xff]
    %v1982 = vld [vmem:[%s7 + $0x2e8] sm:$0xff]
    %v1983 = vld [vmem:[%s7 + $0x2f0] sm:$0xff]
    %v1984 = vld [vmem:[%s7 + $0x2f8] sm:$0xff]
    %v1985 = vld [vmem:[%s7 + $0x300] sm:$0xff]
    %v1986 = vld [vmem:[%s7 + $0x308] sm:$0xff]
    %v1987 = vld [vmem:[%s7 + $0x310] sm:$0xff]
    %v1988 = vld [vmem:[%s7 + $0x318] sm:$0xff]
    %v1989 = vld [vmem:[%s7 + $0x320] sm:$0xff]
    %v1990 = vld [vmem:[%s7 + $0x328] sm:$0xff]
    %v1991 = vld [vmem:[%s7 + $0x330] sm:$0xff]
    %v1992 = vld [vmem:[%s7 + $0x338] sm:$0xff]
    %v1993 = vld [vmem:[%s7 + $0x340] sm:$0xff]
    %v1994 = vld [vmem:[%s7 + $0x348] sm:$0xff]
    %v1995 = vld [vmem:[%s7 + $0x350] sm:$0xff]
    %v1996 = vld [vmem:[%s7 + $0x358] sm:$0xff]
    %v1997 = vld [vmem:[%s7 + $0x360] sm:$0xff]
    %v1998 = vld [vmem:[%s7 + $0x368] sm:$0xff]
    %v1999 = vld [vmem:[%s7 + $0x370] sm:$0xff]
    %v2000 = vld [vmem:[%s7 + $0x378] sm:$0xff]
    %v2001 = vld [vmem:[%s7 + $0x380] sm:$0xff]
    %v2002 = vld [vmem:[%s7 + $0x388] sm:$0xff]
    %v2003 = vld [vmem:[%s7 + $0x390] sm:$0xff]
    %v2004 = vld [vmem:[%s7 + $0x398] sm:$0xff]
    %v2005 = vld [vmem:[%s7 + $0x3a0] sm:$0xff]
    %v2006 = vld [vmem:[%s7 + $0x3a8] sm:$0xff]
    %v2007 = vld [vmem:[%s7 + $0x3b0] sm:$0xff]
    %v2008 = vld [vmem:[%s7 + $0x3b8] sm:$0xff]
    %v2009 = vld [vmem:[%s7 + $0x3c0] sm:$0xff]
    %v2010 = vld [vmem:[%s7 + $0x3c8] sm:$0xff]
    %v2011 = vld [vmem:[%s7 + $0x3d0] sm:$0xff]
    %v2012 = vld [vmem:[%s7 + $0x3d8] sm:$0xff]
    %v2013 = vld [vmem:[%s7 + $0x3e0] sm:$0xff]
    %v2014 = vld [vmem:[%s7 + $0x3e8] sm:$0xff]
    %v2015 = vld [vmem:[%s7 + $0x3f0] sm:$0xff]
    %v2016 = vld [vmem:[%s7 + $0x3f8] sm:$0xff]
    %v2017 = vld [vmem:[%s7 + $0x400] sm:$0xff]
    %v2018 = vld [vmem:[%s7 + $0x408] sm:$0xff]
    %v2019 = vld [vmem:[%s7 + $0x410] sm:$0xff]
    %v2020 = vld [vmem:[%s7 + $0x418] sm:$0xff]
    %v2021 = vld [vmem:[%s7 + $0x420] sm:$0xff]
    %v2022 = vld [vmem:[%s7 + $0x428] sm:$0xff]
    %v2023 = vld [vmem:[%s7 + $0x430] sm:$0xff]
    %v2024 = vld [vmem:[%s7 + $0x438] sm:$0xff]
    %v2025 = vld [vmem:[%s7 + $0x440] sm:$0xff]
    %v2026 = vld [vmem:[%s7 + $0x448] sm:$0xff]
    %v2027 = vld [vmem:[%s7 + $0x450] sm:$0xff]
    %v2028 = vld [vmem:[%s7 + $0x458] sm:$0xff]
    %v2029 = vld [vmem:[%s7 + $0x460] sm:$0xff]
    %v2030 = vld [vmem:[%s7 + $0x468] sm:$0xff]
    %v2031 = vld [vmem:[%s7 + $0x470] sm:$0xff]
    %v2032 = vld [vmem:[%s7 + $0x478] sm:$0xff]
    %v2033 = vld [vmem:[%s7 + $0x480] sm:$0xff]
    %v2034 = vld [vmem:[%s7 + $0x488] sm:$0xff]
    %v2035 = vld [vmem:[%s7 + $0x490] sm:$0xff]
    %v2036 = vld [vmem:[%s7 + $0x498] sm:$0xff]
    %v2037 = vld [vmem:[%s7 + $0x4a0] sm:$0xff]
    %v2038 = vld [vmem:[%s7 + $0x4a8] sm:$0xff]
    %v2039 = vld [vmem:[%s7 + $0x4b0] sm:$0xff]
    %v2040 = vld [vmem:[%s7 + $0x4b8] sm:$0xff]
    %v2041 = vld [vmem:[%s7 + $0x4c0] sm:$0xff]
    %v2042 = vld [vmem:[%s7 + $0x4c8] sm:$0xff]
    %v2043 = vld [vmem:[%s7 + $0x4d0] sm:$0xff]
    %v2044 = vld [vmem:[%s7 + $0x4d8] sm:$0xff]
    %v2045 = vld [vmem:[%s7 + $0x4e0] sm:$0xff]
    %v2046 = vld [vmem:[%s7 + $0x4e8] sm:$0xff]
    %v2047 = vld [vmem:[%s7 + $0x4f0] sm:$0xff]
    %v2048 = vld [vmem:[%s7 + $0x4f8] sm:$0xff]
    %v2049 = vld [vmem:[%s7 + $0x500] sm:$0xff]
    %v2050 = vld [vmem:[%s7 + $0x508] sm:$0xff]
    %v2051 = vld [vmem:[%s7 + $0x510] sm:$0xff]
    %v2052 = vld [vmem:[%s7 + $0x518] sm:$0xff]
    %v2053 = vld [vmem:[%s7 + $0x520] sm:$0xff]
    %v2054 = vld [vmem:[%s7 + $0x528] sm:$0xff]
    %v2055 = vld [vmem:[%s7 + $0x530] sm:$0xff]
    %v2056 = vld [vmem:[%s7 + $0x538] sm:$0xff]
    %vm2057 = vcmask 523264
    %v2059 = vsel %vm2057, %v1887, 0
    %2061 = vmatprep.subr.mxu0 %v1890
    %2062 = vmatpush1.msra.mxu0 %v1889
    %2063 = vmatprep.subr.mxu0 %v1897
    %2064 = vmatpush1.msra.mxu0 %v1896
    %2065 = vmatprep.subr.mxu0 %v1904
    %2066 = vmatpush1.msra.mxu0 %v1903
    %2067 = vmatprep.subr.mxu0 %v1911
    %2068 = vmatpush1.msra.mxu0 %v1910
    %2069 = vmatprep.subr.mxu0 %v1918
    %2070 = vmatpush1.msra.mxu0 %v1917
    %2071 = vmatprep.subr.mxu0 %v1925
    %2072 = vmatpush1.msra.mxu0 %v1924
    %2073 = vmatprep.subr.mxu0 %v1932
    %2074 = vmatpush1.msra.mxu0 %v1931
    %2075 = vmatprep.subr.mxu0 %v1939
    %2076 = vmatpush1.msra.mxu0 %v1938
    %2077 = vmatprep.subr.mxu0 %v1946
    %2078 = vmatpush1.msra.mxu0 %v1945
    %2079 = vmatprep.subr.mxu0 %v1953
    %2080 = vmatpush1.msra.mxu0 %v1952
    %2081 = vmatprep.subr.mxu0 %v1960
    %2082 = vmatpush1.msra.mxu0 %v1959
    %2083 = vmatprep.subr.mxu0 %v1967
    %2084 = vmatpush1.msra.mxu0 %v1966
    %2085 = vmatprep.subr.mxu0 %v1974
    %2086 = vmatpush1.msra.mxu0 %v1973
    %2087 = vmatprep.subr.mxu0 %v1981
    %2088 = vmatpush1.msra.mxu0 %v1980
    %2089 = vmatprep.subr.mxu0 %v1988
    %2090 = vmatpush1.msra.mxu0 %v1987
    %2091 = vmatprep.subr.mxu0 %v1995
    %2092 = vmatpush1.msra.mxu0 %v1994
    %2093 = vmatprep.subr.mxu0 %v2002
    %2094 = vmatpush1.msra.mxu0 %v2001
    %2095 = vmatprep.subr.mxu0 %v2009
    %2096 = vmatpush1.msra.mxu0 %v2008
    %2097 = vmatprep.subr.mxu0 %v2016
    %2098 = vmatpush1.msra.mxu0 %v2015
    %2099 = vmatprep.subr.mxu0 %v2023
    %2100 = vmatpush1.msra.mxu0 %v2022
    %2101 = vmatprep.subr.mxu0 %v2030
    %2102 = vmatpush1.msra.mxu0 %v2029
    %2103 = vmatprep.subr.mxu0 %v2037
    %2104 = vmatpush1.msra.mxu0 %v2036
    %2105 = vmatprep.subr.mxu0 %v2044
    %2106 = vmatpush1.msra.mxu0 %v2043
    %2107 = vmatprep.subr.mxu0 %v2051
    %2108 = vmatpush1.msra.mxu0 %v2050
    %2109 = vmatprep.subr.mxu0 0.0
    %2110 = vmatpush1.msra.mxu0 0.0
    %2111 = vmatprep.subr.mxu0 0.0
    %2112 = vmatpush1.msra.mxu0 0.0
    %2113 = vmatprep.subr.mxu0 0.0
    %2114 = vmatpush1.msra.mxu0 0.0
    %2115 = vmatprep.subr.mxu0 0.0
    %2116 = vmatpush1.msra.mxu0 0.0
    %2117 = vmatprep.subr.mxu0 0.0
    %2118 = vmatpush1.msra.mxu0 0.0
    %2119 = vmatprep.subr.mxu0 0.0
    %2120 = vmatpush1.msra.mxu0 0.0
    %2121 = vmatprep.subr.mxu0 0.0
    %2122 = vmatpush1.msra.mxu0 0.0
    %2123 = vmatprep.subr.mxu0 0.0
    %2124 = vmatpush1.msra.mxu0 0.0
    %2125 = vmatprep.mubr.f32.mxu0 %v2059
    %2126 = vmatmul.mubr.f32.gmra.mrb[0].mxu0 %v1886
    %v2127 = vpop.f32.mrb[0].mxu0
    %v2128 = vadd.f32 0.0, %v2127
    %v2129 = vpop.f32.mrb[0].mxu0
    %v2130 = vadd.f32 0.0, %v2129
    %2131 = vdwg.mxu0
    %2132 = vmatprep.subr.mxu0 %v1892
    %2133 = vmatpush1.msra.mxu0 %v1891
    %2134 = vmatprep.subr.mxu0 %v1899
    %2135 = vmatpush1.msra.mxu0 %v1898
    %2136 = vmatprep.subr.mxu0 %v1906
    %2137 = vmatpush1.msra.mxu0 %v1905
    %2138 = vmatprep.subr.mxu0 %v1913
    %2139 = vmatpush1.msra.mxu0 %v1912
    %2140 = vmatprep.subr.mxu0 %v1920
    %2141 = vmatpush1.msra.mxu0 %v1919
    %2142 = vmatprep.subr.mxu0 %v1927
    %2143 = vmatpush1.msra.mxu0 %v1926
    %2144 = vmatprep.subr.mxu0 %v1934
    %2145 = vmatpush1.msra.mxu0 %v1933
    %2146 = vmatprep.subr.mxu0 %v1941
    %2147 = vmatpush1.msra.mxu0 %v1940
    %2148 = vmatprep.subr.mxu0 %v1948
    %2149 = vmatpush1.msra.mxu0 %v1947
    %2150 = vmatprep.subr.mxu0 %v1955
    %2151 = vmatpush1.msra.mxu0 %v1954
    %2152 = vmatprep.subr.mxu0 %v1962
    %2153 = vmatpush1.msra.mxu0 %v1961
    %2154 = vmatprep.subr.mxu0 %v1969
    %2155 = vmatpush1.msra.mxu0 %v1968
    %2156 = vmatprep.subr.mxu0 %v1976
    %2157 = vmatpush1.msra.mxu0 %v1975
    %2158 = vmatprep.subr.mxu0 %v1983
    %2159 = vmatpush1.msra.mxu0 %v1982
    %2160 = vmatprep.subr.mxu0 %v1990
    %2161 = vmatpush1.msra.mxu0 %v1989
    %2162 = vmatprep.subr.mxu0 %v1997
    %2163 = vmatpush1.msra.mxu0 %v1996
    %2164 = vmatprep.subr.mxu0 %v2004
    %2165 = vmatpush1.msra.mxu0 %v2003
    %2166 = vmatprep.subr.mxu0 %v2011
    %2167 = vmatpush1.msra.mxu0 %v2010
    %2168 = vmatprep.subr.mxu0 %v2018
    %2169 = vmatpush1.msra.mxu0 %v2017
    %2170 = vmatprep.subr.mxu0 %v2025
    %2171 = vmatpush1.msra.mxu0 %v2024
    %2172 = vmatprep.subr.mxu0 %v2032
    %2173 = vmatpush1.msra.mxu0 %v2031
    %2174 = vmatprep.subr.mxu0 %v2039
    %2175 = vmatpush1.msra.mxu0 %v2038
    %2176 = vmatprep.subr.mxu0 %v2046
    %2177 = vmatpush1.msra.mxu0 %v2045
    %2178 = vmatprep.subr.mxu0 %v2053
    %2179 = vmatpush1.msra.mxu0 %v2052
    %2180 = vmatprep.subr.mxu0 0.0
    %2181 = vmatpush1.msra.mxu0 0.0
    %2182 = vmatprep.subr.mxu0 0.0
    %2183 = vmatpush1.msra.mxu0 0.0
    %2184 = vmatprep.subr.mxu0 0.0
    %2185 = vmatpush1.msra.mxu0 0.0
    %2186 = vmatprep.subr.mxu0 0.0
    %2187 = vmatpush1.msra.mxu0 0.0
    %2188 = vmatprep.subr.mxu0 0.0
    %2189 = vmatpush1.msra.mxu0 0.0
    %2190 = vmatprep.subr.mxu0 0.0
    %2191 = vmatpush1.msra.mxu0 0.0
    %2192 = vmatprep.subr.mxu0 0.0
    %2193 = vmatpush1.msra.mxu0 0.0
    %2194 = vmatprep.subr.mxu0 0.0
    %2195 = vmatpush1.msra.mxu0 0.0
    %2196 = vmatprep.mubr.f32.mxu0 %v2059
    %2197 = vmatmul.mubr.f32.gmra.mrb[0].mxu0 %v1886
    %v2198 = vpop.f32.mrb[0].mxu0
    %v2199 = vadd.f32 0.0, %v2198
    %v2200 = vpop.f32.mrb[0].mxu0
    %v2201 = vadd.f32 0.0, %v2200
    %2202 = vdwg.mxu0
    %2203 = vmatprep.subr.mxu0 %v1894
    %2204 = vmatpush1.msra.mxu0 %v1893
    %2205 = vmatprep.subr.mxu0 %v1901
    %2206 = vmatpush1.msra.mxu0 %v1900
    %2207 = vmatprep.subr.mxu0 %v1908
    %2208 = vmatpush1.msra.mxu0 %v1907
    %2209 = vmatprep.subr.mxu0 %v1915
    %2210 = vmatpush1.msra.mxu0 %v1914
    %2211 = vmatprep.subr.mxu0 %v1922
    %2212 = vmatpush1.msra.mxu0 %v1921
    %2213 = vmatprep.subr.mxu0 %v1929
    %2214 = vmatpush1.msra.mxu0 %v1928
    %2215 = vmatprep.subr.mxu0 %v1936
    %2216 = vmatpush1.msra.mxu0 %v1935
    %2217 = vmatprep.subr.mxu0 %v1943
    %2218 = vmatpush1.msra.mxu0 %v1942
    %2219 = vmatprep.subr.mxu0 %v1950
    %2220 = vmatpush1.msra.mxu0 %v1949
    %2221 = vmatprep.subr.mxu0 %v1957
    %2222 = vmatpush1.msra.mxu0 %v1956
    %2223 = vmatprep.subr.mxu0 %v1964
    %2224 = vmatpush1.msra.mxu0 %v1963
    %2225 = vmatprep.subr.mxu0 %v1971
    %2226 = vmatpush1.msra.mxu0 %v1970
    %2227 = vmatprep.subr.mxu0 %v1978
    %2228 = vmatpush1.msra.mxu0 %v1977
    %2229 = vmatprep.subr.mxu0 %v1985
    %2230 = vmatpush1.msra.mxu0 %v1984
    %2231 = vmatprep.subr.mxu0 %v1992
    %2232 = vmatpush1.msra.mxu0 %v1991
    %2233 = vmatprep.subr.mxu0 %v1999
    %2234 = vmatpush1.msra.mxu0 %v1998
    %2235 = vmatprep.subr.mxu0 %v2006
    %2236 = vmatpush1.msra.mxu0 %v2005
    %2237 = vmatprep.subr.mxu0 %v2013
    %2238 = vmatpush1.msra.mxu0 %v2012
    %2239 = vmatprep.subr.mxu0 %v2020
    %2240 = vmatpush1.msra.mxu0 %v2019
    %2241 = vmatprep.subr.mxu0 %v2027
    %2242 = vmatpush1.msra.mxu0 %v2026
    %2243 = vmatprep.subr.mxu0 %v2034
    %2244 = vmatpush1.msra.mxu0 %v2033
    %2245 = vmatprep.subr.mxu0 %v2041
    %2246 = vmatpush1.msra.mxu0 %v2040
    %2247 = vmatprep.subr.mxu0 %v2048
    %2248 = vmatpush1.msra.mxu0 %v2047
    %2249 = vmatprep.subr.mxu0 %v2055
    %2250 = vmatpush1.msra.mxu0 %v2054
    %2251 = vmatprep.subr.mxu0 0.0
    %2252 = vmatpush1.msra.mxu0 0.0
    %2253 = vmatprep.subr.mxu0 0.0
    %2254 = vmatpush1.msra.mxu0 0.0
    %2255 = vmatprep.subr.mxu0 0.0
    %2256 = vmatpush1.msra.mxu0 0.0
    %2257 = vmatprep.subr.mxu0 0.0
    %2258 = vmatpush1.msra.mxu0 0.0
    %2259 = vmatprep.subr.mxu0 0.0
    %2260 = vmatpush1.msra.mxu0 0.0
    %2261 = vmatprep.subr.mxu0 0.0
    %2262 = vmatpush1.msra.mxu0 0.0
    %2263 = vmatprep.subr.mxu0 0.0
    %2264 = vmatpush1.msra.mxu0 0.0
    %2265 = vmatprep.subr.mxu0 0.0
    %2266 = vmatpush1.msra.mxu0 0.0
    %2267 = vmatprep.mubr.f32.mxu0 %v2059
    %2268 = vmatmul.mubr.f32.gmra.mrb[0].mxu0 %v1886
    %v2269 = vpop.f32.mrb[0].mxu0
    %v2270 = vadd.f32 0.0, %v2269
    %v2271 = vpop.f32.mrb[0].mxu0
    %v2272 = vadd.f32 0.0, %v2271
    %2273 = vdwg.mxu0
    %2274 = vmatprep.subr.mxu0 0.0
    %2275 = vmatpush1.msra.mxu0 %v1895
    %2276 = vmatprep.subr.mxu0 0.0
    %2277 = vmatpush1.msra.mxu0 %v1902
    %2278 = vmatprep.subr.mxu0 0.0
    %2279 = vmatpush1.msra.mxu0 %v1909
    %2280 = vmatprep.subr.mxu0 0.0
    %2281 = vmatpush1.msra.mxu0 %v1916
    %2282 = vmatprep.subr.mxu0 0.0
    %2283 = vmatpush1.msra.mxu0 %v1923
    %2284 = vmatprep.subr.mxu0 0.0
    %2285 = vmatpush1.msra.mxu0 %v1930
    %2286 = vmatprep.subr.mxu0 0.0
    %2287 = vmatpush1.msra.mxu0 %v1937
    %2288 = vmatprep.subr.mxu0 0.0
    %2289 = vmatpush1.msra.mxu0 %v1944
    %2290 = vmatprep.subr.mxu0 0.0
    %2291 = vmatpush1.msra.mxu0 %v1951
    %2292 = vmatprep.subr.mxu0 0.0
    %2293 = vmatpush1.msra.mxu0 %v1958
    %2294 = vmatprep.subr.mxu0 0.0
    %2295 = vmatpush1.msra.mxu0 %v1965
    %2296 = vmatprep.subr.mxu0 0.0
    %2297 = vmatpush1.msra.mxu0 %v1972
    %2298 = vmatprep.subr.mxu0 0.0
    %2299 = vmatpush1.msra.mxu0 %v1979
    %2300 = vmatprep.subr.mxu0 0.0
    %2301 = vmatpush1.msra.mxu0 %v1986
    %2302 = vmatprep.subr.mxu0 0.0
    %2303 = vmatpush1.msra.mxu0 %v1993
    %2304 = vmatprep.subr.mxu0 0.0
    %2305 = vmatpush1.msra.mxu0 %v2000
    %2306 = vmatprep.subr.mxu0 0.0
    %2307 = vmatpush1.msra.mxu0 %v2007
    %2308 = vmatprep.subr.mxu0 0.0
    %2309 = vmatpush1.msra.mxu0 %v2014
    %2310 = vmatprep.subr.mxu0 0.0
    %2311 = vmatpush1.msra.mxu0 %v2021
    %2312 = vmatprep.subr.mxu0 0.0
    %2313 = vmatpush1.msra.mxu0 %v2028
    %2314 = vmatprep.subr.mxu0 0.0
    %2315 = vmatpush1.msra.mxu0 %v2035
    %2316 = vmatprep.subr.mxu0 0.0
    %2317 = vmatpush1.msra.mxu0 %v2042
    %2318 = vmatprep.subr.mxu0 0.0
    %2319 = vmatpush1.msra.mxu0 %v2049
    %2320 = vmatprep.subr.mxu0 0.0
    %2321 = vmatpush1.msra.mxu0 %v2056
    %2322 = vmatprep.subr.mxu0 0.0
    %2323 = vmatpush1.msra.mxu0 0.0
    %2324 = vmatprep.subr.mxu0 0.0
    %2325 = vmatpush1.msra.mxu0 0.0
    %2326 = vmatprep.subr.mxu0 0.0
    %2327 = vmatpush1.msra.mxu0 0.0
    %2328 = vmatprep.subr.mxu0 0.0
    %2329 = vmatpush1.msra.mxu0 0.0
    %2330 = vmatprep.subr.mxu0 0.0
    %2331 = vmatpush1.msra.mxu0 0.0
    %2332 = vmatprep.subr.mxu0 0.0
    %2333 = vmatpush1.msra.mxu0 0.0
    %2334 = vmatprep.subr.mxu0 0.0
    %2335 = vmatpush1.msra.mxu0 0.0
    %2336 = vmatprep.subr.mxu0 0.0
    %2337 = vmatpush1.msra.mxu0 0.0
    %2338 = vmatprep.mubr.f32.mxu0 %v2059
    %2339 = vmatmul.mubr.f32.gmra.mrb[0].mxu0 %v1886
    %v2340 = vpop.f32.mrb[0].mxu0
    %v2341 = vadd.f32 0.0, %v2340
    %v2342 = vpop.f32.mrb[0].mxu0
    %2343 = vdwg.mxu0
    %v2351 = vcombine.low %v2128, %v2130
    %v2352 = vcombine.low %v2199, %v2201
    %v2353 = vcombine.low %v2270, %v2272
    %v2355 = vunpack.c.l.s4 1966171168
    %v2356 = vunpack.c.0.s8 %v2355
    %v2357 = vlaneseq
    %v2358 = vshrl.u32 %v2357, 7
    %v2359 = vsub.s32 %v2356, %v2358
    %v2360 = vrot.slane %v2351, %v2359
    %v2362 = vunpack.c.l.s4 1966171168
    %v2363 = vunpack.c.0.s8 %v2362
    %v2364 = vlaneseq
    %v2365 = vshrl.u32 %v2364, 7
    %v2366 = vsub.s32 %v2363, %v2365
    %v2367 = vrot.slane %v2352, %v2366
    %v2369 = vunpack.c.l.s4 1966171168
    %v2370 = vunpack.c.0.s8 %v2369
    %v2371 = vlaneseq
    %v2372 = vshrl.u32 %v2371, 7
    %v2373 = vsub.s32 %v2370, %v2372
    %v2374 = vrot.slane %v2353, %v2373
    %v2376 = vunpack.c.l.s4 1966171168
    %v2377 = vunpack.c.0.s8 %v2376
    %v2378 = vlaneseq
    %v2379 = vshrl.u32 %v2378, 7
    %v2380 = vsub.s32 %v2377, %v2379
    %v2381 = vrot.slane %v2341, %v2380
    %v2382 = vcombine.low %v2360, %v2367
    %v2383 = vcombine.low %v2374, %v2381
    %v2385 = vunpack.c.l.s4 1966171168
    %v2386 = vunpack.c.0.s8 %v2385
    %v2387 = vlaneseq
    %v2388 = vshrl.u32 %v2387, 7
    %v2389 = vsub.s32 %v2386, %v2388
    %v2390 = vrot.slane %v2382, %v2389
    %v2392 = vunpack.c.l.s4 1966171168
    %v2393 = vunpack.c.0.s8 %v2392
    %v2394 = vlaneseq
    %v2395 = vshrl.u32 %v2394, 7
    %v2396 = vsub.s32 %v2393, %v2395
    %v2397 = vrot.slane %v2383, %v2396
    %v2398 = vcombine.low %v2390, %v2397
    %v2400 = vadd.f32 %v1888, %v2398
    %v2401 = vld [vmem:[%s7 + $0x540] sm:$0xff]
    %v2402 = vld [vmem:[%s7 + $0x548] sm:$0xff]
    %v2403 = vld [vmem:[%s7 + $0x550] sm:$0xff]
    %v2404 = vld [vmem:[%s7 + $0x558] sm:$0xff]
    %v2405 = vld [vmem:[%s7 + $0x560] sm:$0xff]
    %v2406 = vld [vmem:[%s7 + $0x568] sm:$0xff]
    %v2407 = vld [vmem:[%s7 + $0x570] sm:$0xff]
    %v2408 = vld [vmem:[%s7 + $0x578] sm:$0xff]
    %v2409 = vld [vmem:[%s7 + $0x580] sm:$0xff]
    %v2410 = vld [vmem:[%s7 + $0x588] sm:$0xff]
    %v2411 = vld [vmem:[%s7 + $0x590] sm:$0xff]
    %v2412 = vld [vmem:[%s7 + $0x598] sm:$0xff]
    %v2413 = vld [vmem:[%s7 + $0x5a0] sm:$0xff]
    %v2414 = vld [vmem:[%s7 + $0x5a8] sm:$0xff]
    %v2415 = vld [vmem:[%s7 + $0x5b0] sm:$0xff]
    %v2416 = vld [vmem:[%s7 + $0x5b8] sm:$0xff]
    %v2417 = vld [vmem:[%s7 + $0x5c0] sm:$0xff]
    %v2418 = vld [vmem:[%s7 + $0x5c8] sm:$0xff]
    %v2419 = vld [vmem:[%s7 + $0x5d0] sm:$0xff]
    %v2420 = vld [vmem:[%s7 + $0x5d8] sm:$0xff]
    %v2421 = vld [vmem:[%s7 + $0x5e0] sm:$0xff]
    %v2422 = vld [vmem:[%s7 + $0x5e8] sm:$0xff]
    %v2423 = vld [vmem:[%s7 + $0x5f0] sm:$0xff]
    %v2424 = vld [vmem:[%s7 + $0x5f8] sm:$0xff]
    %v2425 = vld [vmem:[%s7 + $0x600] sm:$0xff]
    %v2426 = vld [vmem:[%s7 + $0x608] sm:$0xff]
    %v2427 = vld [vmem:[%s7 + $0x610] sm:$0xff]
    %v2428 = vld [vmem:[%s7 + $0x618] sm:$0xff]
    %v2429 = vld [vmem:[%s7 + $0x620] sm:$0xff]
    %v2430 = vld [vmem:[%s7 + $0x628] sm:$0xff]
    %v2431 = vld [vmem:[%s7 + $0x630] sm:$0xff]
    %v2432 = vld [vmem:[%s7 + $0x638] sm:$0xff]
    %v2433 = vld [vmem:[%s7 + $0x640] sm:$0xff]
    %v2434 = vld [vmem:[%s7 + $0x648] sm:$0xff]
    %v2435 = vld [vmem:[%s7 + $0x650] sm:$0xff]
    %v2436 = vld [vmem:[%s7 + $0x658] sm:$0xff]
    %v2437 = vld [vmem:[%s7 + $0x660] sm:$0xff]
    %v2438 = vld [vmem:[%s7 + $0x668] sm:$0xff]
    %v2439 = vld [vmem:[%s7 + $0x670] sm:$0xff]
    %v2440 = vld [vmem:[%s7 + $0x678] sm:$0xff]
    %v2441 = vld [vmem:[%s7 + $0x680] sm:$0xff]
    %v2442 = vld [vmem:[%s7 + $0x688] sm:$0xff]
    %v2443 = vld [vmem:[%s7 + $0x690] sm:$0xff]
    %v2444 = vld [vmem:[%s7 + $0x698] sm:$0xff]
    %v2445 = vld [vmem:[%s7 + $0x6a0] sm:$0xff]
    %v2446 = vld [vmem:[%s7 + $0x6a8] sm:$0xff]
    %v2447 = vld [vmem:[%s7 + $0x6b0] sm:$0xff]
    %v2448 = vld [vmem:[%s7 + $0x6b8] sm:$0xff]
    %v2449 = vld [vmem:[%s7 + $0x6c0] sm:$0xff]
    %v2450 = vld [vmem:[%s7 + $0x6c8] sm:$0xff]
    %v2451 = vld [vmem:[%s7 + $0x6d0] sm:$0xff]
    %v2452 = vld [vmem:[%s7 + $0x6d8] sm:$0xff]
    %v2453 = vld [vmem:[%s7 + $0x6e0] sm:$0xff]
    %v2454 = vld [vmem:[%s7 + $0x6e8] sm:$0xff]
    %v2455 = vld [vmem:[%s7 + $0x6f0] sm:$0xff]
    %v2456 = vld [vmem:[%s7 + $0x6f8] sm:$0xff]
    %v2457 = vld [vmem:[%s7 + $0x700] sm:$0xff]
    %v2458 = vld [vmem:[%s7 + $0x708] sm:$0xff]
    %v2459 = vld [vmem:[%s7 + $0x710] sm:$0xff]
    %v2460 = vld [vmem:[%s7 + $0x718] sm:$0xff]
    %v2461 = vld [vmem:[%s7 + $0x720] sm:$0xff]
    %v2462 = vld [vmem:[%s7 + $0x728] sm:$0xff]
    %v2463 = vld [vmem:[%s7 + $0x730] sm:$0xff]
    %v2464 = vld [vmem:[%s7 + $0x738] sm:$0xff]
    %v2465 = vld [vmem:[%s7 + $0x740] sm:$0xff]
    %v2466 = vld [vmem:[%s7 + $0x748] sm:$0xff]
    %v2467 = vld [vmem:[%s7 + $0x750] sm:$0xff]
    %v2468 = vld [vmem:[%s7 + $0x758] sm:$0xff]
    %v2469 = vld [vmem:[%s7 + $0x760] sm:$0xff]
    %v2470 = vld [vmem:[%s7 + $0x768] sm:$0xff]
    %v2471 = vld [vmem:[%s7 + $0x770] sm:$0xff]
    %v2472 = vld [vmem:[%s7 + $0x778] sm:$0xff]
    %v2473 = vld [vmem:[%s7 + $0x780] sm:$0xff]
    %v2474 = vld [vmem:[%s7 + $0x788] sm:$0xff]
    %v2475 = vld [vmem:[%s7 + $0x790] sm:$0xff]
    %v2476 = vld [vmem:[%s7 + $0x798] sm:$0xff]
    %v2477 = vld [vmem:[%s7 + $0x7a0] sm:$0xff]
    %v2478 = vld [vmem:[%s7 + $0x7a8] sm:$0xff]
    %v2479 = vld [vmem:[%s7 + $0x7b0] sm:$0xff]
    %v2480 = vld [vmem:[%s7 + $0x7b8] sm:$0xff]
    %v2481 = vld [vmem:[%s7 + $0x7c0] sm:$0xff]
    %v2482 = vld [vmem:[%s7 + $0x7c8] sm:$0xff]
    %v2483 = vld [vmem:[%s7 + $0x7d0] sm:$0xff]
    %v2484 = vld [vmem:[%s7 + $0x7d8] sm:$0xff]
    %v2485 = vld [vmem:[%s7 + $0x7e0] sm:$0xff]
    %v2486 = vld [vmem:[%s7 + $0x7e8] sm:$0xff]
    %v2487 = vld [vmem:[%s7 + $0x7f0] sm:$0xff]
    %v2488 = vld [vmem:[%s7 + $0x7f8] sm:$0xff]
    %v2489 = vld [vmem:[%s7 + $0x800] sm:$0xff]
    %v2490 = vld [vmem:[%s7 + $0x808] sm:$0xff]
    %v2491 = vld [vmem:[%s7 + $0x810] sm:$0xff]
    %v2492 = vld [vmem:[%s7 + $0x818] sm:$0xff]
    %v2493 = vld [vmem:[%s7 + $0x820] sm:$0xff]
    %v2494 = vld [vmem:[%s7 + $0x828] sm:$0xff]
    %v2495 = vld [vmem:[%s7 + $0x830] sm:$0xff]
    %v2496 = vld [vmem:[%s7 + $0x838] sm:$0xff]
    %v2497 = vld [vmem:[%s7 + $0x840] sm:$0xff]
    %v2498 = vld [vmem:[%s7 + $0x848] sm:$0xff]
    %v2499 = vld [vmem:[%s7 + $0x850] sm:$0xff]
    %v2500 = vld [vmem:[%s7 + $0x858] sm:$0xff]
    %v2501 = vld [vmem:[%s7 + $0x860] sm:$0xff]
    %v2502 = vld [vmem:[%s7 + $0x868] sm:$0xff]
    %v2503 = vld [vmem:[%s7 + $0x870] sm:$0xff]
    %v2504 = vld [vmem:[%s7 + $0x878] sm:$0xff]
    %v2505 = vld [vmem:[%s7 + $0x880] sm:$0xff]
    %v2506 = vld [vmem:[%s7 + $0x888] sm:$0xff]
    %v2507 = vld [vmem:[%s7 + $0x890] sm:$0xff]
    %v2508 = vld [vmem:[%s7 + $0x898] sm:$0xff]
    %v2509 = vld [vmem:[%s7 + $0x8a0] sm:$0xff]
    %v2510 = vld [vmem:[%s7 + $0x8a8] sm:$0xff]
    %v2511 = vld [vmem:[%s7 + $0x8b0] sm:$0xff]
    %v2512 = vld [vmem:[%s7 + $0x8b8] sm:$0xff]
    %v2513 = vld [vmem:[%s7 + $0x8c0] sm:$0xff]
    %v2514 = vld [vmem:[%s7 + $0x8c8] sm:$0xff]
    %v2515 = vld [vmem:[%s7 + $0x8d0] sm:$0xff]
    %v2516 = vld [vmem:[%s7 + $0x8d8] sm:$0xff]
    %v2517 = vld [vmem:[%s7 + $0x8e0] sm:$0xff]
    %v2518 = vld [vmem:[%s7 + $0x8e8] sm:$0xff]
    %v2519 = vld [vmem:[%s7 + $0x8f0] sm:$0xff]
    %v2520 = vld [vmem:[%s7 + $0x8f8] sm:$0xff]
    %v2521 = vld [vmem:[%s7 + $0x900] sm:$0xff]
    %v2522 = vld [vmem:[%s7 + $0x908] sm:$0xff]
    %v2523 = vld [vmem:[%s7 + $0x910] sm:$0xff]
    %v2524 = vld [vmem:[%s7 + $0x918] sm:$0xff]
    %v2525 = vld [vmem:[%s7 + $0x920] sm:$0xff]
    %v2526 = vld [vmem:[%s7 + $0x928] sm:$0xff]
    %v2527 = vld [vmem:[%s7 + $0x930] sm:$0xff]
    %v2528 = vld [vmem:[%s7 + $0x938] sm:$0xff]
    %v2529 = vld [vmem:[%s7 + $0x940] sm:$0xff]
    %v2530 = vld [vmem:[%s7 + $0x948] sm:$0xff]
    %v2531 = vld [vmem:[%s7 + $0x950] sm:$0xff]
    %v2532 = vld [vmem:[%s7 + $0x958] sm:$0xff]
    %v2533 = vld [vmem:[%s7 + $0x960] sm:$0xff]
    %v2534 = vld [vmem:[%s7 + $0x968] sm:$0xff]
    %v2535 = vld [vmem:[%s7 + $0x970] sm:$0xff]
    %v2536 = vld [vmem:[%s7 + $0x978] sm:$0xff]
    %v2537 = vld [vmem:[%s7 + $0x980] sm:$0xff]
    %v2538 = vld [vmem:[%s7 + $0x988] sm:$0xff]
    %v2539 = vld [vmem:[%s7 + $0x990] sm:$0xff]
    %v2540 = vld [vmem:[%s7 + $0x998] sm:$0xff]
    %v2541 = vld [vmem:[%s7 + $0x9a0] sm:$0xff]
    %v2542 = vld [vmem:[%s7 + $0x9a8] sm:$0xff]
    %v2543 = vld [vmem:[%s7 + $0x9b0] sm:$0xff]
    %v2544 = vld [vmem:[%s7 + $0x9b8] sm:$0xff]
    %v2545 = vld [vmem:[%s7 + $0x9c0] sm:$0xff]
    %v2546 = vld [vmem:[%s7 + $0x9c8] sm:$0xff]
    %v2547 = vld [vmem:[%s7 + $0x9d0] sm:$0xff]
    %v2548 = vld [vmem:[%s7 + $0x9d8] sm:$0xff]
    %v2549 = vld [vmem:[%s7 + $0x9e0] sm:$0xff]
    %v2550 = vld [vmem:[%s7 + $0x9e8] sm:$0xff]
    %v2551 = vld [vmem:[%s7 + $0x9f0] sm:$0xff]
    %v2552 = vld [vmem:[%s7 + $0x9f8] sm:$0xff]
    %v2553 = vld [vmem:[%s7 + $0xa00] sm:$0xff]
    %v2554 = vld [vmem:[%s7 + $0xa08] sm:$0xff]
    %v2555 = vld [vmem:[%s7 + $0xa10] sm:$0xff]
    %v2556 = vld [vmem:[%s7 + $0xa18] sm:$0xff]
    %v2557 = vld [vmem:[%s7 + $0xa20] sm:$0xff]
    %v2558 = vld [vmem:[%s7 + $0xa28] sm:$0xff]
    %v2559 = vld [vmem:[%s7 + $0xa30] sm:$0xff]
    %v2560 = vld [vmem:[%s7 + $0xa38] sm:$0xff]
    %v2561 = vld [vmem:[%s7 + $0xa40] sm:$0xff]
    %v2562 = vld [vmem:[%s7 + $0xa48] sm:$0xff]
    %v2563 = vld [vmem:[%s7 + $0xa50] sm:$0xff]
    %v2564 = vld [vmem:[%s7 + $0xa58] sm:$0xff]
    %v2565 = vld [vmem:[%s7 + $0xa60] sm:$0xff]
    %v2566 = vld [vmem:[%s7 + $0xa68] sm:$0xff]
    %v2567 = vld [vmem:[%s7 + $0xa70] sm:$0xff]
    %v2568 = vld [vmem:[%s7 + $0xa78] sm:$0xff]
    %v2570 = vrot.slane %v1886, 1
    %v2571 = vrot.slane %v1887, 1
    %v2573 = vsel %vm2057, %v2571, 0
    %2575 = vmatprep.subr.mxu0 %v2402
    %2576 = vmatpush1.msra.mxu0 %v2401
    %2577 = vmatprep.subr.mxu0 %v2409
    %2578 = vmatpush1.msra.mxu0 %v2408
    %2579 = vmatprep.subr.mxu0 %v2416
    %2580 = vmatpush1.msra.mxu0 %v2415
    %2581 = vmatprep.subr.mxu0 %v2423
    %2582 = vmatpush1.msra.mxu0 %v2422
    %2583 = vmatprep.subr.mxu0 %v2430
    %2584 = vmatpush1.msra.mxu0 %v2429
    %2585 = vmatprep.subr.mxu0 %v2437
    %2586 = vmatpush1.msra.mxu0 %v2436
    %2587 = vmatprep.subr.mxu0 %v2444
    %2588 = vmatpush1.msra.mxu0 %v2443
    %2589 = vmatprep.subr.mxu0 %v2451
    %2590 = vmatpush1.msra.mxu0 %v2450
    %2591 = vmatprep.subr.mxu0 %v2458
    %2592 = vmatpush1.msra.mxu0 %v2457
    %2593 = vmatprep.subr.mxu0 %v2465
    %2594 = vmatpush1.msra.mxu0 %v2464
    %2595 = vmatprep.subr.mxu0 %v2472
    %2596 = vmatpush1.msra.mxu0 %v2471
    %2597 = vmatprep.subr.mxu0 %v2479
    %2598 = vmatpush1.msra.mxu0 %v2478
    %2599 = vmatprep.subr.mxu0 %v2486
    %2600 = vmatpush1.msra.mxu0 %v2485
    %2601 = vmatprep.subr.mxu0 %v2493
    %2602 = vmatpush1.msra.mxu0 %v2492
    %2603 = vmatprep.subr.mxu0 %v2500
    %2604 = vmatpush1.msra.mxu0 %v2499
    %2605 = vmatprep.subr.mxu0 %v2507
    %2606 = vmatpush1.msra.mxu0 %v2506
    %2607 = vmatprep.subr.mxu0 %v2514
    %2608 = vmatpush1.msra.mxu0 %v2513
    %2609 = vmatprep.subr.mxu0 %v2521
    %2610 = vmatpush1.msra.mxu0 %v2520
    %2611 = vmatprep.subr.mxu0 %v2528
    %2612 = vmatpush1.msra.mxu0 %v2527
    %2613 = vmatprep.subr.mxu0 %v2535
    %2614 = vmatpush1.msra.mxu0 %v2534
    %2615 = vmatprep.subr.mxu0 %v2542
    %2616 = vmatpush1.msra.mxu0 %v2541
    %2617 = vmatprep.subr.mxu0 %v2549
    %2618 = vmatpush1.msra.mxu0 %v2548
    %2619 = vmatprep.subr.mxu0 %v2556
    %2620 = vmatpush1.msra.mxu0 %v2555
    %2621 = vmatprep.subr.mxu0 %v2563
    %2622 = vmatpush1.msra.mxu0 %v2562
    %2623 = vmatprep.subr.mxu0 0.0
    %2624 = vmatpush1.msra.mxu0 0.0
    %2625 = vmatprep.subr.mxu0 0.0
    %2626 = vmatpush1.msra.mxu0 0.0
    %2627 = vmatprep.subr.mxu0 0.0
    %2628 = vmatpush1.msra.mxu0 0.0
    %2629 = vmatprep.subr.mxu0 0.0
    %2630 = vmatpush1.msra.mxu0 0.0
    %2631 = vmatprep.subr.mxu0 0.0
    %2632 = vmatpush1.msra.mxu0 0.0
    %2633 = vmatprep.subr.mxu0 0.0
    %2634 = vmatpush1.msra.mxu0 0.0
    %2635 = vmatprep.subr.mxu0 0.0
    %2636 = vmatpush1.msra.mxu0 0.0
    %2637 = vmatprep.subr.mxu0 0.0
    %2638 = vmatpush1.msra.mxu0 0.0
    %2639 = vmatprep.mubr.f32.mxu0 %v2573
    %2640 = vmatmul.mubr.f32.gmra.mrb[0].mxu0 %v2570
    %v2641 = vpop.f32.mrb[0].mxu0
    %v2642 = vadd.f32 0.0, %v2641
    %v2643 = vpop.f32.mrb[0].mxu0
    %v2644 = vadd.f32 0.0, %v2643
    %2645 = vdwg.mxu0
    %2646 = vmatprep.subr.mxu0 %v2404
    %2647 = vmatpush1.msra.mxu0 %v2403
    %2648 = vmatprep.subr.mxu0 %v2411
    %2649 = vmatpush1.msra.mxu0 %v2410
    %2650 = vmatprep.subr.mxu0 %v2418
    %2651 = vmatpush1.msra.mxu0 %v2417
    %2652 = vmatprep.subr.mxu0 %v2425
    %2653 = vmatpush1.msra.mxu0 %v2424
    %2654 = vmatprep.subr.mxu0 %v2432
    %2655 = vmatpush1.msra.mxu0 %v2431
    %2656 = vmatprep.subr.mxu0 %v2439
    %2657 = vmatpush1.msra.mxu0 %v2438
    %2658 = vmatprep.subr.mxu0 %v2446
    %2659 = vmatpush1.msra.mxu0 %v2445
    %2660 = vmatprep.subr.mxu0 %v2453
    %2661 = vmatpush1.msra.mxu0 %v2452
    %2662 = vmatprep.subr.mxu0 %v2460
    %2663 = vmatpush1.msra.mxu0 %v2459
    %2664 = vmatprep.subr.mxu0 %v2467
    %2665 = vmatpush1.msra.mxu0 %v2466
    %2666 = vmatprep.subr.mxu0 %v2474
    %2667 = vmatpush1.msra.mxu0 %v2473
    %2668 = vmatprep.subr.mxu0 %v2481
    %2669 = vmatpush1.msra.mxu0 %v2480
    %2670 = vmatprep.subr.mxu0 %v2488
    %2671 = vmatpush1.msra.mxu0 %v2487
    %2672 = vmatprep.subr.mxu0 %v2495
    %2673 = vmatpush1.msra.mxu0 %v2494
    %2674 = vmatprep.subr.mxu0 %v2502
    %2675 = vmatpush1.msra.mxu0 %v2501
    %2676 = vmatprep.subr.mxu0 %v2509
    %2677 = vmatpush1.msra.mxu0 %v2508
    %2678 = vmatprep.subr.mxu0 %v2516
    %2679 = vmatpush1.msra.mxu0 %v2515
    %2680 = vmatprep.subr.mxu0 %v2523
    %2681 = vmatpush1.msra.mxu0 %v2522
    %2682 = vmatprep.subr.mxu0 %v2530
    %2683 = vmatpush1.msra.mxu0 %v2529
    %2684 = vmatprep.subr.mxu0 %v2537
    %2685 = vmatpush1.msra.mxu0 %v2536
    %2686 = vmatprep.subr.mxu0 %v2544
    %2687 = vmatpush1.msra.mxu0 %v2543
    %2688 = vmatprep.subr.mxu0 %v2551
    %2689 = vmatpush1.msra.mxu0 %v2550
    %2690 = vmatprep.subr.mxu0 %v2558
    %2691 = vmatpush1.msra.mxu0 %v2557
    %2692 = vmatprep.subr.mxu0 %v2565
    %2693 = vmatpush1.msra.mxu0 %v2564
    %2694 = vmatprep.subr.mxu0 0.0
    %2695 = vmatpush1.msra.mxu0 0.0
    %2696 = vmatprep.subr.mxu0 0.0
    %2697 = vmatpush1.msra.mxu0 0.0
    %2698 = vmatprep.subr.mxu0 0.0
    %2699 = vmatpush1.msra.mxu0 0.0
    %2700 = vmatprep.subr.mxu0 0.0
    %2701 = vmatpush1.msra.mxu0 0.0
    %2702 = vmatprep.subr.mxu0 0.0
    %2703 = vmatpush1.msra.mxu0 0.0
    %2704 = vmatprep.subr.mxu0 0.0
    %2705 = vmatpush1.msra.mxu0 0.0
    %2706 = vmatprep.subr.mxu0 0.0
    %2707 = vmatpush1.msra.mxu0 0.0
    %2708 = vmatprep.subr.mxu0 0.0
    %2709 = vmatpush1.msra.mxu0 0.0
    %2710 = vmatprep.mubr.f32.mxu0 %v2573
    %2711 = vmatmul.mubr.f32.gmra.mrb[0].mxu0 %v2570
    %v2712 = vpop.f32.mrb[0].mxu0
    %v2713 = vadd.f32 0.0, %v2712
    %v2714 = vpop.f32.mrb[0].mxu0
    %v2715 = vadd.f32 0.0, %v2714
    %2716 = vdwg.mxu0
    %2717 = vmatprep.subr.mxu0 %v2406
    %2718 = vmatpush1.msra.mxu0 %v2405
    %2719 = vmatprep.subr.mxu0 %v2413
    %2720 = vmatpush1.msra.mxu0 %v2412
    %2721 = vmatprep.subr.mxu0 %v2420
    %2722 = vmatpush1.msra.mxu0 %v2419
    %2723 = vmatprep.subr.mxu0 %v2427
    %2724 = vmatpush1.msra.mxu0 %v2426
    %2725 = vmatprep.subr.mxu0 %v2434
    %2726 = vmatpush1.msra.mxu0 %v2433
    %2727 = vmatprep.subr.mxu0 %v2441
    %2728 = vmatpush1.msra.mxu0 %v2440
    %2729 = vmatprep.subr.mxu0 %v2448
    %2730 = vmatpush1.msra.mxu0 %v2447
    %2731 = vmatprep.subr.mxu0 %v2455
    %2732 = vmatpush1.msra.mxu0 %v2454
    %2733 = vmatprep.subr.mxu0 %v2462
    %2734 = vmatpush1.msra.mxu0 %v2461
    %2735 = vmatprep.subr.mxu0 %v2469
    %2736 = vmatpush1.msra.mxu0 %v2468
    %2737 = vmatprep.subr.mxu0 %v2476
    %2738 = vmatpush1.msra.mxu0 %v2475
    %2739 = vmatprep.subr.mxu0 %v2483
    %2740 = vmatpush1.msra.mxu0 %v2482
    %2741 = vmatprep.subr.mxu0 %v2490
    %2742 = vmatpush1.msra.mxu0 %v2489
    %2743 = vmatprep.subr.mxu0 %v2497
    %2744 = vmatpush1.msra.mxu0 %v2496
    %2745 = vmatprep.subr.mxu0 %v2504
    %2746 = vmatpush1.msra.mxu0 %v2503
    %2747 = vmatprep.subr.mxu0 %v2511
    %2748 = vmatpush1.msra.mxu0 %v2510
    %2749 = vmatprep.subr.mxu0 %v2518
    %2750 = vmatpush1.msra.mxu0 %v2517
    %2751 = vmatprep.subr.mxu0 %v2525
    %2752 = vmatpush1.msra.mxu0 %v2524
    %2753 = vmatprep.subr.mxu0 %v2532
    %2754 = vmatpush1.msra.mxu0 %v2531
    %2755 = vmatprep.subr.mxu0 %v2539
    %2756 = vmatpush1.msra.mxu0 %v2538
    %2757 = vmatprep.subr.mxu0 %v2546
    %2758 = vmatpush1.msra.mxu0 %v2545
    %2759 = vmatprep.subr.mxu0 %v2553
    %2760 = vmatpush1.msra.mxu0 %v2552
    %2761 = vmatprep.subr.mxu0 %v2560
    %2762 = vmatpush1.msra.mxu0 %v2559
    %2763 = vmatprep.subr.mxu0 %v2567
    %2764 = vmatpush1.msra.mxu0 %v2566
    %2765 = vmatprep.subr.mxu0 0.0
    %2766 = vmatpush1.msra.mxu0 0.0
    %2767 = vmatprep.subr.mxu0 0.0
    %2768 = vmatpush1.msra.mxu0 0.0
    %2769 = vmatprep.subr.mxu0 0.0
    %2770 = vmatpush1.msra.mxu0 0.0
    %2771 = vmatprep.subr.mxu0 0.0
    %2772 = vmatpush1.msra.mxu0 0.0
    %2773 = vmatprep.subr.mxu0 0.0
    %2774 = vmatpush1.msra.mxu0 0.0
    %2775 = vmatprep.subr.mxu0 0.0
    %2776 = vmatpush1.msra.mxu0 0.0
    %2777 = vmatprep.subr.mxu0 0.0
    %2778 = vmatpush1.msra.mxu0 0.0
    %2779 = vmatprep.subr.mxu0 0.0
    %2780 = vmatpush1.msra.mxu0 0.0
    %2781 = vmatprep.mubr.f32.mxu0 %v2573
    %2782 = vmatmul.mubr.f32.gmra.mrb[0].mxu0 %v2570
    %v2783 = vpop.f32.mrb[0].mxu0
    %v2784 = vadd.f32 0.0, %v2783
    %v2785 = vpop.f32.mrb[0].mxu0
    %v2786 = vadd.f32 0.0, %v2785
    %2787 = vdwg.mxu0
    %2788 = vmatprep.subr.mxu0 0.0
    %2789 = vmatpush1.msra.mxu0 %v2407
    %2790 = vmatprep.subr.mxu0 0.0
    %2791 = vmatpush1.msra.mxu0 %v2414
    %2792 = vmatprep.subr.mxu0 0.0
    %2793 = vmatpush1.msra.mxu0 %v2421
    %2794 = vmatprep.subr.mxu0 0.0
    %2795 = vmatpush1.msra.mxu0 %v2428
    %2796 = vmatprep.subr.mxu0 0.0
    %2797 = vmatpush1.msra.mxu0 %v2435
    %2798 = vmatprep.subr.mxu0 0.0
    %2799 = vmatpush1.msra.mxu0 %v2442
    %2800 = vmatprep.subr.mxu0 0.0
    %2801 = vmatpush1.msra.mxu0 %v2449
    %2802 = vmatprep.subr.mxu0 0.0
    %2803 = vmatpush1.msra.mxu0 %v2456
    %2804 = vmatprep.subr.mxu0 0.0
    %2805 = vmatpush1.msra.mxu0 %v2463
    %2806 = vmatprep.subr.mxu0 0.0
    %2807 = vmatpush1.msra.mxu0 %v2470
    %2808 = vmatprep.subr.mxu0 0.0
    %2809 = vmatpush1.msra.mxu0 %v2477
    %2810 = vmatprep.subr.mxu0 0.0
    %2811 = vmatpush1.msra.mxu0 %v2484
    %2812 = vmatprep.subr.mxu0 0.0
    %2813 = vmatpush1.msra.mxu0 %v2491
    %2814 = vmatprep.subr.mxu0 0.0
    %2815 = vmatpush1.msra.mxu0 %v2498
    %2816 = vmatprep.subr.mxu0 0.0
    %2817 = vmatpush1.msra.mxu0 %v2505
    %2818 = vmatprep.subr.mxu0 0.0
    %2819 = vmatpush1.msra.mxu0 %v2512
    %2820 = vmatprep.subr.mxu0 0.0
    %2821 = vmatpush1.msra.mxu0 %v2519
    %2822 = vmatprep.subr.mxu0 0.0
    %2823 = vmatpush1.msra.mxu0 %v2526
    %2824 = vmatprep.subr.mxu0 0.0
    %2825 = vmatpush1.msra.mxu0 %v2533
    %2826 = vmatprep.subr.mxu0 0.0
    %2827 = vmatpush1.msra.mxu0 %v2540
    %2828 = vmatprep.subr.mxu0 0.0
    %2829 = vmatpush1.msra.mxu0 %v2547
    %2830 = vmatprep.subr.mxu0 0.0
    %2831 = vmatpush1.msra.mxu0 %v2554
    %2832 = vmatprep.subr.mxu0 0.0
    %2833 = vmatpush1.msra.mxu0 %v2561
    %2834 = vmatprep.subr.mxu0 0.0
    %2835 = vmatpush1.msra.mxu0 %v2568
    %2836 = vmatprep.subr.mxu0 0.0
    %2837 = vmatpush1.msra.mxu0 0.0
    %2838 = vmatprep.subr.mxu0 0.0
    %2839 = vmatpush1.msra.mxu0 0.0
    %2840 = vmatprep.subr.mxu0 0.0
    %2841 = vmatpush1.msra.mxu0 0.0
    %2842 = vmatprep.subr.mxu0 0.0
    %2843 = vmatpush1.msra.mxu0 0.0
    %2844 = vmatprep.subr.mxu0 0.0
    %2845 = vmatpush1.msra.mxu0 0.0
    %2846 = vmatprep.subr.mxu0 0.0
    %2847 = vmatpush1.msra.mxu0 0.0
    %2848 = vmatprep.subr.mxu0 0.0
    %2849 = vmatpush1.msra.mxu0 0.0
    %2850 = vmatprep.subr.mxu0 0.0
    %2851 = vmatpush1.msra.mxu0 0.0
    %2852 = vmatprep.mubr.f32.mxu0 %v2573
    %2853 = vmatmul.mubr.f32.gmra.mrb[0].mxu0 %v2570
    %v2854 = vpop.f32.mrb[0].mxu0
    %v2855 = vadd.f32 0.0, %v2854
    %v2856 = vpop.f32.mrb[0].mxu0
    %2857 = vdwg.mxu0
    %v2865 = vcombine.low %v2642, %v2644
    %v2866 = vcombine.low %v2713, %v2715
    %v2867 = vcombine.low %v2784, %v2786
    %v2869 = vunpack.c.l.s4 1966171168
    %v2870 = vunpack.c.0.s8 %v2869
    %v2871 = vlaneseq
    %v2872 = vshrl.u32 %v2871, 7
    %v2873 = vsub.s32 %v2870, %v2872
    %v2874 = vrot.slane %v2865, %v2873
    %v2876 = vunpack.c.l.s4 1966171168
    %v2877 = vunpack.c.0.s8 %v2876
    %v2878 = vlaneseq
    %v2879 = vshrl.u32 %v2878, 7
    %v2880 = vsub.s32 %v2877, %v2879
    %v2881 = vrot.slane %v2866, %v2880
    %v2883 = vunpack.c.l.s4 1966171168
    %v2884 = vunpack.c.0.s8 %v2883
    %v2885 = vlaneseq
    %v2886 = vshrl.u32 %v2885, 7
    %v2887 = vsub.s32 %v2884, %v2886
    %v2888 = vrot.slane %v2867, %v2887
    %v2890 = vunpack.c.l.s4 1966171168
    %v2891 = vunpack.c.0.s8 %v2890
    %v2892 = vlaneseq
    %v2893 = vshrl.u32 %v2892, 7
    %v2894 = vsub.s32 %v2891, %v2893
    %v2895 = vrot.slane %v2855, %v2894
    %v2896 = vcombine.low %v2874, %v2881
    %v2897 = vcombine.low %v2888, %v2895
    %v2899 = vunpack.c.l.s4 1966171168
    %v2900 = vunpack.c.0.s8 %v2899
    %v2901 = vlaneseq
    %v2902 = vshrl.u32 %v2901, 7
    %v2903 = vsub.s32 %v2900, %v2902
    %v2904 = vrot.slane %v2896, %v2903
    %v2906 = vunpack.c.l.s4 1966171168
    %v2907 = vunpack.c.0.s8 %v2906
    %v2908 = vlaneseq
    %v2909 = vshrl.u32 %v2908, 7
    %v2910 = vsub.s32 %v2907, %v2909
    %v2911 = vrot.slane %v2897, %v2910
    %v2912 = vcombine.low %v2904, %v2911
    %v2914 = vadd.f32 %v2400, %v2912
    %v2915 = vld [vmem:[%s7 + $0xa80] sm:$0xff]
    %v2916 = vld [vmem:[%s7 + $0xa88] sm:$0xff]
    %v2917 = vld [vmem:[%s7 + $0xa90] sm:$0xff]
    %v2918 = vld [vmem:[%s7 + $0xa98] sm:$0xff]
    %v2919 = vld [vmem:[%s7 + $0xaa0] sm:$0xff]
    %v2920 = vld [vmem:[%s7 + $0xaa8] sm:$0xff]
    %v2921 = vld [vmem:[%s7 + $0xab0] sm:$0xff]
    %v2922 = vld [vmem:[%s7 + $0xab8] sm:$0xff]
    %v2923 = vld [vmem:[%s7 + $0xac0] sm:$0xff]
    %v2924 = vld [vmem:[%s7 + $0xac8] sm:$0xff]
    %v2925 = vld [vmem:[%s7 + $0xad0] sm:$0xff]
    %v2926 = vld [vmem:[%s7 + $0xad8] sm:$0xff]
    %v2927 = vld [vmem:[%s7 + $0xae0] sm:$0xff]
    %v2928 = vld [vmem:[%s7 + $0xae8] sm:$0xff]
    %v2929 = vld [vmem:[%s7 + $0xaf0] sm:$0xff]
    %v2930 = vld [vmem:[%s7 + $0xaf8] sm:$0xff]
    %v2931 = vld [vmem:[%s7 + $0xb00] sm:$0xff]
    %v2932 = vld [vmem:[%s7 + $0xb08] sm:$0xff]
    %v2933 = vld [vmem:[%s7 + $0xb10] sm:$0xff]
    %v2934 = vld [vmem:[%s7 + $0xb18] sm:$0xff]
    %v2935 = vld [vmem:[%s7 + $0xb20] sm:$0xff]
    %v2936 = vld [vmem:[%s7 + $0xb28] sm:$0xff]
    %v2937 = vld [vmem:[%s7 + $0xb30] sm:$0xff]
    %v2938 = vld [vmem:[%s7 + $0xb38] sm:$0xff]
    %v2939 = vld [vmem:[%s7 + $0xb40] sm:$0xff]
    %v2940 = vld [vmem:[%s7 + $0xb48] sm:$0xff]
    %v2941 = vld [vmem:[%s7 + $0xb50] sm:$0xff]
    %v2942 = vld [vmem:[%s7 + $0xb58] sm:$0xff]
    %v2943 = vld [vmem:[%s7 + $0xb60] sm:$0xff]
    %v2944 = vld [vmem:[%s7 + $0xb68] sm:$0xff]
    %v2945 = vld [vmem:[%s7 + $0xb70] sm:$0xff]
    %v2946 = vld [vmem:[%s7 + $0xb78] sm:$0xff]
    %v2947 = vld [vmem:[%s7 + $0xb80] sm:$0xff]
    %v2948 = vld [vmem:[%s7 + $0xb88] sm:$0xff]
    %v2949 = vld [vmem:[%s7 + $0xb90] sm:$0xff]
    %v2950 = vld [vmem:[%s7 + $0xb98] sm:$0xff]
    %v2951 = vld [vmem:[%s7 + $0xba0] sm:$0xff]
    %v2952 = vld [vmem:[%s7 + $0xba8] sm:$0xff]
    %v2953 = vld [vmem:[%s7 + $0xbb0] sm:$0xff]
    %v2954 = vld [vmem:[%s7 + $0xbb8] sm:$0xff]
    %v2955 = vld [vmem:[%s7 + $0xbc0] sm:$0xff]
    %v2956 = vld [vmem:[%s7 + $0xbc8] sm:$0xff]
    %v2957 = vld [vmem:[%s7 + $0xbd0] sm:$0xff]
    %v2958 = vld [vmem:[%s7 + $0xbd8] sm:$0xff]
    %v2959 = vld [vmem:[%s7 + $0xbe0] sm:$0xff]
    %v2960 = vld [vmem:[%s7 + $0xbe8] sm:$0xff]
    %v2961 = vld [vmem:[%s7 + $0xbf0] sm:$0xff]
    %v2962 = vld [vmem:[%s7 + $0xbf8] sm:$0xff]
    %v2963 = vld [vmem:[%s7 + $0xc00] sm:$0xff]
    %v2964 = vld [vmem:[%s7 + $0xc08] sm:$0xff]
    %v2965 = vld [vmem:[%s7 + $0xc10] sm:$0xff]
    %v2966 = vld [vmem:[%s7 + $0xc18] sm:$0xff]
    %v2967 = vld [vmem:[%s7 + $0xc20] sm:$0xff]
    %v2968 = vld [vmem:[%s7 + $0xc28] sm:$0xff]
    %v2969 = vld [vmem:[%s7 + $0xc30] sm:$0xff]
    %v2970 = vld [vmem:[%s7 + $0xc38] sm:$0xff]
    %v2971 = vld [vmem:[%s7 + $0xc40] sm:$0xff]
    %v2972 = vld [vmem:[%s7 + $0xc48] sm:$0xff]
    %v2973 = vld [vmem:[%s7 + $0xc50] sm:$0xff]
    %v2974 = vld [vmem:[%s7 + $0xc58] sm:$0xff]
    %v2975 = vld [vmem:[%s7 + $0xc60] sm:$0xff]
    %v2976 = vld [vmem:[%s7 + $0xc68] sm:$0xff]
    %v2977 = vld [vmem:[%s7 + $0xc70] sm:$0xff]
    %v2978 = vld [vmem:[%s7 + $0xc78] sm:$0xff]
    %v2979 = vld [vmem:[%s7 + $0xc80] sm:$0xff]
    %v2980 = vld [vmem:[%s7 + $0xc88] sm:$0xff]
    %v2981 = vld [vmem:[%s7 + $0xc90] sm:$0xff]
    %v2982 = vld [vmem:[%s7 + $0xc98] sm:$0xff]
    %v2983 = vld [vmem:[%s7 + $0xca0] sm:$0xff]
    %v2984 = vld [vmem:[%s7 + $0xca8] sm:$0xff]
    %v2985 = vld [vmem:[%s7 + $0xcb0] sm:$0xff]
    %v2986 = vld [vmem:[%s7 + $0xcb8] sm:$0xff]
    %v2987 = vld [vmem:[%s7 + $0xcc0] sm:$0xff]
    %v2988 = vld [vmem:[%s7 + $0xcc8] sm:$0xff]
    %v2989 = vld [vmem:[%s7 + $0xcd0] sm:$0xff]
    %v2990 = vld [vmem:[%s7 + $0xcd8] sm:$0xff]
    %v2991 = vld [vmem:[%s7 + $0xce0] sm:$0xff]
    %v2992 = vld [vmem:[%s7 + $0xce8] sm:$0xff]
    %v2993 = vld [vmem:[%s7 + $0xcf0] sm:$0xff]
    %v2994 = vld [vmem:[%s7 + $0xcf8] sm:$0xff]
    %v2995 = vld [vmem:[%s7 + $0xd00] sm:$0xff]
    %v2996 = vld [vmem:[%s7 + $0xd08] sm:$0xff]
    %v2997 = vld [vmem:[%s7 + $0xd10] sm:$0xff]
    %v2998 = vld [vmem:[%s7 + $0xd18] sm:$0xff]
    %v2999 = vld [vmem:[%s7 + $0xd20] sm:$0xff]
    %v3000 = vld [vmem:[%s7 + $0xd28] sm:$0xff]
    %v3001 = vld [vmem:[%s7 + $0xd30] sm:$0xff]
    %v3002 = vld [vmem:[%s7 + $0xd38] sm:$0xff]
    %v3003 = vld [vmem:[%s7 + $0xd40] sm:$0xff]
    %v3004 = vld [vmem:[%s7 + $0xd48] sm:$0xff]
    %v3005 = vld [vmem:[%s7 + $0xd50] sm:$0xff]
    %v3006 = vld [vmem:[%s7 + $0xd58] sm:$0xff]
    %v3007 = vld [vmem:[%s7 + $0xd60] sm:$0xff]
    %v3008 = vld [vmem:[%s7 + $0xd68] sm:$0xff]
    %v3009 = vld [vmem:[%s7 + $0xd70] sm:$0xff]
    %v3010 = vld [vmem:[%s7 + $0xd78] sm:$0xff]
    %v3011 = vld [vmem:[%s7 + $0xd80] sm:$0xff]
    %v3012 = vld [vmem:[%s7 + $0xd88] sm:$0xff]
    %v3013 = vld [vmem:[%s7 + $0xd90] sm:$0xff]
    %v3014 = vld [vmem:[%s7 + $0xd98] sm:$0xff]
    %v3015 = vld [vmem:[%s7 + $0xda0] sm:$0xff]
    %v3016 = vld [vmem:[%s7 + $0xda8] sm:$0xff]
    %v3017 = vld [vmem:[%s7 + $0xdb0] sm:$0xff]
    %v3018 = vld [vmem:[%s7 + $0xdb8] sm:$0xff]
    %v3019 = vld [vmem:[%s7 + $0xdc0] sm:$0xff]
    %v3020 = vld [vmem:[%s7 + $0xdc8] sm:$0xff]
    %v3021 = vld [vmem:[%s7 + $0xdd0] sm:$0xff]
    %v3022 = vld [vmem:[%s7 + $0xdd8] sm:$0xff]
    %v3023 = vld [vmem:[%s7 + $0xde0] sm:$0xff]
    %v3024 = vld [vmem:[%s7 + $0xde8] sm:$0xff]
    %v3025 = vld [vmem:[%s7 + $0xdf0] sm:$0xff]
    %v3026 = vld [vmem:[%s7 + $0xdf8] sm:$0xff]
    %v3027 = vld [vmem:[%s7 + $0xe00] sm:$0xff]
    %v3028 = vld [vmem:[%s7 + $0xe08] sm:$0xff]
    %v3029 = vld [vmem:[%s7 + $0xe10] sm:$0xff]
    %v3030 = vld [vmem:[%s7 + $0xe18] sm:$0xff]
    %v3031 = vld [vmem:[%s7 + $0xe20] sm:$0xff]
    %v3032 = vld [vmem:[%s7 + $0xe28] sm:$0xff]
    %v3033 = vld [vmem:[%s7 + $0xe30] sm:$0xff]
    %v3034 = vld [vmem:[%s7 + $0xe38] sm:$0xff]
    %v3035 = vld [vmem:[%s7 + $0xe40] sm:$0xff]
    %v3036 = vld [vmem:[%s7 + $0xe48] sm:$0xff]
    %v3037 = vld [vmem:[%s7 + $0xe50] sm:$0xff]
    %v3038 = vld [vmem:[%s7 + $0xe58] sm:$0xff]
    %v3039 = vld [vmem:[%s7 + $0xe60] sm:$0xff]
    %v3040 = vld [vmem:[%s7 + $0xe68] sm:$0xff]
    %v3041 = vld [vmem:[%s7 + $0xe70] sm:$0xff]
    %v3042 = vld [vmem:[%s7 + $0xe78] sm:$0xff]
    %v3043 = vld [vmem:[%s7 + $0xe80] sm:$0xff]
    %v3044 = vld [vmem:[%s7 + $0xe88] sm:$0xff]
    %v3045 = vld [vmem:[%s7 + $0xe90] sm:$0xff]
    %v3046 = vld [vmem:[%s7 + $0xe98] sm:$0xff]
    %v3047 = vld [vmem:[%s7 + $0xea0] sm:$0xff]
    %v3048 = vld [vmem:[%s7 + $0xea8] sm:$0xff]
    %v3049 = vld [vmem:[%s7 + $0xeb0] sm:$0xff]
    %v3050 = vld [vmem:[%s7 + $0xeb8] sm:$0xff]
    %v3051 = vld [vmem:[%s7 + $0xec0] sm:$0xff]
    %v3052 = vld [vmem:[%s7 + $0xec8] sm:$0xff]
    %v3053 = vld [vmem:[%s7 + $0xed0] sm:$0xff]
    %v3054 = vld [vmem:[%s7 + $0xed8] sm:$0xff]
    %v3055 = vld [vmem:[%s7 + $0xee0] sm:$0xff]
    %v3056 = vld [vmem:[%s7 + $0xee8] sm:$0xff]
    %v3057 = vld [vmem:[%s7 + $0xef0] sm:$0xff]
    %v3058 = vld [vmem:[%s7 + $0xef8] sm:$0xff]
    %v3059 = vld [vmem:[%s7 + $0xf00] sm:$0xff]
    %v3060 = vld [vmem:[%s7 + $0xf08] sm:$0xff]
    %v3061 = vld [vmem:[%s7 + $0xf10] sm:$0xff]
    %v3062 = vld [vmem:[%s7 + $0xf18] sm:$0xff]
    %v3063 = vld [vmem:[%s7 + $0xf20] sm:$0xff]
    %v3064 = vld [vmem:[%s7 + $0xf28] sm:$0xff]
    %v3065 = vld [vmem:[%s7 + $0xf30] sm:$0xff]
    %v3066 = vld [vmem:[%s7 + $0xf38] sm:$0xff]
    %v3067 = vld [vmem:[%s7 + $0xf40] sm:$0xff]
    %v3068 = vld [vmem:[%s7 + $0xf48] sm:$0xff]
    %v3069 = vld [vmem:[%s7 + $0xf50] sm:$0xff]
    %v3070 = vld [vmem:[%s7 + $0xf58] sm:$0xff]
    %v3071 = vld [vmem:[%s7 + $0xf60] sm:$0xff]
    %v3072 = vld [vmem:[%s7 + $0xf68] sm:$0xff]
    %v3073 = vld [vmem:[%s7 + $0xf70] sm:$0xff]
    %v3074 = vld [vmem:[%s7 + $0xf78] sm:$0xff]
    %v3075 = vld [vmem:[%s7 + $0xf80] sm:$0xff]
    %v3076 = vld [vmem:[%s7 + $0xf88] sm:$0xff]
    %v3077 = vld [vmem:[%s7 + $0xf90] sm:$0xff]
    %v3078 = vld [vmem:[%s7 + $0xf98] sm:$0xff]
    %v3079 = vld [vmem:[%s7 + $0xfa0] sm:$0xff]
    %v3080 = vld [vmem:[%s7 + $0xfa8] sm:$0xff]
    %v3081 = vld [vmem:[%s7 + $0xfb0] sm:$0xff]
    %v3082 = vld [vmem:[%s7 + $0xfb8] sm:$0xff]
    %v3083 = vrot.slane %v1886, 2
    %v3084 = vrot.slane %v1887, 2
    %v3086 = vsel %vm2057, %v3084, 0
    %3088 = vmatprep.subr.mxu0 %v2916
    %3089 = vmatpush1.msra.mxu0 %v2915
    %3090 = vmatprep.subr.mxu0 %v2923
    %3091 = vmatpush1.msra.mxu0 %v2922
    %3092 = vmatprep.subr.mxu0 %v2930
    %3093 = vmatpush1.msra.mxu0 %v2929
    %3094 = vmatprep.subr.mxu0 %v2937
    %3095 = vmatpush1.msra.mxu0 %v2936
    %3096 = vmatprep.subr.mxu0 %v2944
    %3097 = vmatpush1.msra.mxu0 %v2943
    %3098 = vmatprep.subr.mxu0 %v2951
    %3099 = vmatpush1.msra.mxu0 %v2950
    %3100 = vmatprep.subr.mxu0 %v2958
    %3101 = vmatpush1.msra.mxu0 %v2957
    %3102 = vmatprep.subr.mxu0 %v2965
    %3103 = vmatpush1.msra.mxu0 %v2964
    %3104 = vmatprep.subr.mxu0 %v2972
    %3105 = vmatpush1.msra.mxu0 %v2971
    %3106 = vmatprep.subr.mxu0 %v2979
    %3107 = vmatpush1.msra.mxu0 %v2978
    %3108 = vmatprep.subr.mxu0 %v2986
    %3109 = vmatpush1.msra.mxu0 %v2985
    %3110 = vmatprep.subr.mxu0 %v2993
    %3111 = vmatpush1.msra.mxu0 %v2992
    %3112 = vmatprep.subr.mxu0 %v3000
    %3113 = vmatpush1.msra.mxu0 %v2999
    %3114 = vmatprep.subr.mxu0 %v3007
    %3115 = vmatpush1.msra.mxu0 %v3006
    %3116 = vmatprep.subr.mxu0 %v3014
    %3117 = vmatpush1.msra.mxu0 %v3013
    %3118 = vmatprep.subr.mxu0 %v3021
    %3119 = vmatpush1.msra.mxu0 %v3020
    %3120 = vmatprep.subr.mxu0 %v3028
    %3121 = vmatpush1.msra.mxu0 %v3027
    %3122 = vmatprep.subr.mxu0 %v3035
    %3123 = vmatpush1.msra.mxu0 %v3034
    %3124 = vmatprep.subr.mxu0 %v3042
    %3125 = vmatpush1.msra.mxu0 %v3041
    %3126 = vmatprep.subr.mxu0 %v3049
    %3127 = vmatpush1.msra.mxu0 %v3048
    %3128 = vmatprep.subr.mxu0 %v3056
    %3129 = vmatpush1.msra.mxu0 %v3055
    %3130 = vmatprep.subr.mxu0 %v3063
    %3131 = vmatpush1.msra.mxu0 %v3062
    %3132 = vmatprep.subr.mxu0 %v3070
    %3133 = vmatpush1.msra.mxu0 %v3069
    %3134 = vmatprep.subr.mxu0 %v3077
    %3135 = vmatpush1.msra.mxu0 %v3076
    %3136 = vmatprep.subr.mxu0 0.0
    %3137 = vmatpush1.msra.mxu0 0.0
    %3138 = vmatprep.subr.mxu0 0.0
    %3139 = vmatpush1.msra.mxu0 0.0
    %3140 = vmatprep.subr.mxu0 0.0
    %3141 = vmatpush1.msra.mxu0 0.0
    %3142 = vmatprep.subr.mxu0 0.0
    %3143 = vmatpush1.msra.mxu0 0.0
    %3144 = vmatprep.subr.mxu0 0.0
    %3145 = vmatpush1.msra.mxu0 0.0
    %3146 = vmatprep.subr.mxu0 0.0
    %3147 = vmatpush1.msra.mxu0 0.0
    %3148 = vmatprep.subr.mxu0 0.0
    %3149 = vmatpush1.msra.mxu0 0.0
    %3150 = vmatprep.subr.mxu0 0.0
    %3151 = vmatpush1.msra.mxu0 0.0
    %3152 = vmatprep.mubr.f32.mxu0 %v3086
    %3153 = vmatmul.mubr.f32.gmra.mrb[0].mxu0 %v3083
    %v3154 = vpop.f32.mrb[0].mxu0
    %v3155 = vadd.f32 0.0, %v3154
    %v3156 = vpop.f32.mrb[0].mxu0
    %v3157 = vadd.f32 0.0, %v3156
    %3158 = vdwg.mxu0
    %3159 = vmatprep.subr.mxu0 %v2918
    %3160 = vmatpush1.msra.mxu0 %v2917
    %3161 = vmatprep.subr.mxu0 %v2925
    %3162 = vmatpush1.msra.mxu0 %v2924
    %3163 = vmatprep.subr.mxu0 %v2932
    %3164 = vmatpush1.msra.mxu0 %v2931
    %3165 = vmatprep.subr.mxu0 %v2939
    %3166 = vmatpush1.msra.mxu0 %v2938
    %3167 = vmatprep.subr.mxu0 %v2946
    %3168 = vmatpush1.msra.mxu0 %v2945
    %3169 = vmatprep.subr.mxu0 %v2953
    %3170 = vmatpush1.msra.mxu0 %v2952
    %3171 = vmatprep.subr.mxu0 %v2960
    %3172 = vmatpush1.msra.mxu0 %v2959
    %3173 = vmatprep.subr.mxu0 %v2967
    %3174 = vmatpush1.msra.mxu0 %v2966
    %3175 = vmatprep.subr.mxu0 %v2974
    %3176 = vmatpush1.msra.mxu0 %v2973
    %3177 = vmatprep.subr.mxu0 %v2981
    %3178 = vmatpush1.msra.mxu0 %v2980
    %3179 = vmatprep.subr.mxu0 %v2988
    %3180 = vmatpush1.msra.mxu0 %v2987
    %3181 = vmatprep.subr.mxu0 %v2995
    %3182 = vmatpush1.msra.mxu0 %v2994
    %3183 = vmatprep.subr.mxu0 %v3002
    %3184 = vmatpush1.msra.mxu0 %v3001
    %3185 = vmatprep.subr.mxu0 %v3009
    %3186 = vmatpush1.msra.mxu0 %v3008
    %3187 = vmatprep.subr.mxu0 %v3016
    %3188 = vmatpush1.msra.mxu0 %v3015
    %3189 = vmatprep.subr.mxu0 %v3023
    %3190 = vmatpush1.msra.mxu0 %v3022
    %3191 = vmatprep.subr.mxu0 %v3030
    %3192 = vmatpush1.msra.mxu0 %v3029
    %3193 = vmatprep.subr.mxu0 %v3037
    %3194 = vmatpush1.msra.mxu0 %v3036
    %3195 = vmatprep.subr.mxu0 %v3044
    %3196 = vmatpush1.msra.mxu0 %v3043
    %3197 = vmatprep.subr.mxu0 %v3051
    %3198 = vmatpush1.msra.mxu0 %v3050
    %3199 = vmatprep.subr.mxu0 %v3058
    %3200 = vmatpush1.msra.mxu0 %v3057
    %3201 = vmatprep.subr.mxu0 %v3065
    %3202 = vmatpush1.msra.mxu0 %v3064
    %3203 = vmatprep.subr.mxu0 %v3072
    %3204 = vmatpush1.msra.mxu0 %v3071
    %3205 = vmatprep.subr.mxu0 %v3079
    %3206 = vmatpush1.msra.mxu0 %v3078
    %3207 = vmatprep.subr.mxu0 0.0
    %3208 = vmatpush1.msra.mxu0 0.0
    %3209 = vmatprep.subr.mxu0 0.0
    %3210 = vmatpush1.msra.mxu0 0.0
    %3211 = vmatprep.subr.mxu0 0.0
    %3212 = vmatpush1.msra.mxu0 0.0
    %3213 = vmatprep.subr.mxu0 0.0
    %3214 = vmatpush1.msra.mxu0 0.0
    %3215 = vmatprep.subr.mxu0 0.0
    %3216 = vmatpush1.msra.mxu0 0.0
    %3217 = vmatprep.subr.mxu0 0.0
    %3218 = vmatpush1.msra.mxu0 0.0
    %3219 = vmatprep.subr.mxu0 0.0
    %3220 = vmatpush1.msra.mxu0 0.0
    %3221 = vmatprep.subr.mxu0 0.0
    %3222 = vmatpush1.msra.mxu0 0.0
    %3223 = vmatprep.mubr.f32.mxu0 %v3086
    %3224 = vmatmul.mubr.f32.gmra.mrb[0].mxu0 %v3083
    %v3225 = vpop.f32.mrb[0].mxu0
    %v3226 = vadd.f32 0.0, %v3225
    %v3227 = vpop.f32.mrb[0].mxu0
    %v3228 = vadd.f32 0.0, %v3227
    %3229 = vdwg.mxu0
    %3230 = vmatprep.subr.mxu0 %v2920
    %3231 = vmatpush1.msra.mxu0 %v2919
    %3232 = vmatprep.subr.mxu0 %v2927
    %3233 = vmatpush1.msra.mxu0 %v2926
    %3234 = vmatprep.subr.mxu0 %v2934
    %3235 = vmatpush1.msra.mxu0 %v2933
    %3236 = vmatprep.subr.mxu0 %v2941
    %3237 = vmatpush1.msra.mxu0 %v2940
    %3238 = vmatprep.subr.mxu0 %v2948
    %3239 = vmatpush1.msra.mxu0 %v2947
    %3240 = vmatprep.subr.mxu0 %v2955
    %3241 = vmatpush1.msra.mxu0 %v2954
    %3242 = vmatprep.subr.mxu0 %v2962
    %3243 = vmatpush1.msra.mxu0 %v2961
    %3244 = vmatprep.subr.mxu0 %v2969
    %3245 = vmatpush1.msra.mxu0 %v2968
    %3246 = vmatprep.subr.mxu0 %v2976
    %3247 = vmatpush1.msra.mxu0 %v2975
    %3248 = vmatprep.subr.mxu0 %v2983
    %3249 = vmatpush1.msra.mxu0 %v2982
    %3250 = vmatprep.subr.mxu0 %v2990
    %3251 = vmatpush1.msra.mxu0 %v2989
    %3252 = vmatprep.subr.mxu0 %v2997
    %3253 = vmatpush1.msra.mxu0 %v2996
    %3254 = vmatprep.subr.mxu0 %v3004
    %3255 = vmatpush1.msra.mxu0 %v3003
    %3256 = vmatprep.subr.mxu0 %v3011
    %3257 = vmatpush1.msra.mxu0 %v3010
    %3258 = vmatprep.subr.mxu0 %v3018
    %3259 = vmatpush1.msra.mxu0 %v3017
    %3260 = vmatprep.subr.mxu0 %v3025
    %3261 = vmatpush1.msra.mxu0 %v3024
    %3262 = vmatprep.subr.mxu0 %v3032
    %3263 = vmatpush1.msra.mxu0 %v3031
    %3264 = vmatprep.subr.mxu0 %v3039
    %3265 = vmatpush1.msra.mxu0 %v3038
    %3266 = vmatprep.subr.mxu0 %v3046
    %3267 = vmatpush1.msra.mxu0 %v3045
    %3268 = vmatprep.subr.mxu0 %v3053
    %3269 = vmatpush1.msra.mxu0 %v3052
    %3270 = vmatprep.subr.mxu0 %v3060
    %3271 = vmatpush1.msra.mxu0 %v3059
    %3272 = vmatprep.subr.mxu0 %v3067
    %3273 = vmatpush1.msra.mxu0 %v3066
    %3274 = vmatprep.subr.mxu0 %v3074
    %3275 = vmatpush1.msra.mxu0 %v3073
    %3276 = vmatprep.subr.mxu0 %v3081
    %3277 = vmatpush1.msra.mxu0 %v3080
    %3278 = vmatprep.subr.mxu0 0.0
    %3279 = vmatpush1.msra.mxu0 0.0
    %3280 = vmatprep.subr.mxu0 0.0
    %3281 = vmatpush1.msra.mxu0 0.0
    %3282 = vmatprep.subr.mxu0 0.0
    %3283 = vmatpush1.msra.mxu0 0.0
    %3284 = vmatprep.subr.mxu0 0.0
    %3285 = vmatpush1.msra.mxu0 0.0
    %3286 = vmatprep.subr.mxu0 0.0
    %3287 = vmatpush1.msra.mxu0 0.0
    %3288 = vmatprep.subr.mxu0 0.0
    %3289 = vmatpush1.msra.mxu0 0.0
    %3290 = vmatprep.subr.mxu0 0.0
    %3291 = vmatpush1.msra.mxu0 0.0
    %3292 = vmatprep.subr.mxu0 0.0
    %3293 = vmatpush1.msra.mxu0 0.0
    %3294 = vmatprep.mubr.f32.mxu0 %v3086
    %3295 = vmatmul.mubr.f32.gmra.mrb[0].mxu0 %v3083
    %v3296 = vpop.f32.mrb[0].mxu0
    %v3297 = vadd.f32 0.0, %v3296
    %v3298 = vpop.f32.mrb[0].mxu0
    %v3299 = vadd.f32 0.0, %v3298
    %3300 = vdwg.mxu0
    %3301 = vmatprep.subr.mxu0 0.0
    %3302 = vmatpush1.msra.mxu0 %v2921
    %3303 = vmatprep.subr.mxu0 0.0
    %3304 = vmatpush1.msra.mxu0 %v2928
    %3305 = vmatprep.subr.mxu0 0.0
    %3306 = vmatpush1.msra.mxu0 %v2935
    %3307 = vmatprep.subr.mxu0 0.0
    %3308 = vmatpush1.msra.mxu0 %v2942
    %3309 = vmatprep.subr.mxu0 0.0
    %3310 = vmatpush1.msra.mxu0 %v2949
    %3311 = vmatprep.subr.mxu0 0.0
    %3312 = vmatpush1.msra.mxu0 %v2956
    %3313 = vmatprep.subr.mxu0 0.0
    %3314 = vmatpush1.msra.mxu0 %v2963
    %3315 = vmatprep.subr.mxu0 0.0
    %3316 = vmatpush1.msra.mxu0 %v2970
    %3317 = vmatprep.subr.mxu0 0.0
    %3318 = vmatpush1.msra.mxu0 %v2977
    %3319 = vmatprep.subr.mxu0 0.0
    %3320 = vmatpush1.msra.mxu0 %v2984
    %3321 = vmatprep.subr.mxu0 0.0
    %3322 = vmatpush1.msra.mxu0 %v2991
    %3323 = vmatprep.subr.mxu0 0.0
    %3324 = vmatpush1.msra.mxu0 %v2998
    %3325 = vmatprep.subr.mxu0 0.0
    %3326 = vmatpush1.msra.mxu0 %v3005
    %3327 = vmatprep.subr.mxu0 0.0
    %3328 = vmatpush1.msra.mxu0 %v3012
    %3329 = vmatprep.subr.mxu0 0.0
    %3330 = vmatpush1.msra.mxu0 %v3019
    %3331 = vmatprep.subr.mxu0 0.0
    %3332 = vmatpush1.msra.mxu0 %v3026
    %3333 = vmatprep.subr.mxu0 0.0
    %3334 = vmatpush1.msra.mxu0 %v3033
    %3335 = vmatprep.subr.mxu0 0.0
    %3336 = vmatpush1.msra.mxu0 %v3040
    %3337 = vmatprep.subr.mxu0 0.0
    %3338 = vmatpush1.msra.mxu0 %v3047
    %3339 = vmatprep.subr.mxu0 0.0
    %3340 = vmatpush1.msra.mxu0 %v3054
    %3341 = vmatprep.subr.mxu0 0.0
    %3342 = vmatpush1.msra.mxu0 %v3061
    %3343 = vmatprep.subr.mxu0 0.0
    %3344 = vmatpush1.msra.mxu0 %v3068
    %3345 = vmatprep.subr.mxu0 0.0
    %3346 = vmatpush1.msra.mxu0 %v3075
    %3347 = vmatprep.subr.mxu0 0.0
    %3348 = vmatpush1.msra.mxu0 %v3082
    %3349 = vmatprep.subr.mxu0 0.0
    %3350 = vmatpush1.msra.mxu0 0.0
    %3351 = vmatprep.subr.mxu0 0.0
    %3352 = vmatpush1.msra.mxu0 0.0
    %3353 = vmatprep.subr.mxu0 0.0
    %3354 = vmatpush1.msra.mxu0 0.0
    %3355 = vmatprep.subr.mxu0 0.0
    %3356 = vmatpush1.msra.mxu0 0.0
    %3357 = vmatprep.subr.mxu0 0.0
    %3358 = vmatpush1.msra.mxu0 0.0
    %3359 = vmatprep.subr.mxu0 0.0
    %3360 = vmatpush1.msra.mxu0 0.0
    %3361 = vmatprep.subr.mxu0 0.0
    %3362 = vmatpush1.msra.mxu0 0.0
    %3363 = vmatprep.subr.mxu0 0.0
    %3364 = vmatpush1.msra.mxu0 0.0
    %3365 = vmatprep.mubr.f32.mxu0 %v3086
    %3366 = vmatmul.mubr.f32.gmra.mrb[0].mxu0 %v3083
    %v3367 = vpop.f32.mrb[0].mxu0
    %v3368 = vadd.f32 0.0, %v3367
    %v3369 = vpop.f32.mrb[0].mxu0
    %3370 = vdwg.mxu0
    %v3378 = vcombine.low %v3155, %v3157
    %v3379 = vcombine.low %v3226, %v3228
    %v3380 = vcombine.low %v3297, %v3299
    %v3382 = vunpack.c.l.s4 1966171168
    %v3383 = vunpack.c.0.s8 %v3382
    %v3384 = vlaneseq
    %v3385 = vshrl.u32 %v3384, 7
    %v3386 = vsub.s32 %v3383, %v3385
    %v3387 = vrot.slane %v3378, %v3386
    %v3389 = vunpack.c.l.s4 1966171168
    %v3390 = vunpack.c.0.s8 %v3389
    %v3391 = vlaneseq
    %v3392 = vshrl.u32 %v3391, 7
    %v3393 = vsub.s32 %v3390, %v3392
    %v3394 = vrot.slane %v3379, %v3393
    %v3396 = vunpack.c.l.s4 1966171168
    %v3397 = vunpack.c.0.s8 %v3396
    %v3398 = vlaneseq
    %v3399 = vshrl.u32 %v3398, 7
    %v3400 = vsub.s32 %v3397, %v3399
    %v3401 = vrot.slane %v3380, %v3400
    %v3403 = vunpack.c.l.s4 1966171168
    %v3404 = vunpack.c.0.s8 %v3403
    %v3405 = vlaneseq
    %v3406 = vshrl.u32 %v3405, 7
    %v3407 = vsub.s32 %v3404, %v3406
    %v3408 = vrot.slane %v3368, %v3407
    %v3409 = vcombine.low %v3387, %v3394
    %v3410 = vcombine.low %v3401, %v3408
    %v3412 = vunpack.c.l.s4 1966171168
    %v3413 = vunpack.c.0.s8 %v3412
    %v3414 = vlaneseq
    %v3415 = vshrl.u32 %v3414, 7
    %v3416 = vsub.s32 %v3413, %v3415
    %v3417 = vrot.slane %v3409, %v3416
    %v3419 = vunpack.c.l.s4 1966171168
    %v3420 = vunpack.c.0.s8 %v3419
    %v3421 = vlaneseq
    %v3422 = vshrl.u32 %v3421, 7
    %v3423 = vsub.s32 %v3420, %v3422
    %v3424 = vrot.slane %v3410, %v3423
    %v3425 = vcombine.low %v3417, %v3424
    %v3427 = vadd.f32 %v2914, %v3425
    %v3428 = vld [vmem:[%s7 + $0xfc0] sm:$0xff]
    %v3429 = vld [vmem:[%s7 + $0xfc8] sm:$0xff]
    %v3430 = vld [vmem:[%s7 + $0xfd0] sm:$0xff]
    %v3431 = vld [vmem:[%s7 + $0xfd8] sm:$0xff]
    %v3432 = vld [vmem:[%s7 + $0xfe0] sm:$0xff]
    %v3433 = vld [vmem:[%s7 + $0xfe8] sm:$0xff]
    %v3434 = vld [vmem:[%s7 + $0xff0] sm:$0xff]
    %v3435 = vld [vmem:[%s7 + $0xff8] sm:$0xff]
    %v3436 = vld [vmem:[%s7 + $0x1000] sm:$0xff]
    %v3437 = vld [vmem:[%s7 + $0x1008] sm:$0xff]
    %v3438 = vld [vmem:[%s7 + $0x1010] sm:$0xff]
    %v3439 = vld [vmem:[%s7 + $0x1018] sm:$0xff]
    %v3440 = vld [vmem:[%s7 + $0x1020] sm:$0xff]
    %v3441 = vld [vmem:[%s7 + $0x1028] sm:$0xff]
    %v3442 = vld [vmem:[%s7 + $0x1030] sm:$0xff]
    %v3443 = vld [vmem:[%s7 + $0x1038] sm:$0xff]
    %v3444 = vld [vmem:[%s7 + $0x1040] sm:$0xff]
    %v3445 = vld [vmem:[%s7 + $0x1048] sm:$0xff]
    %v3446 = vld [vmem:[%s7 + $0x1050] sm:$0xff]
    %v3447 = vld [vmem:[%s7 + $0x1058] sm:$0xff]
    %v3448 = vld [vmem:[%s7 + $0x1060] sm:$0xff]
    %v3449 = vld [vmem:[%s7 + $0x1068] sm:$0xff]
    %v3450 = vld [vmem:[%s7 + $0x1070] sm:$0xff]
    %v3451 = vld [vmem:[%s7 + $0x1078] sm:$0xff]
    %v3452 = vld [vmem:[%s7 + $0x1080] sm:$0xff]
    %v3453 = vld [vmem:[%s7 + $0x1088] sm:$0xff]
    %v3454 = vld [vmem:[%s7 + $0x1090] sm:$0xff]
    %v3455 = vld [vmem:[%s7 + $0x1098] sm:$0xff]
    %v3456 = vld [vmem:[%s7 + $0x10a0] sm:$0xff]
    %v3457 = vld [vmem:[%s7 + $0x10a8] sm:$0xff]
    %v3458 = vld [vmem:[%s7 + $0x10b0] sm:$0xff]
    %v3459 = vld [vmem:[%s7 + $0x10b8] sm:$0xff]
    %v3460 = vld [vmem:[%s7 + $0x10c0] sm:$0xff]
    %v3461 = vld [vmem:[%s7 + $0x10c8] sm:$0xff]
    %v3462 = vld [vmem:[%s7 + $0x10d0] sm:$0xff]
    %v3463 = vld [vmem:[%s7 + $0x10d8] sm:$0xff]
    %v3464 = vld [vmem:[%s7 + $0x10e0] sm:$0xff]
    %v3465 = vld [vmem:[%s7 + $0x10e8] sm:$0xff]
    %v3466 = vld [vmem:[%s7 + $0x10f0] sm:$0xff]
    %v3467 = vld [vmem:[%s7 + $0x10f8] sm:$0xff]
    %v3468 = vld [vmem:[%s7 + $0x1100] sm:$0xff]
    %v3469 = vld [vmem:[%s7 + $0x1108] sm:$0xff]
    %v3470 = vld [vmem:[%s7 + $0x1110] sm:$0xff]
    %v3471 = vld [vmem:[%s7 + $0x1118] sm:$0xff]
    %v3472 = vld [vmem:[%s7 + $0x1120] sm:$0xff]
    %v3473 = vld [vmem:[%s7 + $0x1128] sm:$0xff]
    %v3474 = vld [vmem:[%s7 + $0x1130] sm:$0xff]
    %v3475 = vld [vmem:[%s7 + $0x1138] sm:$0xff]
    %v3476 = vld [vmem:[%s7 + $0x1140] sm:$0xff]
    %v3477 = vld [vmem:[%s7 + $0x1148] sm:$0xff]
    %v3478 = vld [vmem:[%s7 + $0x1150] sm:$0xff]
    %v3479 = vld [vmem:[%s7 + $0x1158] sm:$0xff]
    %v3480 = vld [vmem:[%s7 + $0x1160] sm:$0xff]
    %v3481 = vld [vmem:[%s7 + $0x1168] sm:$0xff]
    %v3482 = vld [vmem:[%s7 + $0x1170] sm:$0xff]
    %v3483 = vld [vmem:[%s7 + $0x1178] sm:$0xff]
    %v3484 = vld [vmem:[%s7 + $0x1180] sm:$0xff]
    %v3485 = vld [vmem:[%s7 + $0x1188] sm:$0xff]
    %v3486 = vld [vmem:[%s7 + $0x1190] sm:$0xff]
    %v3487 = vld [vmem:[%s7 + $0x1198] sm:$0xff]
    %v3488 = vld [vmem:[%s7 + $0x11a0] sm:$0xff]
    %v3489 = vld [vmem:[%s7 + $0x11a8] sm:$0xff]
    %v3490 = vld [vmem:[%s7 + $0x11b0] sm:$0xff]
    %v3491 = vld [vmem:[%s7 + $0x11b8] sm:$0xff]
    %v3492 = vld [vmem:[%s7 + $0x11c0] sm:$0xff]
    %v3493 = vld [vmem:[%s7 + $0x11c8] sm:$0xff]
    %v3494 = vld [vmem:[%s7 + $0x11d0] sm:$0xff]
    %v3495 = vld [vmem:[%s7 + $0x11d8] sm:$0xff]
    %v3496 = vld [vmem:[%s7 + $0x11e0] sm:$0xff]
    %v3497 = vld [vmem:[%s7 + $0x11e8] sm:$0xff]
    %v3498 = vld [vmem:[%s7 + $0x11f0] sm:$0xff]
    %v3499 = vld [vmem:[%s7 + $0x11f8] sm:$0xff]
    %v3500 = vld [vmem:[%s7 + $0x1200] sm:$0xff]
    %v3501 = vld [vmem:[%s7 + $0x1208] sm:$0xff]
    %v3502 = vld [vmem:[%s7 + $0x1210] sm:$0xff]
    %v3503 = vld [vmem:[%s7 + $0x1218] sm:$0xff]
    %v3504 = vld [vmem:[%s7 + $0x1220] sm:$0xff]
    %v3505 = vld [vmem:[%s7 + $0x1228] sm:$0xff]
    %v3506 = vld [vmem:[%s7 + $0x1230] sm:$0xff]
    %v3507 = vld [vmem:[%s7 + $0x1238] sm:$0xff]
    %v3508 = vld [vmem:[%s7 + $0x1240] sm:$0xff]
    %v3509 = vld [vmem:[%s7 + $0x1248] sm:$0xff]
    %v3510 = vld [vmem:[%s7 + $0x1250] sm:$0xff]
    %v3511 = vld [vmem:[%s7 + $0x1258] sm:$0xff]
    %v3512 = vld [vmem:[%s7 + $0x1260] sm:$0xff]
    %v3513 = vld [vmem:[%s7 + $0x1268] sm:$0xff]
    %v3514 = vld [vmem:[%s7 + $0x1270] sm:$0xff]
    %v3515 = vld [vmem:[%s7 + $0x1278] sm:$0xff]
    %v3516 = vld [vmem:[%s7 + $0x1280] sm:$0xff]
    %v3517 = vld [vmem:[%s7 + $0x1288] sm:$0xff]
    %v3518 = vld [vmem:[%s7 + $0x1290] sm:$0xff]
    %v3519 = vld [vmem:[%s7 + $0x1298] sm:$0xff]
    %v3520 = vld [vmem:[%s7 + $0x12a0] sm:$0xff]
    %v3521 = vld [vmem:[%s7 + $0x12a8] sm:$0xff]
    %v3522 = vld [vmem:[%s7 + $0x12b0] sm:$0xff]
    %v3523 = vld [vmem:[%s7 + $0x12b8] sm:$0xff]
    %v3524 = vld [vmem:[%s7 + $0x12c0] sm:$0xff]
    %v3525 = vld [vmem:[%s7 + $0x12c8] sm:$0xff]
    %v3526 = vld [vmem:[%s7 + $0x12d0] sm:$0xff]
    %v3527 = vld [vmem:[%s7 + $0x12d8] sm:$0xff]
    %v3528 = vld [vmem:[%s7 + $0x12e0] sm:$0xff]
    %v3529 = vld [vmem:[%s7 + $0x12e8] sm:$0xff]
    %v3530 = vld [vmem:[%s7 + $0x12f0] sm:$0xff]
    %v3531 = vld [vmem:[%s7 + $0x12f8] sm:$0xff]
    %v3532 = vld [vmem:[%s7 + $0x1300] sm:$0xff]
    %v3533 = vld [vmem:[%s7 + $0x1308] sm:$0xff]
    %v3534 = vld [vmem:[%s7 + $0x1310] sm:$0xff]
    %v3535 = vld [vmem:[%s7 + $0x1318] sm:$0xff]
    %v3536 = vld [vmem:[%s7 + $0x1320] sm:$0xff]
    %v3537 = vld [vmem:[%s7 + $0x1328] sm:$0xff]
    %v3538 = vld [vmem:[%s7 + $0x1330] sm:$0xff]
    %v3539 = vld [vmem:[%s7 + $0x1338] sm:$0xff]
    %v3540 = vld [vmem:[%s7 + $0x1340] sm:$0xff]
    %v3541 = vld [vmem:[%s7 + $0x1348] sm:$0xff]
    %v3542 = vld [vmem:[%s7 + $0x1350] sm:$0xff]
    %v3543 = vld [vmem:[%s7 + $0x1358] sm:$0xff]
    %v3544 = vld [vmem:[%s7 + $0x1360] sm:$0xff]
    %v3545 = vld [vmem:[%s7 + $0x1368] sm:$0xff]
    %v3546 = vld [vmem:[%s7 + $0x1370] sm:$0xff]
    %v3547 = vld [vmem:[%s7 + $0x1378] sm:$0xff]
    %v3548 = vld [vmem:[%s7 + $0x1380] sm:$0xff]
    %v3549 = vld [vmem:[%s7 + $0x1388] sm:$0xff]
    %v3550 = vld [vmem:[%s7 + $0x1390] sm:$0xff]
    %v3551 = vld [vmem:[%s7 + $0x1398] sm:$0xff]
    %v3552 = vld [vmem:[%s7 + $0x13a0] sm:$0xff]
    %v3553 = vld [vmem:[%s7 + $0x13a8] sm:$0xff]
    %v3554 = vld [vmem:[%s7 + $0x13b0] sm:$0xff]
    %v3555 = vld [vmem:[%s7 + $0x13b8] sm:$0xff]
    %v3556 = vld [vmem:[%s7 + $0x13c0] sm:$0xff]
    %v3557 = vld [vmem:[%s7 + $0x13c8] sm:$0xff]
    %v3558 = vld [vmem:[%s7 + $0x13d0] sm:$0xff]
    %v3559 = vld [vmem:[%s7 + $0x13d8] sm:$0xff]
    %v3560 = vld [vmem:[%s7 + $0x13e0] sm:$0xff]
    %v3561 = vld [vmem:[%s7 + $0x13e8] sm:$0xff]
    %v3562 = vld [vmem:[%s7 + $0x13f0] sm:$0xff]
    %v3563 = vld [vmem:[%s7 + $0x13f8] sm:$0xff]
    %v3564 = vld [vmem:[%s7 + $0x1400] sm:$0xff]
    %v3565 = vld [vmem:[%s7 + $0x1408] sm:$0xff]
    %v3566 = vld [vmem:[%s7 + $0x1410] sm:$0xff]
    %v3567 = vld [vmem:[%s7 + $0x1418] sm:$0xff]
    %v3568 = vld [vmem:[%s7 + $0x1420] sm:$0xff]
    %v3569 = vld [vmem:[%s7 + $0x1428] sm:$0xff]
    %v3570 = vld [vmem:[%s7 + $0x1430] sm:$0xff]
    %v3571 = vld [vmem:[%s7 + $0x1438] sm:$0xff]
    %v3572 = vld [vmem:[%s7 + $0x1440] sm:$0xff]
    %v3573 = vld [vmem:[%s7 + $0x1448] sm:$0xff]
    %v3574 = vld [vmem:[%s7 + $0x1450] sm:$0xff]
    %v3575 = vld [vmem:[%s7 + $0x1458] sm:$0xff]
    %v3576 = vld [vmem:[%s7 + $0x1460] sm:$0xff]
    %v3577 = vld [vmem:[%s7 + $0x1468] sm:$0xff]
    %v3578 = vld [vmem:[%s7 + $0x1470] sm:$0xff]
    %v3579 = vld [vmem:[%s7 + $0x1478] sm:$0xff]
    %v3580 = vld [vmem:[%s7 + $0x1480] sm:$0xff]
    %v3581 = vld [vmem:[%s7 + $0x1488] sm:$0xff]
    %v3582 = vld [vmem:[%s7 + $0x1490] sm:$0xff]
    %v3583 = vld [vmem:[%s7 + $0x1498] sm:$0xff]
    %v3584 = vld [vmem:[%s7 + $0x14a0] sm:$0xff]
    %v3585 = vld [vmem:[%s7 + $0x14a8] sm:$0xff]
    %v3586 = vld [vmem:[%s7 + $0x14b0] sm:$0xff]
    %v3587 = vld [vmem:[%s7 + $0x14b8] sm:$0xff]
    %v3588 = vld [vmem:[%s7 + $0x14c0] sm:$0xff]
    %v3589 = vld [vmem:[%s7 + $0x14c8] sm:$0xff]
    %v3590 = vld [vmem:[%s7 + $0x14d0] sm:$0xff]
    %v3591 = vld [vmem:[%s7 + $0x14d8] sm:$0xff]
    %v3592 = vld [vmem:[%s7 + $0x14e0] sm:$0xff]
    %v3593 = vld [vmem:[%s7 + $0x14e8] sm:$0xff]
    %v3594 = vld [vmem:[%s7 + $0x14f0] sm:$0xff]
    %v3595 = vld [vmem:[%s7 + $0x14f8] sm:$0xff]
    %v3596 = vrot.slane %v1886, 3
    %v3597 = vrot.slane %v1887, 3
    %v3599 = vsel %vm2057, %v3597, 0
    %3601 = vmatprep.subr.mxu0 %v3429
    %3602 = vmatpush1.msra.mxu0 %v3428
    %3603 = vmatprep.subr.mxu0 %v3436
    %3604 = vmatpush1.msra.mxu0 %v3435
    %3605 = vmatprep.subr.mxu0 %v3443
    %3606 = vmatpush1.msra.mxu0 %v3442
    %3607 = vmatprep.subr.mxu0 %v3450
    %3608 = vmatpush1.msra.mxu0 %v3449
    %3609 = vmatprep.subr.mxu0 %v3457
    %3610 = vmatpush1.msra.mxu0 %v3456
    %3611 = vmatprep.subr.mxu0 %v3464
    %3612 = vmatpush1.msra.mxu0 %v3463
    %3613 = vmatprep.subr.mxu0 %v3471
    %3614 = vmatpush1.msra.mxu0 %v3470
    %3615 = vmatprep.subr.mxu0 %v3478
    %3616 = vmatpush1.msra.mxu0 %v3477
    %3617 = vmatprep.subr.mxu0 %v3485
    %3618 = vmatpush1.msra.mxu0 %v3484
    %3619 = vmatprep.subr.mxu0 %v3492
    %3620 = vmatpush1.msra.mxu0 %v3491
    %3621 = vmatprep.subr.mxu0 %v3499
    %3622 = vmatpush1.msra.mxu0 %v3498
    %3623 = vmatprep.subr.mxu0 %v3506
    %3624 = vmatpush1.msra.mxu0 %v3505
    %3625 = vmatprep.subr.mxu0 %v3513
    %3626 = vmatpush1.msra.mxu0 %v3512
    %3627 = vmatprep.subr.mxu0 %v3520
    %3628 = vmatpush1.msra.mxu0 %v3519
    %3629 = vmatprep.subr.mxu0 %v3527
    %3630 = vmatpush1.msra.mxu0 %v3526
    %3631 = vmatprep.subr.mxu0 %v3534
    %3632 = vmatpush1.msra.mxu0 %v3533
    %3633 = vmatprep.subr.mxu0 %v3541
    %3634 = vmatpush1.msra.mxu0 %v3540
    %3635 = vmatprep.subr.mxu0 %v3548
    %3636 = vmatpush1.msra.mxu0 %v3547
    %3637 = vmatprep.subr.mxu0 %v3555
    %3638 = vmatpush1.msra.mxu0 %v3554
    %3639 = vmatprep.subr.mxu0 %v3562
    %3640 = vmatpush1.msra.mxu0 %v3561
    %3641 = vmatprep.subr.mxu0 %v3569
    %3642 = vmatpush1.msra.mxu0 %v3568
    %3643 = vmatprep.subr.mxu0 %v3576
    %3644 = vmatpush1.msra.mxu0 %v3575
    %3645 = vmatprep.subr.mxu0 %v3583
    %3646 = vmatpush1.msra.mxu0 %v3582
    %3647 = vmatprep.subr.mxu0 %v3590
    %3648 = vmatpush1.msra.mxu0 %v3589
    %3649 = vmatprep.subr.mxu0 0.0
    %3650 = vmatpush1.msra.mxu0 0.0
    %3651 = vmatprep.subr.mxu0 0.0
    %3652 = vmatpush1.msra.mxu0 0.0
    %3653 = vmatprep.subr.mxu0 0.0
    %3654 = vmatpush1.msra.mxu0 0.0
    %3655 = vmatprep.subr.mxu0 0.0
    %3656 = vmatpush1.msra.mxu0 0.0
    %3657 = vmatprep.subr.mxu0 0.0
    %3658 = vmatpush1.msra.mxu0 0.0
    %3659 = vmatprep.subr.mxu0 0.0
    %3660 = vmatpush1.msra.mxu0 0.0
    %3661 = vmatprep.subr.mxu0 0.0
    %3662 = vmatpush1.msra.mxu0 0.0
    %3663 = vmatprep.subr.mxu0 0.0
    %3664 = vmatpush1.msra.mxu0 0.0
    %3665 = vmatprep.mubr.f32.mxu0 %v3599
    %3666 = vmatmul.mubr.f32.gmra.mrb[0].mxu0 %v3596
    %v3667 = vpop.f32.mrb[0].mxu0
    %v3668 = vadd.f32 0.0, %v3667
    %v3669 = vpop.f32.mrb[0].mxu0
    %v3670 = vadd.f32 0.0, %v3669
    %3671 = vdwg.mxu0
    %3672 = vmatprep.subr.mxu0 %v3431
    %3673 = vmatpush1.msra.mxu0 %v3430
    %3674 = vmatprep.subr.mxu0 %v3438
    %3675 = vmatpush1.msra.mxu0 %v3437
    %3676 = vmatprep.subr.mxu0 %v3445
    %3677 = vmatpush1.msra.mxu0 %v3444
    %3678 = vmatprep.subr.mxu0 %v3452
    %3679 = vmatpush1.msra.mxu0 %v3451
    %3680 = vmatprep.subr.mxu0 %v3459
    %3681 = vmatpush1.msra.mxu0 %v3458
    %3682 = vmatprep.subr.mxu0 %v3466
    %3683 = vmatpush1.msra.mxu0 %v3465
    %3684 = vmatprep.subr.mxu0 %v3473
    %3685 = vmatpush1.msra.mxu0 %v3472
    %3686 = vmatprep.subr.mxu0 %v3480
    %3687 = vmatpush1.msra.mxu0 %v3479
    %3688 = vmatprep.subr.mxu0 %v3487
    %3689 = vmatpush1.msra.mxu0 %v3486
    %3690 = vmatprep.subr.mxu0 %v3494
    %3691 = vmatpush1.msra.mxu0 %v3493
    %3692 = vmatprep.subr.mxu0 %v3501
    %3693 = vmatpush1.msra.mxu0 %v3500
    %3694 = vmatprep.subr.mxu0 %v3508
    %3695 = vmatpush1.msra.mxu0 %v3507
    %3696 = vmatprep.subr.mxu0 %v3515
    %3697 = vmatpush1.msra.mxu0 %v3514
    %3698 = vmatprep.subr.mxu0 %v3522
    %3699 = vmatpush1.msra.mxu0 %v3521
    %3700 = vmatprep.subr.mxu0 %v3529
    %3701 = vmatpush1.msra.mxu0 %v3528
    %3702 = vmatprep.subr.mxu0 %v3536
    %3703 = vmatpush1.msra.mxu0 %v3535
    %3704 = vmatprep.subr.mxu0 %v3543
    %3705 = vmatpush1.msra.mxu0 %v3542
    %3706 = vmatprep.subr.mxu0 %v3550
    %3707 = vmatpush1.msra.mxu0 %v3549
    %3708 = vmatprep.subr.mxu0 %v3557
    %3709 = vmatpush1.msra.mxu0 %v3556
    %3710 = vmatprep.subr.mxu0 %v3564
    %3711 = vmatpush1.msra.mxu0 %v3563
    %3712 = vmatprep.subr.mxu0 %v3571
    %3713 = vmatpush1.msra.mxu0 %v3570
    %3714 = vmatprep.subr.mxu0 %v3578
    %3715 = vmatpush1.msra.mxu0 %v3577
    %3716 = vmatprep.subr.mxu0 %v3585
    %3717 = vmatpush1.msra.mxu0 %v3584
    %3718 = vmatprep.subr.mxu0 %v3592
    %3719 = vmatpush1.msra.mxu0 %v3591
    %3720 = vmatprep.subr.mxu0 0.0
    %3721 = vmatpush1.msra.mxu0 0.0
    %3722 = vmatprep.subr.mxu0 0.0
    %3723 = vmatpush1.msra.mxu0 0.0
    %3724 = vmatprep.subr.mxu0 0.0
    %3725 = vmatpush1.msra.mxu0 0.0
    %3726 = vmatprep.subr.mxu0 0.0
    %3727 = vmatpush1.msra.mxu0 0.0
    %3728 = vmatprep.subr.mxu0 0.0
    %3729 = vmatpush1.msra.mxu0 0.0
    %3730 = vmatprep.subr.mxu0 0.0
    %3731 = vmatpush1.msra.mxu0 0.0
    %3732 = vmatprep.subr.mxu0 0.0
    %3733 = vmatpush1.msra.mxu0 0.0
    %3734 = vmatprep.subr.mxu0 0.0
    %3735 = vmatpush1.msra.mxu0 0.0
    %3736 = vmatprep.mubr.f32.mxu0 %v3599
    %3737 = vmatmul.mubr.f32.gmra.mrb[0].mxu0 %v3596
    %v3738 = vpop.f32.mrb[0].mxu0
    %v3739 = vadd.f32 0.0, %v3738
    %v3740 = vpop.f32.mrb[0].mxu0
    %v3741 = vadd.f32 0.0, %v3740
    %3742 = vdwg.mxu0
    %3743 = vmatprep.subr.mxu0 %v3433
    %3744 = vmatpush1.msra.mxu0 %v3432
    %3745 = vmatprep.subr.mxu0 %v3440
    %3746 = vmatpush1.msra.mxu0 %v3439
    %3747 = vmatprep.subr.mxu0 %v3447
    %3748 = vmatpush1.msra.mxu0 %v3446
    %3749 = vmatprep.subr.mxu0 %v3454
    %3750 = vmatpush1.msra.mxu0 %v3453
    %3751 = vmatprep.subr.mxu0 %v3461
    %3752 = vmatpush1.msra.mxu0 %v3460
    %3753 = vmatprep.subr.mxu0 %v3468
    %3754 = vmatpush1.msra.mxu0 %v3467
    %3755 = vmatprep.subr.mxu0 %v3475
    %3756 = vmatpush1.msra.mxu0 %v3474
    %3757 = vmatprep.subr.mxu0 %v3482
    %3758 = vmatpush1.msra.mxu0 %v3481
    %3759 = vmatprep.subr.mxu0 %v3489
    %3760 = vmatpush1.msra.mxu0 %v3488
    %3761 = vmatprep.subr.mxu0 %v3496
    %3762 = vmatpush1.msra.mxu0 %v3495
    %3763 = vmatprep.subr.mxu0 %v3503
    %3764 = vmatpush1.msra.mxu0 %v3502
    %3765 = vmatprep.subr.mxu0 %v3510
    %3766 = vmatpush1.msra.mxu0 %v3509
    %3767 = vmatprep.subr.mxu0 %v3517
    %3768 = vmatpush1.msra.mxu0 %v3516
    %3769 = vmatprep.subr.mxu0 %v3524
    %3770 = vmatpush1.msra.mxu0 %v3523
    %3771 = vmatprep.subr.mxu0 %v3531
    %3772 = vmatpush1.msra.mxu0 %v3530
    %3773 = vmatprep.subr.mxu0 %v3538
    %3774 = vmatpush1.msra.mxu0 %v3537
    %3775 = vmatprep.subr.mxu0 %v3545
    %3776 = vmatpush1.msra.mxu0 %v3544
    %3777 = vmatprep.subr.mxu0 %v3552
    %3778 = vmatpush1.msra.mxu0 %v3551
    %3779 = vmatprep.subr.mxu0 %v3559
    %3780 = vmatpush1.msra.mxu0 %v3558
    %3781 = vmatprep.subr.mxu0 %v3566
    %3782 = vmatpush1.msra.mxu0 %v3565
    %3783 = vmatprep.subr.mxu0 %v3573
    %3784 = vmatpush1.msra.mxu0 %v3572
    %3785 = vmatprep.subr.mxu0 %v3580
    %3786 = vmatpush1.msra.mxu0 %v3579
    %3787 = vmatprep.subr.mxu0 %v3587
    %3788 = vmatpush1.msra.mxu0 %v3586
    %3789 = vmatprep.subr.mxu0 %v3594
    %3790 = vmatpush1.msra.mxu0 %v3593
    %3791 = vmatprep.subr.mxu0 0.0
    %3792 = vmatpush1.msra.mxu0 0.0
    %3793 = vmatprep.subr.mxu0 0.0
    %3794 = vmatpush1.msra.mxu0 0.0
    %3795 = vmatprep.subr.mxu0 0.0
    %3796 = vmatpush1.msra.mxu0 0.0
    %3797 = vmatprep.subr.mxu0 0.0
    %3798 = vmatpush1.msra.mxu0 0.0
    %3799 = vmatprep.subr.mxu0 0.0
    %3800 = vmatpush1.msra.mxu0 0.0
    %3801 = vmatprep.subr.mxu0 0.0
    %3802 = vmatpush1.msra.mxu0 0.0
    %3803 = vmatprep.subr.mxu0 0.0
    %3804 = vmatpush1.msra.mxu0 0.0
    %3805 = vmatprep.subr.mxu0 0.0
    %3806 = vmatpush1.msra.mxu0 0.0
    %3807 = vmatprep.mubr.f32.mxu0 %v3599
    %3808 = vmatmul.mubr.f32.gmra.mrb[0].mxu0 %v3596
    %v3809 = vpop.f32.mrb[0].mxu0
    %v3810 = vadd.f32 0.0, %v3809
    %v3811 = vpop.f32.mrb[0].mxu0
    %v3812 = vadd.f32 0.0, %v3811
    %3813 = vdwg.mxu0
    %3814 = vmatprep.subr.mxu0 0.0
    %3815 = vmatpush1.msra.mxu0 %v3434
    %3816 = vmatprep.subr.mxu0 0.0
    %3817 = vmatpush1.msra.mxu0 %v3441
    %3818 = vmatprep.subr.mxu0 0.0
    %3819 = vmatpush1.msra.mxu0 %v3448
    %3820 = vmatprep.subr.mxu0 0.0
    %3821 = vmatpush1.msra.mxu0 %v3455
    %3822 = vmatprep.subr.mxu0 0.0
    %3823 = vmatpush1.msra.mxu0 %v3462
    %3824 = vmatprep.subr.mxu0 0.0
    %3825 = vmatpush1.msra.mxu0 %v3469
    %3826 = vmatprep.subr.mxu0 0.0
    %3827 = vmatpush1.msra.mxu0 %v3476
    %3828 = vmatprep.subr.mxu0 0.0
    %3829 = vmatpush1.msra.mxu0 %v3483
    %3830 = vmatprep.subr.mxu0 0.0
    %3831 = vmatpush1.msra.mxu0 %v3490
    %3832 = vmatprep.subr.mxu0 0.0
    %3833 = vmatpush1.msra.mxu0 %v3497
    %3834 = vmatprep.subr.mxu0 0.0
    %3835 = vmatpush1.msra.mxu0 %v3504
    %3836 = vmatprep.subr.mxu0 0.0
    %3837 = vmatpush1.msra.mxu0 %v3511
    %3838 = vmatprep.subr.mxu0 0.0
    %3839 = vmatpush1.msra.mxu0 %v3518
    %3840 = vmatprep.subr.mxu0 0.0
    %3841 = vmatpush1.msra.mxu0 %v3525
    %3842 = vmatprep.subr.mxu0 0.0
    %3843 = vmatpush1.msra.mxu0 %v3532
    %3844 = vmatprep.subr.mxu0 0.0
    %3845 = vmatpush1.msra.mxu0 %v3539
    %3846 = vmatprep.subr.mxu0 0.0
    %3847 = vmatpush1.msra.mxu0 %v3546
    %3848 = vmatprep.subr.mxu0 0.0
    %3849 = vmatpush1.msra.mxu0 %v3553
    %3850 = vmatprep.subr.mxu0 0.0
    %3851 = vmatpush1.msra.mxu0 %v3560
    %3852 = vmatprep.subr.mxu0 0.0
    %3853 = vmatpush1.msra.mxu0 %v3567
    %3854 = vmatprep.subr.mxu0 0.0
    %3855 = vmatpush1.msra.mxu0 %v3574
    %3856 = vmatprep.subr.mxu0 0.0
    %3857 = vmatpush1.msra.mxu0 %v3581
    %3858 = vmatprep.subr.mxu0 0.0
    %3859 = vmatpush1.msra.mxu0 %v3588
    %3860 = vmatprep.subr.mxu0 0.0
    %3861 = vmatpush1.msra.mxu0 %v3595
    %3862 = vmatprep.subr.mxu0 0.0
    %3863 = vmatpush1.msra.mxu0 0.0
    %3864 = vmatprep.subr.mxu0 0.0
    %3865 = vmatpush1.msra.mxu0 0.0
    %3866 = vmatprep.subr.mxu0 0.0
    %3867 = vmatpush1.msra.mxu0 0.0
    %3868 = vmatprep.subr.mxu0 0.0
    %3869 = vmatpush1.msra.mxu0 0.0
    %3870 = vmatprep.subr.mxu0 0.0
    %3871 = vmatpush1.msra.mxu0 0.0
    %3872 = vmatprep.subr.mxu0 0.0
    %3873 = vmatpush1.msra.mxu0 0.0
    %3874 = vmatprep.subr.mxu0 0.0
    %3875 = vmatpush1.msra.mxu0 0.0
    %3876 = vmatprep.subr.mxu0 0.0
    %3877 = vmatpush1.msra.mxu0 0.0
    %3878 = vmatprep.mubr.f32.mxu0 %v3599
    %3879 = vmatmul.mubr.f32.gmra.mrb[0].mxu0 %v3596
    %v3880 = vpop.f32.mrb[0].mxu0
    %v3881 = vadd.f32 0.0, %v3880
    %v3882 = vpop.f32.mrb[0].mxu0
    %3883 = vdwg.mxu0
    %v3891 = vcombine.low %v3668, %v3670
    %v3892 = vcombine.low %v3739, %v3741
    %v3893 = vcombine.low %v3810, %v3812
    %v3895 = vunpack.c.l.s4 1966171168
    %v3896 = vunpack.c.0.s8 %v3895
    %v3897 = vlaneseq
    %v3898 = vshrl.u32 %v3897, 7
    %v3899 = vsub.s32 %v3896, %v3898
    %v3900 = vrot.slane %v3891, %v3899
    %v3902 = vunpack.c.l.s4 1966171168
    %v3903 = vunpack.c.0.s8 %v3902
    %v3904 = vlaneseq
    %v3905 = vshrl.u32 %v3904, 7
    %v3906 = vsub.s32 %v3903, %v3905
    %v3907 = vrot.slane %v3892, %v3906
    %v3909 = vunpack.c.l.s4 1966171168
    %v3910 = vunpack.c.0.s8 %v3909
    %v3911 = vlaneseq
    %v3912 = vshrl.u32 %v3911, 7
    %v3913 = vsub.s32 %v3910, %v3912
    %v3914 = vrot.slane %v3893, %v3913
    %v3916 = vunpack.c.l.s4 1966171168
    %v3917 = vunpack.c.0.s8 %v3916
    %v3918 = vlaneseq
    %v3919 = vshrl.u32 %v3918, 7
    %v3920 = vsub.s32 %v3917, %v3919
    %v3921 = vrot.slane %v3881, %v3920
    %v3922 = vcombine.low %v3900, %v3907
    %v3923 = vcombine.low %v3914, %v3921
    %v3925 = vunpack.c.l.s4 1966171168
    %v3926 = vunpack.c.0.s8 %v3925
    %v3927 = vlaneseq
    %v3928 = vshrl.u32 %v3927, 7
    %v3929 = vsub.s32 %v3926, %v3928
    %v3930 = vrot.slane %v3922, %v3929
    %v3932 = vunpack.c.l.s4 1966171168
    %v3933 = vunpack.c.0.s8 %v3932
    %v3934 = vlaneseq
    %v3935 = vshrl.u32 %v3934, 7
    %v3936 = vsub.s32 %v3933, %v3935
    %v3937 = vrot.slane %v3923, %v3936
    %v3938 = vcombine.low %v3930, %v3937
    %v3940 = vadd.f32 %v3427, %v3938
    %v3941 = vld [vmem:[%s7 + $0x1500] sm:$0xff]
    %v3942 = vld [vmem:[%s7 + $0x1508] sm:$0xff]
    %v3943 = vld [vmem:[%s7 + $0x1510] sm:$0xff]
    %v3944 = vld [vmem:[%s7 + $0x1518] sm:$0xff]
    %v3945 = vld [vmem:[%s7 + $0x1520] sm:$0xff]
    %v3946 = vld [vmem:[%s7 + $0x1528] sm:$0xff]
    %v3947 = vld [vmem:[%s7 + $0x1530] sm:$0xff]
    %v3948 = vld [vmem:[%s7 + $0x1538] sm:$0xff]
    %v3949 = vld [vmem:[%s7 + $0x1540] sm:$0xff]
    %v3950 = vld [vmem:[%s7 + $0x1548] sm:$0xff]
    %v3951 = vld [vmem:[%s7 + $0x1550] sm:$0xff]
    %v3952 = vld [vmem:[%s7 + $0x1558] sm:$0xff]
    %v3953 = vld [vmem:[%s7 + $0x1560] sm:$0xff]
    %v3954 = vld [vmem:[%s7 + $0x1568] sm:$0xff]
    %v3955 = vld [vmem:[%s7 + $0x1570] sm:$0xff]
    %v3956 = vld [vmem:[%s7 + $0x1578] sm:$0xff]
    %v3957 = vld [vmem:[%s7 + $0x1580] sm:$0xff]
    %v3958 = vld [vmem:[%s7 + $0x1588] sm:$0xff]
    %v3959 = vld [vmem:[%s7 + $0x1590] sm:$0xff]
    %v3960 = vld [vmem:[%s7 + $0x1598] sm:$0xff]
    %v3961 = vld [vmem:[%s7 + $0x15a0] sm:$0xff]
    %v3962 = vld [vmem:[%s7 + $0x15a8] sm:$0xff]
    %v3963 = vld [vmem:[%s7 + $0x15b0] sm:$0xff]
    %v3964 = vld [vmem:[%s7 + $0x15b8] sm:$0xff]
    %v3965 = vld [vmem:[%s7 + $0x15c0] sm:$0xff]
    %v3966 = vld [vmem:[%s7 + $0x15c8] sm:$0xff]
    %v3967 = vld [vmem:[%s7 + $0x15d0] sm:$0xff]
    %v3968 = vld [vmem:[%s7 + $0x15d8] sm:$0xff]
    %v3969 = vld [vmem:[%s7 + $0x15e0] sm:$0xff]
    %v3970 = vld [vmem:[%s7 + $0x15e8] sm:$0xff]
    %v3971 = vld [vmem:[%s7 + $0x15f0] sm:$0xff]
    %v3972 = vld [vmem:[%s7 + $0x15f8] sm:$0xff]
    %v3973 = vld [vmem:[%s7 + $0x1600] sm:$0xff]
    %v3974 = vld [vmem:[%s7 + $0x1608] sm:$0xff]
    %v3975 = vld [vmem:[%s7 + $0x1610] sm:$0xff]
    %v3976 = vld [vmem:[%s7 + $0x1618] sm:$0xff]
    %v3977 = vld [vmem:[%s7 + $0x1620] sm:$0xff]
    %v3978 = vld [vmem:[%s7 + $0x1628] sm:$0xff]
    %v3979 = vld [vmem:[%s7 + $0x1630] sm:$0xff]
    %v3980 = vld [vmem:[%s7 + $0x1638] sm:$0xff]
    %v3981 = vld [vmem:[%s7 + $0x1640] sm:$0xff]
    %v3982 = vld [vmem:[%s7 + $0x1648] sm:$0xff]
    %v3983 = vld [vmem:[%s7 + $0x1650] sm:$0xff]
    %v3984 = vld [vmem:[%s7 + $0x1658] sm:$0xff]
    %v3985 = vld [vmem:[%s7 + $0x1660] sm:$0xff]
    %v3986 = vld [vmem:[%s7 + $0x1668] sm:$0xff]
    %v3987 = vld [vmem:[%s7 + $0x1670] sm:$0xff]
    %v3988 = vld [vmem:[%s7 + $0x1678] sm:$0xff]
    %v3989 = vld [vmem:[%s7 + $0x1680] sm:$0xff]
    %v3990 = vld [vmem:[%s7 + $0x1688] sm:$0xff]
    %v3991 = vld [vmem:[%s7 + $0x1690] sm:$0xff]
    %v3992 = vld [vmem:[%s7 + $0x1698] sm:$0xff]
    %v3993 = vld [vmem:[%s7 + $0x16a0] sm:$0xff]
    %v3994 = vld [vmem:[%s7 + $0x16a8] sm:$0xff]
    %v3995 = vld [vmem:[%s7 + $0x16b0] sm:$0xff]
    %v3996 = vld [vmem:[%s7 + $0x16b8] sm:$0xff]
    %v3997 = vld [vmem:[%s7 + $0x16c0] sm:$0xff]
    %v3998 = vld [vmem:[%s7 + $0x16c8] sm:$0xff]
    %v3999 = vld [vmem:[%s7 + $0x16d0] sm:$0xff]
    %v4000 = vld [vmem:[%s7 + $0x16d8] sm:$0xff]
    %v4001 = vld [vmem:[%s7 + $0x16e0] sm:$0xff]
    %v4002 = vld [vmem:[%s7 + $0x16e8] sm:$0xff]
    %v4003 = vld [vmem:[%s7 + $0x16f0] sm:$0xff]
    %v4004 = vld [vmem:[%s7 + $0x16f8] sm:$0xff]
    %v4005 = vld [vmem:[%s7 + $0x1700] sm:$0xff]
    %v4006 = vld [vmem:[%s7 + $0x1708] sm:$0xff]
    %v4007 = vld [vmem:[%s7 + $0x1710] sm:$0xff]
    %v4008 = vld [vmem:[%s7 + $0x1718] sm:$0xff]
    %v4009 = vld [vmem:[%s7 + $0x1720] sm:$0xff]
    %v4010 = vld [vmem:[%s7 + $0x1728] sm:$0xff]
    %v4011 = vld [vmem:[%s7 + $0x1730] sm:$0xff]
    %v4012 = vld [vmem:[%s7 + $0x1738] sm:$0xff]
    %v4013 = vld [vmem:[%s7 + $0x1740] sm:$0xff]
    %v4014 = vld [vmem:[%s7 + $0x1748] sm:$0xff]
    %v4015 = vld [vmem:[%s7 + $0x1750] sm:$0xff]
    %v4016 = vld [vmem:[%s7 + $0x1758] sm:$0xff]
    %v4017 = vld [vmem:[%s7 + $0x1760] sm:$0xff]
    %v4018 = vld [vmem:[%s7 + $0x1768] sm:$0xff]
    %v4019 = vld [vmem:[%s7 + $0x1770] sm:$0xff]
    %v4020 = vld [vmem:[%s7 + $0x1778] sm:$0xff]
    %v4021 = vld [vmem:[%s7 + $0x1780] sm:$0xff]
    %v4022 = vld [vmem:[%s7 + $0x1788] sm:$0xff]
    %v4023 = vld [vmem:[%s7 + $0x1790] sm:$0xff]
    %v4024 = vld [vmem:[%s7 + $0x1798] sm:$0xff]
    %v4025 = vld [vmem:[%s7 + $0x17a0] sm:$0xff]
    %v4026 = vld [vmem:[%s7 + $0x17a8] sm:$0xff]
    %v4027 = vld [vmem:[%s7 + $0x17b0] sm:$0xff]
    %v4028 = vld [vmem:[%s7 + $0x17b8] sm:$0xff]
    %v4029 = vld [vmem:[%s7 + $0x17c0] sm:$0xff]
    %v4030 = vld [vmem:[%s7 + $0x17c8] sm:$0xff]
    %v4031 = vld [vmem:[%s7 + $0x17d0] sm:$0xff]
    %v4032 = vld [vmem:[%s7 + $0x17d8] sm:$0xff]
    %v4033 = vld [vmem:[%s7 + $0x17e0] sm:$0xff]
    %v4034 = vld [vmem:[%s7 + $0x17e8] sm:$0xff]
    %v4035 = vld [vmem:[%s7 + $0x17f0] sm:$0xff]
    %v4036 = vld [vmem:[%s7 + $0x17f8] sm:$0xff]
    %v4037 = vld [vmem:[%s7 + $0x1800] sm:$0xff]
    %v4038 = vld [vmem:[%s7 + $0x1808] sm:$0xff]
    %v4039 = vld [vmem:[%s7 + $0x1810] sm:$0xff]
    %v4040 = vld [vmem:[%s7 + $0x1818] sm:$0xff]
    %v4041 = vld [vmem:[%s7 + $0x1820] sm:$0xff]
    %v4042 = vld [vmem:[%s7 + $0x1828] sm:$0xff]
    %v4043 = vld [vmem:[%s7 + $0x1830] sm:$0xff]
    %v4044 = vld [vmem:[%s7 + $0x1838] sm:$0xff]
    %v4045 = vld [vmem:[%s7 + $0x1840] sm:$0xff]
    %v4046 = vld [vmem:[%s7 + $0x1848] sm:$0xff]
    %v4047 = vld [vmem:[%s7 + $0x1850] sm:$0xff]
    %v4048 = vld [vmem:[%s7 + $0x1858] sm:$0xff]
    %v4049 = vld [vmem:[%s7 + $0x1860] sm:$0xff]
    %v4050 = vld [vmem:[%s7 + $0x1868] sm:$0xff]
    %v4051 = vld [vmem:[%s7 + $0x1870] sm:$0xff]
    %v4052 = vld [vmem:[%s7 + $0x1878] sm:$0xff]
    %v4053 = vld [vmem:[%s7 + $0x1880] sm:$0xff]
    %v4054 = vld [vmem:[%s7 + $0x1888] sm:$0xff]
    %v4055 = vld [vmem:[%s7 + $0x1890] sm:$0xff]
    %v4056 = vld [vmem:[%s7 + $0x1898] sm:$0xff]
    %v4057 = vld [vmem:[%s7 + $0x18a0] sm:$0xff]
    %v4058 = vld [vmem:[%s7 + $0x18a8] sm:$0xff]
    %v4059 = vld [vmem:[%s7 + $0x18b0] sm:$0xff]
    %v4060 = vld [vmem:[%s7 + $0x18b8] sm:$0xff]
    %v4061 = vld [vmem:[%s7 + $0x18c0] sm:$0xff]
    %v4062 = vld [vmem:[%s7 + $0x18c8] sm:$0xff]
    %v4063 = vld [vmem:[%s7 + $0x18d0] sm:$0xff]
    %v4064 = vld [vmem:[%s7 + $0x18d8] sm:$0xff]
    %v4065 = vld [vmem:[%s7 + $0x18e0] sm:$0xff]
    %v4066 = vld [vmem:[%s7 + $0x18e8] sm:$0xff]
    %v4067 = vld [vmem:[%s7 + $0x18f0] sm:$0xff]
    %v4068 = vld [vmem:[%s7 + $0x18f8] sm:$0xff]
    %v4069 = vld [vmem:[%s7 + $0x1900] sm:$0xff]
    %v4070 = vld [vmem:[%s7 + $0x1908] sm:$0xff]
    %v4071 = vld [vmem:[%s7 + $0x1910] sm:$0xff]
    %v4072 = vld [vmem:[%s7 + $0x1918] sm:$0xff]
    %v4073 = vld [vmem:[%s7 + $0x1920] sm:$0xff]
    %v4074 = vld [vmem:[%s7 + $0x1928] sm:$0xff]
    %v4075 = vld [vmem:[%s7 + $0x1930] sm:$0xff]
    %v4076 = vld [vmem:[%s7 + $0x1938] sm:$0xff]
    %v4077 = vld [vmem:[%s7 + $0x1940] sm:$0xff]
    %v4078 = vld [vmem:[%s7 + $0x1948] sm:$0xff]
    %v4079 = vld [vmem:[%s7 + $0x1950] sm:$0xff]
    %v4080 = vld [vmem:[%s7 + $0x1958] sm:$0xff]
    %v4081 = vld [vmem:[%s7 + $0x1960] sm:$0xff]
    %v4082 = vld [vmem:[%s7 + $0x1968] sm:$0xff]
    %v4083 = vld [vmem:[%s7 + $0x1970] sm:$0xff]
    %v4084 = vld [vmem:[%s7 + $0x1978] sm:$0xff]
    %v4085 = vld [vmem:[%s7 + $0x1980] sm:$0xff]
    %v4086 = vld [vmem:[%s7 + $0x1988] sm:$0xff]
    %v4087 = vld [vmem:[%s7 + $0x1990] sm:$0xff]
    %v4088 = vld [vmem:[%s7 + $0x1998] sm:$0xff]
    %v4089 = vld [vmem:[%s7 + $0x19a0] sm:$0xff]
    %v4090 = vld [vmem:[%s7 + $0x19a8] sm:$0xff]
    %v4091 = vld [vmem:[%s7 + $0x19b0] sm:$0xff]
    %v4092 = vld [vmem:[%s7 + $0x19b8] sm:$0xff]
    %v4093 = vld [vmem:[%s7 + $0x19c0] sm:$0xff]
    %v4094 = vld [vmem:[%s7 + $0x19c8] sm:$0xff]
    %v4095 = vld [vmem:[%s7 + $0x19d0] sm:$0xff]
    %v4096 = vld [vmem:[%s7 + $0x19d8] sm:$0xff]
    %v4097 = vld [vmem:[%s7 + $0x19e0] sm:$0xff]
    %v4098 = vld [vmem:[%s7 + $0x19e8] sm:$0xff]
    %v4099 = vld [vmem:[%s7 + $0x19f0] sm:$0xff]
    %v4100 = vld [vmem:[%s7 + $0x19f8] sm:$0xff]
    %v4101 = vld [vmem:[%s7 + $0x1a00] sm:$0xff]
    %v4102 = vld [vmem:[%s7 + $0x1a08] sm:$0xff]
    %v4103 = vld [vmem:[%s7 + $0x1a10] sm:$0xff]
    %v4104 = vld [vmem:[%s7 + $0x1a18] sm:$0xff]
    %v4105 = vld [vmem:[%s7 + $0x1a20] sm:$0xff]
    %v4106 = vld [vmem:[%s7 + $0x1a28] sm:$0xff]
    %v4107 = vld [vmem:[%s7 + $0x1a30] sm:$0xff]
    %v4108 = vld [vmem:[%s7 + $0x1a38] sm:$0xff]
    %v4109 = vrot.slane %v1886, 4
    %v4110 = vrot.slane %v1887, 4
    %v4112 = vsel %vm2057, %v4110, 0
    %4114 = vmatprep.subr.mxu0 %v3942
    %4115 = vmatpush1.msra.mxu0 %v3941
    %4116 = vmatprep.subr.mxu0 %v3949
    %4117 = vmatpush1.msra.mxu0 %v3948
    %4118 = vmatprep.subr.mxu0 %v3956
    %4119 = vmatpush1.msra.mxu0 %v3955
    %4120 = vmatprep.subr.mxu0 %v3963
    %4121 = vmatpush1.msra.mxu0 %v3962
    %4122 = vmatprep.subr.mxu0 %v3970
    %4123 = vmatpush1.msra.mxu0 %v3969
    %4124 = vmatprep.subr.mxu0 %v3977
    %4125 = vmatpush1.msra.mxu0 %v3976
    %4126 = vmatprep.subr.mxu0 %v3984
    %4127 = vmatpush1.msra.mxu0 %v3983
    %4128 = vmatprep.subr.mxu0 %v3991
    %4129 = vmatpush1.msra.mxu0 %v3990
    %4130 = vmatprep.subr.mxu0 %v3998
    %4131 = vmatpush1.msra.mxu0 %v3997
    %4132 = vmatprep.subr.mxu0 %v4005
    %4133 = vmatpush1.msra.mxu0 %v4004
    %4134 = vmatprep.subr.mxu0 %v4012
    %4135 = vmatpush1.msra.mxu0 %v4011
    %4136 = vmatprep.subr.mxu0 %v4019
    %4137 = vmatpush1.msra.mxu0 %v4018
    %4138 = vmatprep.subr.mxu0 %v4026
    %4139 = vmatpush1.msra.mxu0 %v4025
    %4140 = vmatprep.subr.mxu0 %v4033
    %4141 = vmatpush1.msra.mxu0 %v4032
    %4142 = vmatprep.subr.mxu0 %v4040
    %4143 = vmatpush1.msra.mxu0 %v4039
    %4144 = vmatprep.subr.mxu0 %v4047
    %4145 = vmatpush1.msra.mxu0 %v4046
    %4146 = vmatprep.subr.mxu0 %v4054
    %4147 = vmatpush1.msra.mxu0 %v4053
    %4148 = vmatprep.subr.mxu0 %v4061
    %4149 = vmatpush1.msra.mxu0 %v4060
    %4150 = vmatprep.subr.mxu0 %v4068
    %4151 = vmatpush1.msra.mxu0 %v4067
    %4152 = vmatprep.subr.mxu0 %v4075
    %4153 = vmatpush1.msra.mxu0 %v4074
    %4154 = vmatprep.subr.mxu0 %v4082
    %4155 = vmatpush1.msra.mxu0 %v4081
    %4156 = vmatprep.subr.mxu0 %v4089
    %4157 = vmatpush1.msra.mxu0 %v4088
    %4158 = vmatprep.subr.mxu0 %v4096
    %4159 = vmatpush1.msra.mxu0 %v4095
    %4160 = vmatprep.subr.mxu0 %v4103
    %4161 = vmatpush1.msra.mxu0 %v4102
    %4162 = vmatprep.subr.mxu0 0.0
    %4163 = vmatpush1.msra.mxu0 0.0
    %4164 = vmatprep.subr.mxu0 0.0
    %4165 = vmatpush1.msra.mxu0 0.0
    %4166 = vmatprep.subr.mxu0 0.0
    %4167 = vmatpush1.msra.mxu0 0.0
    %4168 = vmatprep.subr.mxu0 0.0
    %4169 = vmatpush1.msra.mxu0 0.0
    %4170 = vmatprep.subr.mxu0 0.0
    %4171 = vmatpush1.msra.mxu0 0.0
    %4172 = vmatprep.subr.mxu0 0.0
    %4173 = vmatpush1.msra.mxu0 0.0
    %4174 = vmatprep.subr.mxu0 0.0
    %4175 = vmatpush1.msra.mxu0 0.0
    %4176 = vmatprep.subr.mxu0 0.0
    %4177 = vmatpush1.msra.mxu0 0.0
    %4178 = vmatprep.mubr.f32.mxu0 %v4112
    %4179 = vmatmul.mubr.f32.gmra.mrb[0].mxu0 %v4109
    %v4180 = vpop.f32.mrb[0].mxu0
    %v4181 = vadd.f32 0.0, %v4180
    %v4182 = vpop.f32.mrb[0].mxu0
    %v4183 = vadd.f32 0.0, %v4182
    %4184 = vdwg.mxu0
    %4185 = vmatprep.subr.mxu0 %v3944
    %4186 = vmatpush1.msra.mxu0 %v3943
    %4187 = vmatprep.subr.mxu0 %v3951
    %4188 = vmatpush1.msra.mxu0 %v3950
    %4189 = vmatprep.subr.mxu0 %v3958
    %4190 = vmatpush1.msra.mxu0 %v3957
    %4191 = vmatprep.subr.mxu0 %v3965
    %4192 = vmatpush1.msra.mxu0 %v3964
    %4193 = vmatprep.subr.mxu0 %v3972
    %4194 = vmatpush1.msra.mxu0 %v3971
    %4195 = vmatprep.subr.mxu0 %v3979
    %4196 = vmatpush1.msra.mxu0 %v3978
    %4197 = vmatprep.subr.mxu0 %v3986
    %4198 = vmatpush1.msra.mxu0 %v3985
    %4199 = vmatprep.subr.mxu0 %v3993
    %4200 = vmatpush1.msra.mxu0 %v3992
    %4201 = vmatprep.subr.mxu0 %v4000
    %4202 = vmatpush1.msra.mxu0 %v3999
    %4203 = vmatprep.subr.mxu0 %v4007
    %4204 = vmatpush1.msra.mxu0 %v4006
    %4205 = vmatprep.subr.mxu0 %v4014
    %4206 = vmatpush1.msra.mxu0 %v4013
    %4207 = vmatprep.subr.mxu0 %v4021
    %4208 = vmatpush1.msra.mxu0 %v4020
    %4209 = vmatprep.subr.mxu0 %v4028
    %4210 = vmatpush1.msra.mxu0 %v4027
    %4211 = vmatprep.subr.mxu0 %v4035
    %4212 = vmatpush1.msra.mxu0 %v4034
    %4213 = vmatprep.subr.mxu0 %v4042
    %4214 = vmatpush1.msra.mxu0 %v4041
    %4215 = vmatprep.subr.mxu0 %v4049
    %4216 = vmatpush1.msra.mxu0 %v4048
    %4217 = vmatprep.subr.mxu0 %v4056
    %4218 = vmatpush1.msra.mxu0 %v4055
    %4219 = vmatprep.subr.mxu0 %v4063
    %4220 = vmatpush1.msra.mxu0 %v4062
    %4221 = vmatprep.subr.mxu0 %v4070
    %4222 = vmatpush1.msra.mxu0 %v4069
    %4223 = vmatprep.subr.mxu0 %v4077
    %4224 = vmatpush1.msra.mxu0 %v4076
    %4225 = vmatprep.subr.mxu0 %v4084
    %4226 = vmatpush1.msra.mxu0 %v4083
    %4227 = vmatprep.subr.mxu0 %v4091
    %4228 = vmatpush1.msra.mxu0 %v4090
    %4229 = vmatprep.subr.mxu0 %v4098
    %4230 = vmatpush1.msra.mxu0 %v4097
    %4231 = vmatprep.subr.mxu0 %v4105
    %4232 = vmatpush1.msra.mxu0 %v4104
    %4233 = vmatprep.subr.mxu0 0.0
    %4234 = vmatpush1.msra.mxu0 0.0
    %4235 = vmatprep.subr.mxu0 0.0
    %4236 = vmatpush1.msra.mxu0 0.0
    %4237 = vmatprep.subr.mxu0 0.0
    %4238 = vmatpush1.msra.mxu0 0.0
    %4239 = vmatprep.subr.mxu0 0.0
    %4240 = vmatpush1.msra.mxu0 0.0
    %4241 = vmatprep.subr.mxu0 0.0
    %4242 = vmatpush1.msra.mxu0 0.0
    %4243 = vmatprep.subr.mxu0 0.0
    %4244 = vmatpush1.msra.mxu0 0.0
    %4245 = vmatprep.subr.mxu0 0.0
    %4246 = vmatpush1.msra.mxu0 0.0
    %4247 = vmatprep.subr.mxu0 0.0
    %4248 = vmatpush1.msra.mxu0 0.0
    %4249 = vmatprep.mubr.f32.mxu0 %v4112
    %4250 = vmatmul.mubr.f32.gmra.mrb[0].mxu0 %v4109
    %v4251 = vpop.f32.mrb[0].mxu0
    %v4252 = vadd.f32 0.0, %v4251
    %v4253 = vpop.f32.mrb[0].mxu0
    %v4254 = vadd.f32 0.0, %v4253
    %4255 = vdwg.mxu0
    %4256 = vmatprep.subr.mxu0 %v3946
    %4257 = vmatpush1.msra.mxu0 %v3945
    %4258 = vmatprep.subr.mxu0 %v3953
    %4259 = vmatpush1.msra.mxu0 %v3952
    %4260 = vmatprep.subr.mxu0 %v3960
    %4261 = vmatpush1.msra.mxu0 %v3959
    %4262 = vmatprep.subr.mxu0 %v3967
    %4263 = vmatpush1.msra.mxu0 %v3966
    %4264 = vmatprep.subr.mxu0 %v3974
    %4265 = vmatpush1.msra.mxu0 %v3973
    %4266 = vmatprep.subr.mxu0 %v3981
    %4267 = vmatpush1.msra.mxu0 %v3980
    %4268 = vmatprep.subr.mxu0 %v3988
    %4269 = vmatpush1.msra.mxu0 %v3987
    %4270 = vmatprep.subr.mxu0 %v3995
    %4271 = vmatpush1.msra.mxu0 %v3994
    %4272 = vmatprep.subr.mxu0 %v4002
    %4273 = vmatpush1.msra.mxu0 %v4001
    %4274 = vmatprep.subr.mxu0 %v4009
    %4275 = vmatpush1.msra.mxu0 %v4008
    %4276 = vmatprep.subr.mxu0 %v4016
    %4277 = vmatpush1.msra.mxu0 %v4015
    %4278 = vmatprep.subr.mxu0 %v4023
    %4279 = vmatpush1.msra.mxu0 %v4022
    %4280 = vmatprep.subr.mxu0 %v4030
    %4281 = vmatpush1.msra.mxu0 %v4029
    %4282 = vmatprep.subr.mxu0 %v4037
    %4283 = vmatpush1.msra.mxu0 %v4036
    %4284 = vmatprep.subr.mxu0 %v4044
    %4285 = vmatpush1.msra.mxu0 %v4043
    %4286 = vmatprep.subr.mxu0 %v4051
    %4287 = vmatpush1.msra.mxu0 %v4050
    %4288 = vmatprep.subr.mxu0 %v4058
    %4289 = vmatpush1.msra.mxu0 %v4057
    %4290 = vmatprep.subr.mxu0 %v4065
    %4291 = vmatpush1.msra.mxu0 %v4064
    %4292 = vmatprep.subr.mxu0 %v4072
    %4293 = vmatpush1.msra.mxu0 %v4071
    %4294 = vmatprep.subr.mxu0 %v4079
    %4295 = vmatpush1.msra.mxu0 %v4078
    %4296 = vmatprep.subr.mxu0 %v4086
    %4297 = vmatpush1.msra.mxu0 %v4085
    %4298 = vmatprep.subr.mxu0 %v4093
    %4299 = vmatpush1.msra.mxu0 %v4092
    %4300 = vmatprep.subr.mxu0 %v4100
    %4301 = vmatpush1.msra.mxu0 %v4099
    %4302 = vmatprep.subr.mxu0 %v4107
    %4303 = vmatpush1.msra.mxu0 %v4106
    %4304 = vmatprep.subr.mxu0 0.0
    %4305 = vmatpush1.msra.mxu0 0.0
    %4306 = vmatprep.subr.mxu0 0.0
    %4307 = vmatpush1.msra.mxu0 0.0
    %4308 = vmatprep.subr.mxu0 0.0
    %4309 = vmatpush1.msra.mxu0 0.0
    %4310 = vmatprep.subr.mxu0 0.0
    %4311 = vmatpush1.msra.mxu0 0.0
    %4312 = vmatprep.subr.mxu0 0.0
    %4313 = vmatpush1.msra.mxu0 0.0
    %4314 = vmatprep.subr.mxu0 0.0
    %4315 = vmatpush1.msra.mxu0 0.0
    %4316 = vmatprep.subr.mxu0 0.0
    %4317 = vmatpush1.msra.mxu0 0.0
    %4318 = vmatprep.subr.mxu0 0.0
    %4319 = vmatpush1.msra.mxu0 0.0
    %4320 = vmatprep.mubr.f32.mxu0 %v4112
    %4321 = vmatmul.mubr.f32.gmra.mrb[0].mxu0 %v4109
    %v4322 = vpop.f32.mrb[0].mxu0
    %v4323 = vadd.f32 0.0, %v4322
    %v4324 = vpop.f32.mrb[0].mxu0
    %v4325 = vadd.f32 0.0, %v4324
    %4326 = vdwg.mxu0
    %4327 = vmatprep.subr.mxu0 0.0
    %4328 = vmatpush1.msra.mxu0 %v3947
    %4329 = vmatprep.subr.mxu0 0.0
    %4330 = vmatpush1.msra.mxu0 %v3954
    %4331 = vmatprep.subr.mxu0 0.0
    %4332 = vmatpush1.msra.mxu0 %v3961
    %4333 = vmatprep.subr.mxu0 0.0
    %4334 = vmatpush1.msra.mxu0 %v3968
    %4335 = vmatprep.subr.mxu0 0.0
    %4336 = vmatpush1.msra.mxu0 %v3975
    %4337 = vmatprep.subr.mxu0 0.0
    %4338 = vmatpush1.msra.mxu0 %v3982
    %4339 = vmatprep.subr.mxu0 0.0
    %4340 = vmatpush1.msra.mxu0 %v3989
    %4341 = vmatprep.subr.mxu0 0.0
    %4342 = vmatpush1.msra.mxu0 %v3996
    %4343 = vmatprep.subr.mxu0 0.0
    %4344 = vmatpush1.msra.mxu0 %v4003
    %4345 = vmatprep.subr.mxu0 0.0
    %4346 = vmatpush1.msra.mxu0 %v4010
    %4347 = vmatprep.subr.mxu0 0.0
    %4348 = vmatpush1.msra.mxu0 %v4017
    %4349 = vmatprep.subr.mxu0 0.0
    %4350 = vmatpush1.msra.mxu0 %v4024
    %4351 = vmatprep.subr.mxu0 0.0
    %4352 = vmatpush1.msra.mxu0 %v4031
    %4353 = vmatprep.subr.mxu0 0.0
    %4354 = vmatpush1.msra.mxu0 %v4038
    %4355 = vmatprep.subr.mxu0 0.0
    %4356 = vmatpush1.msra.mxu0 %v4045
    %4357 = vmatprep.subr.mxu0 0.0
    %4358 = vmatpush1.msra.mxu0 %v4052
    %4359 = vmatprep.subr.mxu0 0.0
    %4360 = vmatpush1.msra.mxu0 %v4059
    %4361 = vmatprep.subr.mxu0 0.0
    %4362 = vmatpush1.msra.mxu0 %v4066
    %4363 = vmatprep.subr.mxu0 0.0
    %4364 = vmatpush1.msra.mxu0 %v4073
    %4365 = vmatprep.subr.mxu0 0.0
    %4366 = vmatpush1.msra.mxu0 %v4080
    %4367 = vmatprep.subr.mxu0 0.0
    %4368 = vmatpush1.msra.mxu0 %v4087
    %4369 = vmatprep.subr.mxu0 0.0
    %4370 = vmatpush1.msra.mxu0 %v4094
    %4371 = vmatprep.subr.mxu0 0.0
    %4372 = vmatpush1.msra.mxu0 %v4101
    %4373 = vmatprep.subr.mxu0 0.0
    %4374 = vmatpush1.msra.mxu0 %v4108
    %4375 = vmatprep.subr.mxu0 0.0
    %4376 = vmatpush1.msra.mxu0 0.0
    %4377 = vmatprep.subr.mxu0 0.0
    %4378 = vmatpush1.msra.mxu0 0.0
    %4379 = vmatprep.subr.mxu0 0.0
    %4380 = vmatpush1.msra.mxu0 0.0
    %4381 = vmatprep.subr.mxu0 0.0
    %4382 = vmatpush1.msra.mxu0 0.0
    %4383 = vmatprep.subr.mxu0 0.0
    %4384 = vmatpush1.msra.mxu0 0.0
    %4385 = vmatprep.subr.mxu0 0.0
    %4386 = vmatpush1.msra.mxu0 0.0
    %4387 = vmatprep.subr.mxu0 0.0
    %4388 = vmatpush1.msra.mxu0 0.0
    %4389 = vmatprep.subr.mxu0 0.0
    %4390 = vmatpush1.msra.mxu0 0.0
    %4391 = vmatprep.mubr.f32.mxu0 %v4112
    %4392 = vmatmul.mubr.f32.gmra.mrb[0].mxu0 %v4109
    %v4393 = vpop.f32.mrb[0].mxu0
    %v4394 = vadd.f32 0.0, %v4393
    %v4395 = vpop.f32.mrb[0].mxu0
    %4396 = vdwg.mxu0
    %v4404 = vcombine.low %v4181, %v4183
    %v4405 = vcombine.low %v4252, %v4254
    %v4406 = vcombine.low %v4323, %v4325
    %v4408 = vunpack.c.l.s4 1966171168
    %v4409 = vunpack.c.0.s8 %v4408
    %v4410 = vlaneseq
    %v4411 = vshrl.u32 %v4410, 7
    %v4412 = vsub.s32 %v4409, %v4411
    %v4413 = vrot.slane %v4404, %v4412
    %v4415 = vunpack.c.l.s4 1966171168
    %v4416 = vunpack.c.0.s8 %v4415
    %v4417 = vlaneseq
    %v4418 = vshrl.u32 %v4417, 7
    %v4419 = vsub.s32 %v4416, %v4418
    %v4420 = vrot.slane %v4405, %v4419
    %v4422 = vunpack.c.l.s4 1966171168
    %v4423 = vunpack.c.0.s8 %v4422
    %v4424 = vlaneseq
    %v4425 = vshrl.u32 %v4424, 7
    %v4426 = vsub.s32 %v4423, %v4425
    %v4427 = vrot.slane %v4406, %v4426
    %v4429 = vunpack.c.l.s4 1966171168
    %v4430 = vunpack.c.0.s8 %v4429
    %v4431 = vlaneseq
    %v4432 = vshrl.u32 %v4431, 7
    %v4433 = vsub.s32 %v4430, %v4432
    %v4434 = vrot.slane %v4394, %v4433
    %v4435 = vcombine.low %v4413, %v4420
    %v4436 = vcombine.low %v4427, %v4434
    %v4438 = vunpack.c.l.s4 1966171168
    %v4439 = vunpack.c.0.s8 %v4438
    %v4440 = vlaneseq
    %v4441 = vshrl.u32 %v4440, 7
    %v4442 = vsub.s32 %v4439, %v4441
    %v4443 = vrot.slane %v4435, %v4442
    %v4445 = vunpack.c.l.s4 1966171168
    %v4446 = vunpack.c.0.s8 %v4445
    %v4447 = vlaneseq
    %v4448 = vshrl.u32 %v4447, 7
    %v4449 = vsub.s32 %v4446, %v4448
    %v4450 = vrot.slane %v4436, %v4449
    %v4451 = vcombine.low %v4443, %v4450
    %v4453 = vadd.f32 %v3940, %v4451
    %v4454 = vld [vmem:[%s9] sm:$0xff]
    %v4455 = vld [vmem:[%s9 + $0x8] sm:$0xff]
    %v4456 = vld [vmem:[%s9 + $0x10] sm:$0xff]
    %v4457 = vld [vmem:[%s9 + $0x18] sm:$0xff]
    %v4458 = vld [vmem:[%s9 + $0x20] sm:$0xff]
    %v4459 = vld [vmem:[%s9 + $0x28] sm:$0xff]
    %v4460 = vld [vmem:[%s9 + $0x30] sm:$0xff]
    %v4461 = vld [vmem:[%s9 + $0x38] sm:$0xff]
    %v4462 = vld [vmem:[%s9 + $0x40] sm:$0xff]
    %v4463 = vld [vmem:[%s9 + $0x48] sm:$0xff]
    %v4464 = vld [vmem:[%s9 + $0x50] sm:$0xff]
    %v4465 = vld [vmem:[%s9 + $0x58] sm:$0xff]
    %v4466 = vld [vmem:[%s9 + $0x60] sm:$0xff]
    %v4467 = vld [vmem:[%s9 + $0x68] sm:$0xff]
    %v4468 = vld [vmem:[%s9 + $0x70] sm:$0xff]
    %v4469 = vld [vmem:[%s9 + $0x78] sm:$0xff]
    %v4470 = vld [vmem:[%s9 + $0x80] sm:$0xff]
    %v4471 = vld [vmem:[%s9 + $0x88] sm:$0xff]
    %v4472 = vld [vmem:[%s9 + $0x90] sm:$0xff]
    %v4473 = vld [vmem:[%s9 + $0x98] sm:$0xff]
    %v4474 = vld [vmem:[%s9 + $0xa0] sm:$0xff]
    %v4475 = vld [vmem:[%s9 + $0xa8] sm:$0xff]
    %v4476 = vld [vmem:[%s9 + $0xb0] sm:$0xff]
    %v4477 = vld [vmem:[%s9 + $0xb8] sm:$0xff]
    %v4478 = vld [vmem:[%s9 + $0xc0] sm:$0xff]
    %v4479 = vld [vmem:[%s9 + $0xc8] sm:$0xff]
    %v4480 = vld [vmem:[%s9 + $0xd0] sm:$0xff]
    %v4481 = vld [vmem:[%s9 + $0xd8] sm:$0xff]
    %v4482 = vld [vmem:[%s9 + $0xe0] sm:$0xff]
    %v4483 = vld [vmem:[%s9 + $0xe8] sm:$0xff]
    %v4484 = vld [vmem:[%s9 + $0xf0] sm:$0xff]
    %v4485 = vld [vmem:[%s9 + $0xf8] sm:$0xff]
    %v4486 = vld [vmem:[%s9 + $0x100] sm:$0xff]
    %v4487 = vld [vmem:[%s9 + $0x108] sm:$0xff]
    %v4488 = vld [vmem:[%s9 + $0x110] sm:$0xff]
    %v4489 = vld [vmem:[%s9 + $0x118] sm:$0xff]
    %v4490 = vld [vmem:[%s9 + $0x120] sm:$0xff]
    %v4491 = vld [vmem:[%s9 + $0x128] sm:$0xff]
    %v4492 = vld [vmem:[%s9 + $0x130] sm:$0xff]
    %v4493 = vld [vmem:[%s9 + $0x138] sm:$0xff]
    %v4494 = vld [vmem:[%s9 + $0x140] sm:$0xff]
    %v4495 = vld [vmem:[%s9 + $0x148] sm:$0xff]
    %v4496 = vld [vmem:[%s9 + $0x150] sm:$0xff]
    %v4497 = vld [vmem:[%s9 + $0x158] sm:$0xff]
    %v4498 = vld [vmem:[%s9 + $0x160] sm:$0xff]
    %v4499 = vld [vmem:[%s9 + $0x168] sm:$0xff]
    %v4500 = vld [vmem:[%s9 + $0x170] sm:$0xff]
    %v4501 = vld [vmem:[%s9 + $0x178] sm:$0xff]
    %v4502 = vld [vmem:[%s9 + $0x180] sm:$0xff]
    %v4503 = vld [vmem:[%s9 + $0x188] sm:$0xff]
    %v4504 = vld [vmem:[%s9 + $0x190] sm:$0xff]
    %v4505 = vld [vmem:[%s9 + $0x198] sm:$0xff]
    %v4506 = vld [vmem:[%s9 + $0x1a0] sm:$0xff]
    %v4507 = vld [vmem:[%s9 + $0x1a8] sm:$0xff]
    %v4508 = vld [vmem:[%s9 + $0x1b0] sm:$0xff]
    %v4509 = vld [vmem:[%s9 + $0x1b8] sm:$0xff]
    %v4510 = vld [vmem:[%s9 + $0x1c0] sm:$0xff]
    %v4511 = vld [vmem:[%s9 + $0x1c8] sm:$0xff]
    %v4512 = vld [vmem:[%s9 + $0x1d0] sm:$0xff]
    %v4513 = vld [vmem:[%s9 + $0x1d8] sm:$0xff]
    %v4514 = vld [vmem:[%s9 + $0x1e0] sm:$0xff]
    %v4515 = vld [vmem:[%s9 + $0x1e8] sm:$0xff]
    %v4516 = vld [vmem:[%s9 + $0x1f0] sm:$0xff]
    %v4517 = vld [vmem:[%s9 + $0x1f8] sm:$0xff]
    %v4518 = vld [vmem:[%s9 + $0x200] sm:$0xff]
    %v4519 = vld [vmem:[%s9 + $0x208] sm:$0xff]
    %v4520 = vld [vmem:[%s9 + $0x210] sm:$0xff]
    %v4521 = vld [vmem:[%s9 + $0x218] sm:$0xff]
    %v4522 = vld [vmem:[%s9 + $0x220] sm:$0xff]
    %v4523 = vld [vmem:[%s9 + $0x228] sm:$0xff]
    %v4524 = vld [vmem:[%s9 + $0x230] sm:$0xff]
    %v4525 = vld [vmem:[%s9 + $0x238] sm:$0xff]
    %v4526 = vld [vmem:[%s9 + $0x240] sm:$0xff]
    %v4527 = vld [vmem:[%s9 + $0x248] sm:$0xff]
    %v4528 = vld [vmem:[%s9 + $0x250] sm:$0xff]
    %v4529 = vld [vmem:[%s9 + $0x258] sm:$0xff]
    %v4530 = vld [vmem:[%s9 + $0x260] sm:$0xff]
    %v4531 = vld [vmem:[%s9 + $0x268] sm:$0xff]
    %v4532 = vld [vmem:[%s9 + $0x270] sm:$0xff]
    %v4533 = vld [vmem:[%s9 + $0x278] sm:$0xff]
    %v4534 = vld [vmem:[%s9 + $0x280] sm:$0xff]
    %v4535 = vld [vmem:[%s9 + $0x288] sm:$0xff]
    %v4536 = vld [vmem:[%s9 + $0x290] sm:$0xff]
    %v4537 = vld [vmem:[%s9 + $0x298] sm:$0xff]
    %v4538 = vld [vmem:[%s9 + $0x2a0] sm:$0xff]
    %v4539 = vld [vmem:[%s9 + $0x2a8] sm:$0xff]
    %v4540 = vld [vmem:[%s9 + $0x2b0] sm:$0xff]
    %v4541 = vld [vmem:[%s9 + $0x2b8] sm:$0xff]
    %v4542 = vld [vmem:[%s9 + $0x2c0] sm:$0xff]
    %v4543 = vld [vmem:[%s9 + $0x2c8] sm:$0xff]
    %v4544 = vld [vmem:[%s9 + $0x2d0] sm:$0xff]
    %v4545 = vld [vmem:[%s9 + $0x2d8] sm:$0xff]
    %v4546 = vld [vmem:[%s9 + $0x2e0] sm:$0xff]
    %v4547 = vld [vmem:[%s9 + $0x2e8] sm:$0xff]
    %v4548 = vld [vmem:[%s9 + $0x2f0] sm:$0xff]
    %v4549 = vld [vmem:[%s9 + $0x2f8] sm:$0xff]
    %v4550 = vld [vmem:[%s9 + $0x300] sm:$0xff]
    %v4551 = vld [vmem:[%s9 + $0x308] sm:$0xff]
    %v4552 = vld [vmem:[%s9 + $0x310] sm:$0xff]
    %v4553 = vld [vmem:[%s9 + $0x318] sm:$0xff]
    %v4554 = vld [vmem:[%s10] sm:$0x1]
    %v4556 = vlaneseq
    %v4557 = vshrl.u32 %v4556, 7
    %v4558 = vsub.s32 0, %v4557
    %v4559 = vrot.slane %v4453, %v4558
    %v4560 = vlaneseq
    %v4561 = vshrl.u32 %v4560, 7
    %v4562 = vsub.s32 1, %v4561
    %v4563 = vrot.slane %v4453, %v4562
    %v4564 = vlaneseq
    %v4565 = vshrl.u32 %v4564, 7
    %v4566 = vsub.s32 2, %v4565
    %v4567 = vrot.slane %v4453, %v4566
    %v4568 = vlaneseq
    %v4569 = vshrl.u32 %v4568, 7
    %v4570 = vsub.s32 3, %v4569
    %v4571 = vrot.slane %v4453, %v4570
    %v4572 = vlaneseq
    %v4573 = vshrl.u32 %v4572, 7
    %v4574 = vsub.s32 4, %v4573
    %v4575 = vrot.slane %v4453, %v4574
    %v4576 = vlaneseq
    %v4577 = vshrl.u32 %v4576, 7
    %v4578 = vsub.s32 5, %v4577
    %v4579 = vrot.slane %v4453, %v4578
    %v4580 = vlaneseq
    %v4581 = vshrl.u32 %v4580, 7
    %v4582 = vsub.s32 6, %v4581
    %v4583 = vrot.slane %v4453, %v4582
    %vm4590 = vcmask 261120
    %v4591 = vsel %vm4590, %v4583, 0
    %4593 = vmatprep.subr.mxu0 0.0
    %4594 = vmatpush1.msra.mxu0 %v4454
    %4595 = vmatprep.subr.mxu0 0.0
    %4596 = vmatpush1.msra.mxu0 %v4455
    %4597 = vmatprep.subr.mxu0 0.0
    %4598 = vmatpush1.msra.mxu0 %v4456
    %4599 = vmatprep.subr.mxu0 0.0
    %4600 = vmatpush1.msra.mxu0 %v4457
    %4601 = vmatprep.subr.mxu0 0.0
    %4602 = vmatpush1.msra.mxu0 %v4458
    %4603 = vmatprep.subr.mxu0 0.0
    %4604 = vmatpush1.msra.mxu0 %v4459
    %4605 = vmatprep.subr.mxu0 0.0
    %4606 = vmatpush1.msra.mxu0 %v4460
    %4607 = vmatprep.subr.mxu0 0.0
    %4608 = vmatpush1.msra.mxu0 %v4461
    %4609 = vmatprep.subr.mxu0 0.0
    %4610 = vmatpush1.msra.mxu0 %v4462
    %4611 = vmatprep.subr.mxu0 0.0
    %4612 = vmatpush1.msra.mxu0 %v4463
    %4613 = vmatprep.subr.mxu0 0.0
    %4614 = vmatpush1.msra.mxu0 %v4464
    %4615 = vmatprep.subr.mxu0 0.0
    %4616 = vmatpush1.msra.mxu0 %v4465
    %4617 = vmatprep.subr.mxu0 0.0
    %4618 = vmatpush1.msra.mxu0 %v4466
    %4619 = vmatprep.subr.mxu0 0.0
    %4620 = vmatpush1.msra.mxu0 %v4467
    %4621 = vmatprep.subr.mxu0 0.0
    %4622 = vmatpush1.msra.mxu0 %v4468
    %4623 = vmatprep.subr.mxu0 0.0
    %4624 = vmatpush1.msra.mxu0 %v4469
    %4625 = vmatprep.subr.mxu0 0.0
    %4626 = vmatpush1.msra.mxu0 %v4470
    %4627 = vmatprep.subr.mxu0 0.0
    %4628 = vmatpush1.msra.mxu0 %v4471
    %4629 = vmatprep.subr.mxu0 0.0
    %4630 = vmatpush1.msra.mxu0 %v4472
    %4631 = vmatprep.subr.mxu0 0.0
    %4632 = vmatpush1.msra.mxu0 %v4473
    %4633 = vmatprep.subr.mxu0 0.0
    %4634 = vmatpush1.msra.mxu0 %v4474
    %4635 = vmatprep.subr.mxu0 0.0
    %4636 = vmatpush1.msra.mxu0 %v4475
    %4637 = vmatprep.subr.mxu0 0.0
    %4638 = vmatpush1.msra.mxu0 %v4476
    %4639 = vmatprep.subr.mxu0 0.0
    %4640 = vmatpush1.msra.mxu0 %v4477
    %4641 = vmatprep.subr.mxu0 0.0
    %4642 = vmatpush1.msra.mxu0 %v4478
    %4643 = vmatprep.subr.mxu0 0.0
    %4644 = vmatpush1.msra.mxu0 %v4479
    %4645 = vmatprep.subr.mxu0 0.0
    %4646 = vmatpush1.msra.mxu0 %v4480
    %4647 = vmatprep.subr.mxu0 0.0
    %4648 = vmatpush1.msra.mxu0 %v4481
    %4649 = vmatprep.subr.mxu0 0.0
    %4650 = vmatpush1.msra.mxu0 %v4482
    %4651 = vmatprep.subr.mxu0 0.0
    %4652 = vmatpush1.msra.mxu0 %v4483
    %4653 = vmatprep.subr.mxu0 0.0
    %4654 = vmatpush1.msra.mxu0 %v4484
    %4655 = vmatprep.subr.mxu0 0.0
    %4656 = vmatpush1.msra.mxu0 %v4485
    %4657 = vmatprep.mubr.f32.mxu0 %v4563
    %4658 = vmatmul.mubr.f32.gmra.mrb[0].mxu0 %v4559
    %v4659 = vpop.f32.mrb[0].mxu0
    %v4660 = vadd.f32 %v4554, %v4659
    %v4661 = vpop.f32.mrb[0].mxu0
    %4662 = vdwg.mxu0
    %4663 = vmatprep.subr.mxu0 0.0
    %4664 = vmatpush1.msra.mxu0 %v4486
    %4665 = vmatprep.subr.mxu0 0.0
    %4666 = vmatpush1.msra.mxu0 %v4487
    %4667 = vmatprep.subr.mxu0 0.0
    %4668 = vmatpush1.msra.mxu0 %v4488
    %4669 = vmatprep.subr.mxu0 0.0
    %4670 = vmatpush1.msra.mxu0 %v4489
    %4671 = vmatprep.subr.mxu0 0.0
    %4672 = vmatpush1.msra.mxu0 %v4490
    %4673 = vmatprep.subr.mxu0 0.0
    %4674 = vmatpush1.msra.mxu0 %v4491
    %4675 = vmatprep.subr.mxu0 0.0
    %4676 = vmatpush1.msra.mxu0 %v4492
    %4677 = vmatprep.subr.mxu0 0.0
    %4678 = vmatpush1.msra.mxu0 %v4493
    %4679 = vmatprep.subr.mxu0 0.0
    %4680 = vmatpush1.msra.mxu0 %v4494
    %4681 = vmatprep.subr.mxu0 0.0
    %4682 = vmatpush1.msra.mxu0 %v4495
    %4683 = vmatprep.subr.mxu0 0.0
    %4684 = vmatpush1.msra.mxu0 %v4496
    %4685 = vmatprep.subr.mxu0 0.0
    %4686 = vmatpush1.msra.mxu0 %v4497
    %4687 = vmatprep.subr.mxu0 0.0
    %4688 = vmatpush1.msra.mxu0 %v4498
    %4689 = vmatprep.subr.mxu0 0.0
    %4690 = vmatpush1.msra.mxu0 %v4499
    %4691 = vmatprep.subr.mxu0 0.0
    %4692 = vmatpush1.msra.mxu0 %v4500
    %4693 = vmatprep.subr.mxu0 0.0
    %4694 = vmatpush1.msra.mxu0 %v4501
    %4695 = vmatprep.subr.mxu0 0.0
    %4696 = vmatpush1.msra.mxu0 %v4502
    %4697 = vmatprep.subr.mxu0 0.0
    %4698 = vmatpush1.msra.mxu0 %v4503
    %4699 = vmatprep.subr.mxu0 0.0
    %4700 = vmatpush1.msra.mxu0 %v4504
    %4701 = vmatprep.subr.mxu0 0.0
    %4702 = vmatpush1.msra.mxu0 %v4505
    %4703 = vmatprep.subr.mxu0 0.0
    %4704 = vmatpush1.msra.mxu0 %v4506
    %4705 = vmatprep.subr.mxu0 0.0
    %4706 = vmatpush1.msra.mxu0 %v4507
    %4707 = vmatprep.subr.mxu0 0.0
    %4708 = vmatpush1.msra.mxu0 %v4508
    %4709 = vmatprep.subr.mxu0 0.0
    %4710 = vmatpush1.msra.mxu0 %v4509
    %4711 = vmatprep.subr.mxu0 0.0
    %4712 = vmatpush1.msra.mxu0 %v4510
    %4713 = vmatprep.subr.mxu0 0.0
    %4714 = vmatpush1.msra.mxu0 %v4511
    %4715 = vmatprep.subr.mxu0 0.0
    %4716 = vmatpush1.msra.mxu0 %v4512
    %4717 = vmatprep.subr.mxu0 0.0
    %4718 = vmatpush1.msra.mxu0 %v4513
    %4719 = vmatprep.subr.mxu0 0.0
    %4720 = vmatpush1.msra.mxu0 %v4514
    %4721 = vmatprep.subr.mxu0 0.0
    %4722 = vmatpush1.msra.mxu0 %v4515
    %4723 = vmatprep.subr.mxu0 0.0
    %4724 = vmatpush1.msra.mxu0 %v4516
    %4725 = vmatprep.subr.mxu0 0.0
    %4726 = vmatpush1.msra.mxu0 %v4517
    %4727 = vmatprep.mubr.f32.mxu0 %v4571
    %4728 = vmatmul.mubr.f32.gmra.mrb[0].mxu0 %v4567
    %v4729 = vpop.f32.mrb[0].mxu0
    %v4730 = vadd.f32 %v4660, %v4729
    %v4731 = vpop.f32.mrb[0].mxu0
    %4732 = vdwg.mxu0
    %4733 = vmatprep.subr.mxu0 0.0
    %4734 = vmatpush1.msra.mxu0 %v4518
    %4735 = vmatprep.subr.mxu0 0.0
    %4736 = vmatpush1.msra.mxu0 %v4519
    %4737 = vmatprep.subr.mxu0 0.0
    %4738 = vmatpush1.msra.mxu0 %v4520
    %4739 = vmatprep.subr.mxu0 0.0
    %4740 = vmatpush1.msra.mxu0 %v4521
    %4741 = vmatprep.subr.mxu0 0.0
    %4742 = vmatpush1.msra.mxu0 %v4522
    %4743 = vmatprep.subr.mxu0 0.0
    %4744 = vmatpush1.msra.mxu0 %v4523
    %4745 = vmatprep.subr.mxu0 0.0
    %4746 = vmatpush1.msra.mxu0 %v4524
    %4747 = vmatprep.subr.mxu0 0.0
    %4748 = vmatpush1.msra.mxu0 %v4525
    %4749 = vmatprep.subr.mxu0 0.0
    %4750 = vmatpush1.msra.mxu0 %v4526
    %4751 = vmatprep.subr.mxu0 0.0
    %4752 = vmatpush1.msra.mxu0 %v4527
    %4753 = vmatprep.subr.mxu0 0.0
    %4754 = vmatpush1.msra.mxu0 %v4528
    %4755 = vmatprep.subr.mxu0 0.0
    %4756 = vmatpush1.msra.mxu0 %v4529
    %4757 = vmatprep.subr.mxu0 0.0
    %4758 = vmatpush1.msra.mxu0 %v4530
    %4759 = vmatprep.subr.mxu0 0.0
    %4760 = vmatpush1.msra.mxu0 %v4531
    %4761 = vmatprep.subr.mxu0 0.0
    %4762 = vmatpush1.msra.mxu0 %v4532
    %4763 = vmatprep.subr.mxu0 0.0
    %4764 = vmatpush1.msra.mxu0 %v4533
    %4765 = vmatprep.subr.mxu0 0.0
    %4766 = vmatpush1.msra.mxu0 %v4534
    %4767 = vmatprep.subr.mxu0 0.0
    %4768 = vmatpush1.msra.mxu0 %v4535
    %4769 = vmatprep.subr.mxu0 0.0
    %4770 = vmatpush1.msra.mxu0 %v4536
    %4771 = vmatprep.subr.mxu0 0.0
    %4772 = vmatpush1.msra.mxu0 %v4537
    %4773 = vmatprep.subr.mxu0 0.0
    %4774 = vmatpush1.msra.mxu0 %v4538
    %4775 = vmatprep.subr.mxu0 0.0
    %4776 = vmatpush1.msra.mxu0 %v4539
    %4777 = vmatprep.subr.mxu0 0.0
    %4778 = vmatpush1.msra.mxu0 %v4540
    %4779 = vmatprep.subr.mxu0 0.0
    %4780 = vmatpush1.msra.mxu0 %v4541
    %4781 = vmatprep.subr.mxu0 0.0
    %4782 = vmatpush1.msra.mxu0 %v4542
    %4783 = vmatprep.subr.mxu0 0.0
    %4784 = vmatpush1.msra.mxu0 %v4543
    %4785 = vmatprep.subr.mxu0 0.0
    %4786 = vmatpush1.msra.mxu0 %v4544
    %4787 = vmatprep.subr.mxu0 0.0
    %4788 = vmatpush1.msra.mxu0 %v4545
    %4789 = vmatprep.subr.mxu0 0.0
    %4790 = vmatpush1.msra.mxu0 %v4546
    %4791 = vmatprep.subr.mxu0 0.0
    %4792 = vmatpush1.msra.mxu0 %v4547
    %4793 = vmatprep.subr.mxu0 0.0
    %4794 = vmatpush1.msra.mxu0 %v4548
    %4795 = vmatprep.subr.mxu0 0.0
    %4796 = vmatpush1.msra.mxu0 %v4549
    %4797 = vmatprep.mubr.f32.mxu0 %v4579
    %4798 = vmatmul.mubr.f32.gmra.mrb[0].mxu0 %v4575
    %v4799 = vpop.f32.mrb[0].mxu0
    %v4800 = vadd.f32 %v4730, %v4799
    %v4801 = vpop.f32.mrb[0].mxu0
    %4802 = vdwg.mxu0
    %4803 = vmatprep.subr.mxu0 0.0
    %4804 = vmatpush1.msra.mxu0 %v4550
    %4805 = vmatprep.subr.mxu0 0.0
    %4806 = vmatpush1.msra.mxu0 %v4551
    %4807 = vmatprep.subr.mxu0 0.0
    %4808 = vmatpush1.msra.mxu0 %v4552
    %4809 = vmatprep.subr.mxu0 0.0
    %4810 = vmatpush1.msra.mxu0 %v4553
    %4811 = vmatprep.subr.mxu0 0.0
    %4812 = vmatpush1.msra.mxu0 0.0
    %4813 = vmatprep.subr.mxu0 0.0
    %4814 = vmatpush1.msra.mxu0 0.0
    %4815 = vmatprep.subr.mxu0 0.0
    %4816 = vmatpush1.msra.mxu0 0.0
    %4817 = vmatprep.subr.mxu0 0.0
    %4818 = vmatpush1.msra.mxu0 0.0
    %4819 = vmatprep.subr.mxu0 0.0
    %4820 = vmatpush1.msra.mxu0 0.0
    %4821 = vmatprep.subr.mxu0 0.0
    %4822 = vmatpush1.msra.mxu0 0.0
    %4823 = vmatprep.subr.mxu0 0.0
    %4824 = vmatpush1.msra.mxu0 0.0
    %4825 = vmatprep.subr.mxu0 0.0
    %4826 = vmatpush1.msra.mxu0 0.0
    %4827 = vmatprep.subr.mxu0 0.0
    %4828 = vmatpush1.msra.mxu0 0.0
    %4829 = vmatprep.subr.mxu0 0.0
    %4830 = vmatpush1.msra.mxu0 0.0
    %4831 = vmatprep.subr.mxu0 0.0
    %4832 = vmatpush1.msra.mxu0 0.0
    %4833 = vmatprep.subr.mxu0 0.0
    %4834 = vmatpush1.msra.mxu0 0.0
    %4835 = vmatprep.subr.mxu0 0.0
    %4836 = vmatpush1.msra.mxu0 0.0
    %4837 = vmatprep.subr.mxu0 0.0
    %4838 = vmatpush1.msra.mxu0 0.0
    %4839 = vmatprep.subr.mxu0 0.0
    %4840 = vmatpush1.msra.mxu0 0.0
    %4841 = vmatprep.subr.mxu0 0.0
    %4842 = vmatpush1.msra.mxu0 0.0
    %4843 = vmatprep.subr.mxu0 0.0
    %4844 = vmatpush1.msra.mxu0 0.0
    %4845 = vmatprep.subr.mxu0 0.0
    %4846 = vmatpush1.msra.mxu0 0.0
    %4847 = vmatprep.subr.mxu0 0.0
    %4848 = vmatpush1.msra.mxu0 0.0
    %4849 = vmatprep.subr.mxu0 0.0
    %4850 = vmatpush1.msra.mxu0 0.0
    %4851 = vmatprep.subr.mxu0 0.0
    %4852 = vmatpush1.msra.mxu0 0.0
    %4853 = vmatprep.subr.mxu0 0.0
    %4854 = vmatpush1.msra.mxu0 0.0
    %4855 = vmatprep.subr.mxu0 0.0
    %4856 = vmatpush1.msra.mxu0 0.0
    %4857 = vmatprep.subr.mxu0 0.0
    %4858 = vmatpush1.msra.mxu0 0.0
    %4859 = vmatprep.subr.mxu0 0.0
    %4860 = vmatpush1.msra.mxu0 0.0
    %4861 = vmatprep.subr.mxu0 0.0
    %4862 = vmatpush1.msra.mxu0 0.0
    %4863 = vmatprep.subr.mxu0 0.0
    %4864 = vmatpush1.msra.mxu0 0.0
    %4865 = vmatprep.subr.mxu0 0.0
    %4866 = vmatpush1.msra.mxu0 0.0
    %4867 = vmatprep.mubr.f32.mxu0 0.0
    %4868 = vmatmul.mubr.f32.gmra.mrb[0].mxu0 %v4591
    %v4869 = vpop.f32.mrb[0].mxu0
    %v4870 = vadd.f32 %v4800, %v4869
    %v4871 = vpop.f32.mrb[0].mxu0
    %4872 = vdwg.mxu0
    %vm4873 = vcmask 57344
    %4874 = vst.msk [vmem:[#allocation5] sm:$0x1] %vm4873, %v4870
    // Predicated region
    $region46: #{fused_forward.1} parent=1 // pred_check
      _
    $region47: #{fused_forward.1} parent=1 // pred_check_branch
      %4876 = sbr.rel (0) target = $region49
    $region48: #{fused_forward.1} parent=1 // pred_region
      %s4878 = ssub.s32 16, 16
      %4879 = vsyncadd [#allocation6], %s4878
      %s4881 = sshll.u32 [#allocation5], 4
      %s4882 = int_to_ptr.vmem [resolvable:$true] %s4881
      %4884 = dma.vmem_to_hbm [thread:$0]  %s4882, 16, %s11, [#allocation6]
    $region49: #{fused_forward.1} parent=1 // pred_fallthru
      _
    // Predicated region
    $region50: #{fused_forward.1} parent=1 // pred_check
      _
    $region51: #{fused_forward.1} parent=1 // pred_check_branch
      %4886 = sbr.rel (0) target = $region53
    $region52: #{fused_forward.1} parent=1 // pred_region
      %4887 = dma.done [#allocation6], 16
    $region53: #{fused_forward.1} parent=1 // pred_fallthru
      _
    %4888 = vsyncpa [#allocation6], 1

</llo_original>
